<compile_context>
chip_gen: v7x
topology: tpu7x:2x2x1
jax: 0.10.0
libtpu: 0.0.40
codegen_flags: <defaults>
</compile_context>

<pallas_src>
import numpy as np
import jax
import jax.numpy as jnp
from jax.experimental import pallas as pl
from jax.experimental.pallas import tpu as pltpu

GN_EPS = 1e-5  # torch.nn.GroupNorm default


def _silu(v):
    # SiLU(x) = x * sigmoid(x).  exp and the approximate reciprocal both issue
    # into the EUP slot, keeping the VALUs free for the GroupNorm/affine math.
    return v * pl.reciprocal(1.0 + jnp.exp(-v), approx=True)


def _make_resblock_kernel(Nb, H, W, C, Cout, gs):
    HW = H * W
    M = Nb * HW

    def group_norm(h3, A_ref, g_ref, b_ref):
        # h3: (Nb, HW, C) f32 — per-image GroupNorm.  Per-channel spatial
        # moments (XLU sublane reduce); group averaging of the moments is a
        # tiny (Nb, C)@(C, C) matmul, skipped entirely when group_size == 1.
        cm = jnp.mean(h3, axis=1, keepdims=True)          # (Nb, 1, C)  E[x]
        cm2 = jnp.mean(h3 * h3, axis=1, keepdims=True)    # (Nb, 1, C)  E[x^2]
        if gs > 1:
            mu = jnp.dot(cm[:, 0, :], A_ref[...],
                         preferred_element_type=jnp.float32)[:, None, :]
            m2 = jnp.dot(cm2[:, 0, :], A_ref[...],
                         preferred_element_type=jnp.float32)[:, None, :]
        else:
            mu, m2 = cm, cm2                              # gs == 1: A is identity
        var = m2 - mu * mu                                # biased var (matches torch)
        inv = jax.lax.rsqrt(var + GN_EPS)
        scale = inv * g_ref[...]                          # (Nb, 1, C)
        shift = b_ref[...] - mu * scale                   # (Nb, 1, C)
        return h3 * scale + shift

    def conv3x3(hf, mask_ref, w_ref, b_ref):
        # hf: (M, Cin) f32.  Zero-padded 3x3 "SAME" conv as ONE im2col matmul:
        # the 9 shifted windows come from pltpu.roll on the flattened slab
        # (mask kills rows whose source pixel falls outside the image / in a
        # neighbouring image), concatenated along lanes into (M, 9*Cin) bf16.
        wins = []
        for kh in range(3):
            for kw in range(3):
                k = kh * 3 + kw
                off = (kh - 1) * W + (kw - 1)
                if off == 0:
                    wins.append(hf.astype(jnp.bfloat16))   # center tap: mask is all-ones
                else:
                    r = pltpu.roll(hf, shift=(-off) % M, axis=0)
                    wins.append((r * mask_ref[:, k:k + 1]).astype(jnp.bfloat16))
        slab = jnp.concatenate(wins, axis=-1)              # (M, 9*Cin) bf16
        acc = jnp.dot(slab, w_ref[...], preferred_element_type=jnp.float32)
        return acc + b_ref[...]                            # (M, Cout) f32

    def kernel(*refs):
        if gs > 1:
            (x_ref, emb_ref, mask_ref,
             g1_ref, be1_ref, A1_ref, w1_ref, cb1_ref,
             g2_ref, be2_ref, A2_ref, w2_ref, cb2_ref,
             out_ref) = refs
        else:
            (x_ref, emb_ref, mask_ref,
             g1_ref, be1_ref, w1_ref, cb1_ref,
             g2_ref, be2_ref, w2_ref, cb2_ref,
             out_ref) = refs
            A1_ref = A2_ref = None

        x3 = x_ref[...].reshape(Nb, HW, C).astype(jnp.float32)

        # --- in_layers: GroupNorm -> SiLU -> Conv3x3 ---
        h = _silu(group_norm(x3, A1_ref, g1_ref, be1_ref))
        h = conv3x3(h.reshape(M, C), mask_ref, w1_ref, cb1_ref)       # (M, Cout)

        # --- emb_layers bias (SiLU + Linear precomputed wrapper-side) ---
        h = h.reshape(Nb, HW, Cout) + emb_ref[...]                    # (Nb,1,Cout) bcast

        # --- out_layers: GroupNorm -> SiLU -> Dropout(eval: identity) -> Conv3x3 ---
        h = _silu(group_norm(h, A2_ref, g2_ref, be2_ref))
        h = conv3x3(h.reshape(M, Cout), mask_ref, w2_ref, cb2_ref)    # (M, Cout)

        # --- skip connection (Identity, since out_channels == channels) ---
        out = x3.reshape(M, C) + h
        out_ref[...] = out.reshape(Nb, H, W, Cout).astype(out_ref.dtype)

    return kernel


def _conv_window_masks(Nb, H, W):
    """(Nb*H*W, 9) f32 validity masks for the 9 conv taps (compile-time constants)."""
    hh, ww = np.meshgrid(np.arange(H), np.arange(W), indexing="ij")
    hh = np.tile(hh.reshape(-1), Nb)
    ww = np.tile(ww.reshape(-1), Nb)
    cols = []
    for kh in range(3):
        for kw in range(3):
            dh, dw = kh - 1, kw - 1
            valid = ((hh + dh >= 0) & (hh + dh < H) &
                     (ww + dw >= 0) & (ww + dw < W))
            cols.append(valid.astype(np.float32))
    return jnp.asarray(np.stack(cols, axis=1))


def resblock_forward(x_nchw, emb, params, groups=32, block_n=None):
    """x_nchw: (N, C, H, W) f32, emb: (N, E) f32.  Returns (N, Cout, H, W)."""
    N, C, H, W = x_nchw.shape
    Cout = params["w1"].shape[-1]
    assert Cout == C, "kernel implements the Identity-skip path (out_channels == channels)"
    assert C % groups == 0
    gs = C // groups
    HW = H * W

    # Several images per grid step so the im2col matmul sees M = Nb*HW (~256) rows.
    if block_n is None:
        target = min(8, max(1, 256 // HW))
        block_n = 1
        for nb in range(1, min(N, target) + 1):
            if N % nb == 0:
                block_n = nb
    Nb = block_n
    assert N % Nb == 0
    M = Nb * HW

    x = jnp.transpose(x_nchw, (0, 2, 3, 1))                 # NCHW -> NHWC

    # emb_layers (SiLU -> Linear): tiny (N,E)x(E,Cout) matmul, hoisted out of the
    # kernel per perf review; the kernel adds it as a per-image channel bias.
    emb_out = (jax.nn.silu(emb.astype(jnp.float32)) @ params["we"]
               + params["be"]).reshape(N, 1, Cout)

    masks = _conv_window_masks(Nb, H, W)                    # (M, 9) f32

    # bf16-resident conv weights, flattened for the im2col matmul.  HWIO row-major
    # matches the kh-major / kw / cin window-concatenation order in the kernel.
    w1f = params["w1"].reshape(9 * C, Cout).astype(jnp.bfloat16)
    w2f = params["w2"].reshape(9 * Cout, Cout).astype(jnp.bfloat16)

    def const(shape):
        return pl.BlockSpec(shape, lambda n: (0,) * len(shape))

    in_specs = [
        pl.BlockSpec((Nb, H, W, C), lambda n: (n, 0, 0, 0)),   # x (Nb images / step)
        pl.BlockSpec((Nb, 1, Cout), lambda n: (n, 0, 0)),      # emb bias per image
        const((M, 9)),                                         # conv window masks
        const((1, C)), const((1, C)),                          # GN1 gamma/beta
    ]
    operands = [x, emb_out, masks, params["g1"], params["b1"]]
    if gs > 1:
        in_specs.append(const((C, C)))
        operands.append(params["A1"])
    in_specs += [const((9 * C, Cout)), const((1, Cout)),       # conv1 w / b
                 const((1, Cout)), const((1, Cout))]           # GN2 gamma/beta
    operands += [w1f, params["cb1"], params["g2"], params["b2"]]
    if gs > 1:
        in_specs.append(const((Cout, Cout)))
        operands.append(params["A2"])
    in_specs += [const((9 * Cout, Cout)), const((1, Cout))]    # conv2 w / b
    operands += [w2f, params["cb2"]]

    kernel = _make_resblock_kernel(Nb, H, W, C, Cout, gs)

    out_nhwc = pl.pallas_call(
        kernel,
        out_shape=jax.ShapeDtypeStruct((N, H, W, Cout), x.dtype),
        grid_spec=pltpu.PrefetchScalarGridSpec(
            num_scalar_prefetch=0,
            grid=(N // Nb,),
            in_specs=in_specs,
            out_specs=pl.BlockSpec((Nb, H, W, Cout), lambda n: (n, 0, 0, 0)),
        ),
        compiler_params=pltpu.CompilerParams(
            # Batch axis is fully independent -> shard across TensorCores (v7x).
            dimension_semantics=("parallel",),
            vmem_limit_bytes=64 * 1024 * 1024),
    )(*operands)

    return jnp.transpose(out_nhwc, (0, 3, 1, 2))               # NHWC -> NCHW


def group_avg_matrix(C, G):
    """(C, C) matrix M with M[i, j] = 1/group_size if channels i, j share a group.
    Only needed (and only passed to the kernel) when group_size > 1."""
    gsize = C // G
    gid = np.arange(C) // gsize
    A = (gid[:, None] == gid[None, :]).astype(np.float32) / gsize
    return jnp.asarray(A)


def ref_forward_nhwc(x, emb, params, G):
    """Pure-JAX reference (NHWC) mirroring the PyTorch forward (f32, HIGHEST)."""
    def gn(h, gamma, beta):
        N, H, W, C = h.shape
        hg = h.reshape(N, H, W, G, C // G)
        mean = hg.mean(axis=(1, 2, 4), keepdims=True)
        var = ((hg - mean) ** 2).mean(axis=(1, 2, 4), keepdims=True)
        hn = ((hg - mean) * jax.lax.rsqrt(var + GN_EPS)).reshape(N, H, W, C)
        return hn * gamma.reshape(1, 1, 1, C) + beta.reshape(1, 1, 1, C)

    def conv(h, w, b):
        y = jax.lax.conv_general_dilated(
            h, w, (1, 1), "SAME",
            dimension_numbers=("NHWC", "HWIO", "NHWC"),
            precision=jax.lax.Precision.HIGHEST)
        return y + b.reshape(1, 1, 1, -1)

    silu = jax.nn.silu
    h = conv(silu(gn(x, params["g1"], params["b1"])), params["w1"], params["cb1"])
    e = silu(emb) @ params["we"] + params["be"]
    h = h + e[:, None, None, :]
    h = conv(silu(gn(h, params["g2"], params["b2"])), params["w2"], params["cb2"])
    return x + h


if __name__ == "__main__":
    # Shapes consistent with ResBlock(channels=32, emb_channels=64, dropout=0.0).
    # channels=32 is the minimum for which normalization() == GroupNorm(32, C) is valid.
    N, C, H, W = 8, 32, 8, 8
    E = 64
    G = 32          # GroupNorm32
    Cout = C        # out_channels=None -> out_channels = channels -> skip = Identity
    assert C % G == 0 and Cout % G == 0

    key = jax.random.PRNGKey(0)
    ks = jax.random.split(key, 10)
    x = jax.random.normal(ks[0], (N, C, H, W), jnp.float32)
    emb = jax.random.normal(ks[1], (N, E), jnp.float32)

    params = dict(
        # GroupNorm affine params (PyTorch init: gamma=1, beta=0)
        g1=jnp.ones((1, C), jnp.float32),
        b1=jnp.zeros((1, C), jnp.float32),
        # in_layers conv: weight (3,3,Cin,Cout) HWIO, bias (1,Cout)
        w1=0.1 * jax.random.normal(ks[2], (3, 3, C, Cout), jnp.float32),
        cb1=0.1 * jax.random.normal(ks[3], (1, Cout), jnp.float32),
        # emb_layers linear: (E, Cout) (= PyTorch weight transposed), bias (1,Cout)
        we=0.1 * jax.random.normal(ks[4], (E, Cout), jnp.float32),
        be=0.1 * jax.random.normal(ks[5], (1, Cout), jnp.float32),
        g2=jnp.ones((1, Cout), jnp.float32),
        b2=jnp.zeros((1, Cout), jnp.float32),
        # out_layers conv: zero_module() zero-inits these in the original module;
        # small random values exercise the full compute path numerically.
        w2=0.05 * jax.random.normal(ks[6], (3, 3, Cout, Cout), jnp.float32),
        cb2=0.05 * jax.random.normal(ks[7], (1, Cout), jnp.float32),
    )
    # (A1/A2 group-averaging matrices are only needed when C // 32 > 1.)
    # TODO(synk): training-mode Dropout (stochastic masking) and gradient
    # checkpointing have no forward-pass effect at inference and are omitted.

    out = resblock_forward(x, emb, params)
    out = jax.block_until_ready(out)

    # Correctness check against a pure-JAX f32 reference (kernel uses bf16 MXU paths).
    x_nhwc = jnp.transpose(x, (0, 2, 3, 1))
    ref = jnp.transpose(ref_forward_nhwc(x_nhwc, emb, params, G), (0, 3, 1, 2))
    err = float(jnp.max(jnp.abs(out - ref)))
    if err > 5e-2:
        raise AssertionError(f"Pallas ResBlock mismatch: max abs err = {err}")

    print("KERNEL_OK")
</pallas_src>

<mosaic_0001>
module attributes {stable_mosaic.version = 11 : i64} {
  func.func @kernel(%arg0: i32, %arg1: memref<4x8x8x32xf32, #tpu.memory_space<vmem>>, %arg2: memref<4x1x32xf32, #tpu.memory_space<vmem>>, %arg3: memref<256x9xf32, #tpu.memory_space<vmem>>, %arg4: memref<1x32xf32, #tpu.memory_space<vmem>>, %arg5: memref<1x32xf32, #tpu.memory_space<vmem>>, %arg6: memref<288x32xbf16, #tpu.memory_space<vmem>>, %arg7: memref<1x32xf32, #tpu.memory_space<vmem>>, %arg8: memref<1x32xf32, #tpu.memory_space<vmem>>, %arg9: memref<1x32xf32, #tpu.memory_space<vmem>>, %arg10: memref<288x32xbf16, #tpu.memory_space<vmem>>, %arg11: memref<1x32xf32, #tpu.memory_space<vmem>>, %arg12: memref<4x8x8x32xf32, #tpu.memory_space<vmem>>) attributes {dimension_semantics = [#tpu.dimension_semantics<parallel>], iteration_bounds = array<i64: 2>, scalar_prefetch = 0 : i64, scratch_operands = 0 : i64, tpu.core_type = #tpu.core_type<tc>, window_params = [{transform_indices = @transform_0, window_bounds = array<i64: 4, 8, 8, 32>}, {transform_indices = @transform_1, window_bounds = array<i64: 4, 1, 32>}, {pipeline_mode = #tpu.pipeline_mode<synchronous>, transform_indices = @transform_2, window_bounds = array<i64: 256, 9>}, {pipeline_mode = #tpu.pipeline_mode<synchronous>, transform_indices = @transform_3, window_bounds = array<i64: 1, 32>}, {pipeline_mode = #tpu.pipeline_mode<synchronous>, transform_indices = @transform_4, window_bounds = array<i64: 1, 32>}, {pipeline_mode = #tpu.pipeline_mode<synchronous>, transform_indices = @transform_5, window_bounds = array<i64: 288, 32>}, {pipeline_mode = #tpu.pipeline_mode<synchronous>, transform_indices = @transform_6, window_bounds = array<i64: 1, 32>}, {pipeline_mode = #tpu.pipeline_mode<synchronous>, transform_indices = @transform_7, window_bounds = array<i64: 1, 32>}, {pipeline_mode = #tpu.pipeline_mode<synchronous>, transform_indices = @transform_8, window_bounds = array<i64: 1, 32>}, {pipeline_mode = #tpu.pipeline_mode<synchronous>, transform_indices = @transform_9, window_bounds = array<i64: 288, 32>}, {pipeline_mode = #tpu.pipeline_mode<synchronous>, transform_indices = @transform_10, window_bounds = array<i64: 1, 32>}, {transform_indices = @transform_11, window_bounds = array<i64: 4, 8, 8, 32>}]} {
    %c0 = arith.constant 0 : index
    %c0_0 = arith.constant 0 : index
    %c0_1 = arith.constant 0 : index
    %c0_2 = arith.constant 0 : index
    %0 = vector.load %arg1[%c0, %c0_0, %c0_1, %c0_2] : memref<4x8x8x32xf32, #tpu.memory_space<vmem>>, vector<4x8x8x32xf32>
    %1 = vector.shape_cast %0 : vector<4x8x8x32xf32> to vector<4x64x32xf32>
    %cst = arith.constant dense<0.000000e+00> : vector<4x32xf32>
    %2 = vector.multi_reduction <add>, %1, %cst [1] : vector<4x64x32xf32> to vector<4x32xf32>
    %3 = vector.shape_cast %2 : vector<4x32xf32> to vector<4x1x32xf32>
    %cst_3 = arith.constant 6.400000e+01 : f32
    %4 = vector.broadcast %cst_3 : f32 to vector<4x1x32xf32>
    %5 = arith.divf %3, %4 : vector<4x1x32xf32>
    %6 = arith.mulf %1, %1 : vector<4x64x32xf32>
    %cst_4 = arith.constant dense<0.000000e+00> : vector<4x32xf32>
    %7 = vector.multi_reduction <add>, %6, %cst_4 [1] : vector<4x64x32xf32> to vector<4x32xf32>
    %8 = vector.shape_cast %7 : vector<4x32xf32> to vector<4x1x32xf32>
    %cst_5 = arith.constant 6.400000e+01 : f32
    %9 = vector.broadcast %cst_5 : f32 to vector<4x1x32xf32>
    %10 = arith.divf %8, %9 : vector<4x1x32xf32>
    %11 = arith.mulf %5, %5 : vector<4x1x32xf32>
    %12 = arith.subf %10, %11 : vector<4x1x32xf32>
    %cst_6 = arith.constant 9.99999974E-6 : f32
    %13 = vector.broadcast %cst_6 : f32 to vector<4x1x32xf32>
    %14 = arith.addf %12, %13 : vector<4x1x32xf32>
    %15 = math.rsqrt %14 : vector<4x1x32xf32>
    %c0_7 = arith.constant 0 : index
    %c0_8 = arith.constant 0 : index
    %16 = vector.load %arg4[%c0_7, %c0_8] : memref<1x32xf32, #tpu.memory_space<vmem>>, vector<1x32xf32>
    %17 = vector.shape_cast %16 : vector<1x32xf32> to vector<1x1x32xf32>
    %18 = vector.broadcast %17 : vector<1x1x32xf32> to vector<4x1x32xf32>
    %19 = arith.mulf %15, %18 : vector<4x1x32xf32>
    %c0_9 = arith.constant 0 : index
    %c0_10 = arith.constant 0 : index
    %20 = vector.load %arg5[%c0_9, %c0_10] : memref<1x32xf32, #tpu.memory_space<vmem>>, vector<1x32xf32>
    %21 = arith.mulf %5, %19 : vector<4x1x32xf32>
    %22 = vector.shape_cast %20 : vector<1x32xf32> to vector<1x1x32xf32>
    %23 = vector.broadcast %22 : vector<1x1x32xf32> to vector<4x1x32xf32>
    %24 = arith.subf %23, %21 : vector<4x1x32xf32>
    %25 = vector.broadcast %19 : vector<4x1x32xf32> to vector<4x64x32xf32>
    %26 = arith.mulf %1, %25 : vector<4x64x32xf32>
    %27 = vector.broadcast %24 : vector<4x1x32xf32> to vector<4x64x32xf32>
    %28 = arith.addf %26, %27 : vector<4x64x32xf32>
    %cst_11 = arith.constant 0.000000e+00 : f32
    %29 = vector.broadcast %cst_11 : f32 to vector<4x64x32xf32>
    %30 = arith.subf %29, %28 : vector<4x64x32xf32>
    %31 = math.exp %30 : vector<4x64x32xf32>
    %cst_12 = arith.constant 1.000000e+00 : f32
    %32 = vector.broadcast %cst_12 : f32 to vector<4x64x32xf32>
    %33 = arith.addf %32, %31 : vector<4x64x32xf32>
    %34 = tpu.reciprocal %33 {approx = true} : vector<4x64x32xf32> -> vector<4x64x32xf32>
    %35 = arith.mulf %28, %34 : vector<4x64x32xf32>
    %36 = vector.shape_cast %35 : vector<4x64x32xf32> to vector<256x32xf32>
    %c9_i32 = arith.constant 9 : i32
    %37 = tpu.dynamic_rotate %36 by %c9_i32 dim 0 : vector<256x32xf32>, i32 -> vector<256x32xf32>
    %c0_13 = arith.constant 0 : index
    %c0_14 = arith.constant 0 : index
    %38 = vector.load %arg3[%c0_13, %c0_14] : memref<256x9xf32, #tpu.memory_space<vmem>>, vector<256x1xf32>
    %39 = vector.broadcast %38 : vector<256x1xf32> to vector<256x32xf32>
    %40 = arith.mulf %37, %39 : vector<256x32xf32>
    %41 = arith.truncf %40 : vector<256x32xf32> to vector<256x32xbf16>
    %c8_i32 = arith.constant 8 : i32
    %42 = tpu.dynamic_rotate %36 by %c8_i32 dim 0 : vector<256x32xf32>, i32 -> vector<256x32xf32>
    %c0_15 = arith.constant 0 : index
    %c1 = arith.constant 1 : index
    %43 = vector.load %arg3[%c0_15, %c1] : memref<256x9xf32, #tpu.memory_space<vmem>>, vector<256x1xf32>
    %44 = vector.broadcast %43 : vector<256x1xf32> to vector<256x32xf32>
    %45 = arith.mulf %42, %44 : vector<256x32xf32>
    %46 = arith.truncf %45 : vector<256x32xf32> to vector<256x32xbf16>
    %c7_i32 = arith.constant 7 : i32
    %47 = tpu.dynamic_rotate %36 by %c7_i32 dim 0 : vector<256x32xf32>, i32 -> vector<256x32xf32>
    %c0_16 = arith.constant 0 : index
    %c2 = arith.constant 2 : index
    %48 = vector.load %arg3[%c0_16, %c2] : memref<256x9xf32, #tpu.memory_space<vmem>>, vector<256x1xf32>
    %49 = vector.broadcast %48 : vector<256x1xf32> to vector<256x32xf32>
    %50 = arith.mulf %47, %49 : vector<256x32xf32>
    %51 = arith.truncf %50 : vector<256x32xf32> to vector<256x32xbf16>
    %c1_i32 = arith.constant 1 : i32
    %52 = tpu.dynamic_rotate %36 by %c1_i32 dim 0 : vector<256x32xf32>, i32 -> vector<256x32xf32>
    %c0_17 = arith.constant 0 : index
    %c3 = arith.constant 3 : index
    %53 = vector.load %arg3[%c0_17, %c3] : memref<256x9xf32, #tpu.memory_space<vmem>>, vector<256x1xf32>
    %54 = vector.broadcast %53 : vector<256x1xf32> to vector<256x32xf32>
    %55 = arith.mulf %52, %54 : vector<256x32xf32>
    %56 = arith.truncf %55 : vector<256x32xf32> to vector<256x32xbf16>
    %57 = arith.truncf %36 : vector<256x32xf32> to vector<256x32xbf16>
    %c255_i32 = arith.constant 255 : i32
    %58 = tpu.dynamic_rotate %36 by %c255_i32 dim 0 : vector<256x32xf32>, i32 -> vector<256x32xf32>
    %c0_18 = arith.constant 0 : index
    %c5 = arith.constant 5 : index
    %59 = vector.load %arg3[%c0_18, %c5] : memref<256x9xf32, #tpu.memory_space<vmem>>, vector<256x1xf32>
    %60 = vector.broadcast %59 : vector<256x1xf32> to vector<256x32xf32>
    %61 = arith.mulf %58, %60 : vector<256x32xf32>
    %62 = arith.truncf %61 : vector<256x32xf32> to vector<256x32xbf16>
    %c249_i32 = arith.constant 249 : i32
    %63 = tpu.dynamic_rotate %36 by %c249_i32 dim 0 : vector<256x32xf32>, i32 -> vector<256x32xf32>
    %c0_19 = arith.constant 0 : index
    %c6 = arith.constant 6 : index
    %64 = vector.load %arg3[%c0_19, %c6] : memref<256x9xf32, #tpu.memory_space<vmem>>, vector<256x1xf32>
    %65 = vector.broadcast %64 : vector<256x1xf32> to vector<256x32xf32>
    %66 = arith.mulf %63, %65 : vector<256x32xf32>
    %67 = arith.truncf %66 : vector<256x32xf32> to vector<256x32xbf16>
    %c248_i32 = arith.constant 248 : i32
    %68 = tpu.dynamic_rotate %36 by %c248_i32 dim 0 : vector<256x32xf32>, i32 -> vector<256x32xf32>
    %c0_20 = arith.constant 0 : index
    %c7 = arith.constant 7 : index
    %69 = vector.load %arg3[%c0_20, %c7] : memref<256x9xf32, #tpu.memory_space<vmem>>, vector<256x1xf32>
    %70 = vector.broadcast %69 : vector<256x1xf32> to vector<256x32xf32>
    %71 = arith.mulf %68, %70 : vector<256x32xf32>
    %72 = arith.truncf %71 : vector<256x32xf32> to vector<256x32xbf16>
    %c247_i32 = arith.constant 247 : i32
    %73 = tpu.dynamic_rotate %36 by %c247_i32 dim 0 : vector<256x32xf32>, i32 -> vector<256x32xf32>
    %c0_21 = arith.constant 0 : index
    %c8 = arith.constant 8 : index
    %74 = vector.load %arg3[%c0_21, %c8] : memref<256x9xf32, #tpu.memory_space<vmem>>, vector<256x1xf32>
    %75 = vector.broadcast %74 : vector<256x1xf32> to vector<256x32xf32>
    %76 = arith.mulf %73, %75 : vector<256x32xf32>
    %77 = arith.truncf %76 : vector<256x32xf32> to vector<256x32xbf16>
    %78 = tpu.concatenate %41, %46, %51, %56, %57, %62, %67, %72, %77 in 1 : vector<256x32xbf16>, vector<256x32xbf16>, vector<256x32xbf16>, vector<256x32xbf16>, vector<256x32xbf16>, vector<256x32xbf16>, vector<256x32xbf16>, vector<256x32xbf16>, vector<256x32xbf16> -> vector<256x288xbf16>
    %c0_22 = arith.constant 0 : index
    %c0_23 = arith.constant 0 : index
    %79 = vector.load %arg6[%c0_22, %c0_23] : memref<288x32xbf16, #tpu.memory_space<vmem>>, vector<288x32xbf16>
    %cst_24 = arith.constant dense<0.000000e+00> : vector<256x32xf32>
    %80 = tpu.matmul %78, %79, %cst_24 {dimension_numbers = #tpu.dot_dimension_numbers<[1], [0], [0], [1], [0, 0, 1, 1], [], []>} : vector<256x288xbf16>, vector<288x32xbf16>, vector<256x32xf32> -> vector<256x32xf32>
    %c0_25 = arith.constant 0 : index
    %c0_26 = arith.constant 0 : index
    %81 = vector.load %arg7[%c0_25, %c0_26] : memref<1x32xf32, #tpu.memory_space<vmem>>, vector<1x32xf32>
    %82 = vector.broadcast %81 : vector<1x32xf32> to vector<256x32xf32>
    %83 = arith.addf %80, %82 : vector<256x32xf32>
    %84 = vector.shape_cast %83 : vector<256x32xf32> to vector<4x64x32xf32>
    %c0_27 = arith.constant 0 : index
    %c0_28 = arith.constant 0 : index
    %c0_29 = arith.constant 0 : index
    %85 = vector.load %arg2[%c0_27, %c0_28, %c0_29] : memref<4x1x32xf32, #tpu.memory_space<vmem>>, vector<4x1x32xf32>
    %86 = vector.broadcast %85 : vector<4x1x32xf32> to vector<4x64x32xf32>
    %87 = arith.addf %84, %86 : vector<4x64x32xf32>
    %cst_30 = arith.constant dense<0.000000e+00> : vector<4x32xf32>
    %88 = vector.multi_reduction <add>, %87, %cst_30 [1] : vector<4x64x32xf32> to vector<4x32xf32>
    %89 = vector.shape_cast %88 : vector<4x32xf32> to vector<4x1x32xf32>
    %cst_31 = arith.constant 6.400000e+01 : f32
    %90 = vector.broadcast %cst_31 : f32 to vector<4x1x32xf32>
    %91 = arith.divf %89, %90 : vector<4x1x32xf32>
    %92 = arith.mulf %87, %87 : vector<4x64x32xf32>
    %cst_32 = arith.constant dense<0.000000e+00> : vector<4x32xf32>
    %93 = vector.multi_reduction <add>, %92, %cst_32 [1] : vector<4x64x32xf32> to vector<4x32xf32>
    %94 = vector.shape_cast %93 : vector<4x32xf32> to vector<4x1x32xf32>
    %cst_33 = arith.constant 6.400000e+01 : f32
    %95 = vector.broadcast %cst_33 : f32 to vector<4x1x32xf32>
    %96 = arith.divf %94, %95 : vector<4x1x32xf32>
    %97 = arith.mulf %91, %91 : vector<4x1x32xf32>
    %98 = arith.subf %96, %97 : vector<4x1x32xf32>
    %cst_34 = arith.constant 9.99999974E-6 : f32
    %99 = vector.broadcast %cst_34 : f32 to vector<4x1x32xf32>
    %100 = arith.addf %98, %99 : vector<4x1x32xf32>
    %101 = math.rsqrt %100 : vector<4x1x32xf32>
    %c0_35 = arith.constant 0 : index
    %c0_36 = arith.constant 0 : index
    %102 = vector.load %arg8[%c0_35, %c0_36] : memref<1x32xf32, #tpu.memory_space<vmem>>, vector<1x32xf32>
    %103 = vector.shape_cast %102 : vector<1x32xf32> to vector<1x1x32xf32>
    %104 = vector.broadcast %103 : vector<1x1x32xf32> to vector<4x1x32xf32>
    %105 = arith.mulf %101, %104 : vector<4x1x32xf32>
    %c0_37 = arith.constant 0 : index
    %c0_38 = arith.constant 0 : index
    %106 = vector.load %arg9[%c0_37, %c0_38] : memref<1x32xf32, #tpu.memory_space<vmem>>, vector<1x32xf32>
    %107 = arith.mulf %91, %105 : vector<4x1x32xf32>
    %108 = vector.shape_cast %106 : vector<1x32xf32> to vector<1x1x32xf32>
    %109 = vector.broadcast %108 : vector<1x1x32xf32> to vector<4x1x32xf32>
    %110 = arith.subf %109, %107 : vector<4x1x32xf32>
    %111 = vector.broadcast %105 : vector<4x1x32xf32> to vector<4x64x32xf32>
    %112 = arith.mulf %87, %111 : vector<4x64x32xf32>
    %113 = vector.broadcast %110 : vector<4x1x32xf32> to vector<4x64x32xf32>
    %114 = arith.addf %112, %113 : vector<4x64x32xf32>
    %cst_39 = arith.constant 0.000000e+00 : f32
    %115 = vector.broadcast %cst_39 : f32 to vector<4x64x32xf32>
    %116 = arith.subf %115, %114 : vector<4x64x32xf32>
    %117 = math.exp %116 : vector<4x64x32xf32>
    %cst_40 = arith.constant 1.000000e+00 : f32
    %118 = vector.broadcast %cst_40 : f32 to vector<4x64x32xf32>
    %119 = arith.addf %118, %117 : vector<4x64x32xf32>
    %120 = tpu.reciprocal %119 {approx = true} : vector<4x64x32xf32> -> vector<4x64x32xf32>
    %121 = arith.mulf %114, %120 : vector<4x64x32xf32>
    %122 = vector.shape_cast %121 : vector<4x64x32xf32> to vector<256x32xf32>
    %c9_i32_41 = arith.constant 9 : i32
    %123 = tpu.dynamic_rotate %122 by %c9_i32_41 dim 0 : vector<256x32xf32>, i32 -> vector<256x32xf32>
    %c0_42 = arith.constant 0 : index
    %c0_43 = arith.constant 0 : index
    %124 = vector.load %arg3[%c0_42, %c0_43] : memref<256x9xf32, #tpu.memory_space<vmem>>, vector<256x1xf32>
    %125 = vector.broadcast %124 : vector<256x1xf32> to vector<256x32xf32>
    %126 = arith.mulf %123, %125 : vector<256x32xf32>
    %127 = arith.truncf %126 : vector<256x32xf32> to vector<256x32xbf16>
    %c8_i32_44 = arith.constant 8 : i32
    %128 = tpu.dynamic_rotate %122 by %c8_i32_44 dim 0 : vector<256x32xf32>, i32 -> vector<256x32xf32>
    %c0_45 = arith.constant 0 : index
    %c1_46 = arith.constant 1 : index
    %129 = vector.load %arg3[%c0_45, %c1_46] : memref<256x9xf32, #tpu.memory_space<vmem>>, vector<256x1xf32>
    %130 = vector.broadcast %129 : vector<256x1xf32> to vector<256x32xf32>
    %131 = arith.mulf %128, %130 : vector<256x32xf32>
    %132 = arith.truncf %131 : vector<256x32xf32> to vector<256x32xbf16>
    %c7_i32_47 = arith.constant 7 : i32
    %133 = tpu.dynamic_rotate %122 by %c7_i32_47 dim 0 : vector<256x32xf32>, i32 -> vector<256x32xf32>
    %c0_48 = arith.constant 0 : index
    %c2_49 = arith.constant 2 : index
    %134 = vector.load %arg3[%c0_48, %c2_49] : memref<256x9xf32, #tpu.memory_space<vmem>>, vector<256x1xf32>
    %135 = vector.broadcast %134 : vector<256x1xf32> to vector<256x32xf32>
    %136 = arith.mulf %133, %135 : vector<256x32xf32>
    %137 = arith.truncf %136 : vector<256x32xf32> to vector<256x32xbf16>
    %c1_i32_50 = arith.constant 1 : i32
    %138 = tpu.dynamic_rotate %122 by %c1_i32_50 dim 0 : vector<256x32xf32>, i32 -> vector<256x32xf32>
    %c0_51 = arith.constant 0 : index
    %c3_52 = arith.constant 3 : index
    %139 = vector.load %arg3[%c0_51, %c3_52] : memref<256x9xf32, #tpu.memory_space<vmem>>, vector<256x1xf32>
    %140 = vector.broadcast %139 : vector<256x1xf32> to vector<256x32xf32>
    %141 = arith.mulf %138, %140 : vector<256x32xf32>
    %142 = arith.truncf %141 : vector<256x32xf32> to vector<256x32xbf16>
    %143 = arith.truncf %122 : vector<256x32xf32> to vector<256x32xbf16>
    %c255_i32_53 = arith.constant 255 : i32
    %144 = tpu.dynamic_rotate %122 by %c255_i32_53 dim 0 : vector<256x32xf32>, i32 -> vector<256x32xf32>
    %c0_54 = arith.constant 0 : index
    %c5_55 = arith.constant 5 : index
    %145 = vector.load %arg3[%c0_54, %c5_55] : memref<256x9xf32, #tpu.memory_space<vmem>>, vector<256x1xf32>
    %146 = vector.broadcast %145 : vector<256x1xf32> to vector<256x32xf32>
    %147 = arith.mulf %144, %146 : vector<256x32xf32>
    %148 = arith.truncf %147 : vector<256x32xf32> to vector<256x32xbf16>
    %c249_i32_56 = arith.constant 249 : i32
    %149 = tpu.dynamic_rotate %122 by %c249_i32_56 dim 0 : vector<256x32xf32>, i32 -> vector<256x32xf32>
    %c0_57 = arith.constant 0 : index
    %c6_58 = arith.constant 6 : index
    %150 = vector.load %arg3[%c0_57, %c6_58] : memref<256x9xf32, #tpu.memory_space<vmem>>, vector<256x1xf32>
    %151 = vector.broadcast %150 : vector<256x1xf32> to vector<256x32xf32>
    %152 = arith.mulf %149, %151 : vector<256x32xf32>
    %153 = arith.truncf %152 : vector<256x32xf32> to vector<256x32xbf16>
    %c248_i32_59 = arith.constant 248 : i32
    %154 = tpu.dynamic_rotate %122 by %c248_i32_59 dim 0 : vector<256x32xf32>, i32 -> vector<256x32xf32>
    %c0_60 = arith.constant 0 : index
    %c7_61 = arith.constant 7 : index
    %155 = vector.load %arg3[%c0_60, %c7_61] : memref<256x9xf32, #tpu.memory_space<vmem>>, vector<256x1xf32>
    %156 = vector.broadcast %155 : vector<256x1xf32> to vector<256x32xf32>
    %157 = arith.mulf %154, %156 : vector<256x32xf32>
    %158 = arith.truncf %157 : vector<256x32xf32> to vector<256x32xbf16>
    %c247_i32_62 = arith.constant 247 : i32
    %159 = tpu.dynamic_rotate %122 by %c247_i32_62 dim 0 : vector<256x32xf32>, i32 -> vector<256x32xf32>
    %c0_63 = arith.constant 0 : index
    %c8_64 = arith.constant 8 : index
    %160 = vector.load %arg3[%c0_63, %c8_64] : memref<256x9xf32, #tpu.memory_space<vmem>>, vector<256x1xf32>
    %161 = vector.broadcast %160 : vector<256x1xf32> to vector<256x32xf32>
    %162 = arith.mulf %159, %161 : vector<256x32xf32>
    %163 = arith.truncf %162 : vector<256x32xf32> to vector<256x32xbf16>
    %164 = tpu.concatenate %127, %132, %137, %142, %143, %148, %153, %158, %163 in 1 : vector<256x32xbf16>, vector<256x32xbf16>, vector<256x32xbf16>, vector<256x32xbf16>, vector<256x32xbf16>, vector<256x32xbf16>, vector<256x32xbf16>, vector<256x32xbf16>, vector<256x32xbf16> -> vector<256x288xbf16>
    %c0_65 = arith.constant 0 : index
    %c0_66 = arith.constant 0 : index
    %165 = vector.load %arg10[%c0_65, %c0_66] : memref<288x32xbf16, #tpu.memory_space<vmem>>, vector<288x32xbf16>
    %cst_67 = arith.constant dense<0.000000e+00> : vector<256x32xf32>
    %166 = tpu.matmul %164, %165, %cst_67 {dimension_numbers = #tpu.dot_dimension_numbers<[1], [0], [0], [1], [0, 0, 1, 1], [], []>} : vector<256x288xbf16>, vector<288x32xbf16>, vector<256x32xf32> -> vector<256x32xf32>
    %c0_68 = arith.constant 0 : index
    %c0_69 = arith.constant 0 : index
    %167 = vector.load %arg11[%c0_68, %c0_69] : memref<1x32xf32, #tpu.memory_space<vmem>>, vector<1x32xf32>
    %168 = vector.broadcast %167 : vector<1x32xf32> to vector<256x32xf32>
    %169 = arith.addf %166, %168 : vector<256x32xf32>
    %170 = vector.shape_cast %1 : vector<4x64x32xf32> to vector<256x32xf32>
    %171 = arith.addf %170, %169 : vector<256x32xf32>
    %172 = vector.shape_cast %171 : vector<256x32xf32> to vector<4x8x8x32xf32>
    %c0_70 = arith.constant 0 : index
    %c0_71 = arith.constant 0 : index
    %c0_72 = arith.constant 0 : index
    %c0_73 = arith.constant 0 : index
    %173 = vector.load %arg12[%c0_70, %c0_71, %c0_72, %c0_73] : memref<4x8x8x32xf32, #tpu.memory_space<vmem>>, vector<4x8x8x32xf32>
    tpu.vector_store %arg12[%c0_70, %c0_71, %c0_72, %c0_73], %172 {strides = array<i32>} : memref<4x8x8x32xf32, #tpu.memory_space<vmem>>, vector<4x8x8x32xf32>,
    return
  }
  func.func @transform_0(%arg0: i32) -> (i32, i32, i32, i32) {
    %c0_i32 = arith.constant 0 : i32
    %c0_i32_0 = arith.constant 0 : i32
    %c0_i32_1 = arith.constant 0 : i32
    %c0_i32_2 = arith.constant 0 : i32
    return %arg0, %c0_i32, %c0_i32_0, %c0_i32_1 : i32, i32, i32, i32
  }
  func.func @transform_1(%arg0: i32) -> (i32, i32, i32) {
    %c0_i32 = arith.constant 0 : i32
    %c0_i32_0 = arith.constant 0 : i32
    %c0_i32_1 = arith.constant 0 : i32
    return %arg0, %c0_i32, %c0_i32_0 : i32, i32, i32
  }
  func.func @transform_2(%arg0: i32) -> (i32, i32) {
    %c0_i32 = arith.constant 0 : i32
    %c0_i32_0 = arith.constant 0 : i32
    %c0_i32_1 = arith.constant 0 : i32
    return %c0_i32, %c0_i32_0 : i32, i32
  }
  func.func @transform_3(%arg0: i32) -> (i32, i32) {
    %c0_i32 = arith.constant 0 : i32
    %c0_i32_0 = arith.constant 0 : i32
    %c0_i32_1 = arith.constant 0 : i32
    return %c0_i32, %c0_i32_0 : i32, i32
  }
  func.func @transform_4(%arg0: i32) -> (i32, i32) {
    %c0_i32 = arith.constant 0 : i32
    %c0_i32_0 = arith.constant 0 : i32
    %c0_i32_1 = arith.constant 0 : i32
    return %c0_i32, %c0_i32_0 : i32, i32
  }
  func.func @transform_5(%arg0: i32) -> (i32, i32) {
    %c0_i32 = arith.constant 0 : i32
    %c0_i32_0 = arith.constant 0 : i32
    %c0_i32_1 = arith.constant 0 : i32
    return %c0_i32, %c0_i32_0 : i32, i32
  }
  func.func @transform_6(%arg0: i32) -> (i32, i32) {
    %c0_i32 = arith.constant 0 : i32
    %c0_i32_0 = arith.constant 0 : i32
    %c0_i32_1 = arith.constant 0 : i32
    return %c0_i32, %c0_i32_0 : i32, i32
  }
  func.func @transform_7(%arg0: i32) -> (i32, i32) {
    %c0_i32 = arith.constant 0 : i32
    %c0_i32_0 = arith.constant 0 : i32
    %c0_i32_1 = arith.constant 0 : i32
    return %c0_i32, %c0_i32_0 : i32, i32
  }
  func.func @transform_8(%arg0: i32) -> (i32, i32) {
    %c0_i32 = arith.constant 0 : i32
    %c0_i32_0 = arith.constant 0 : i32
    %c0_i32_1 = arith.constant 0 : i32
    return %c0_i32, %c0_i32_0 : i32, i32
  }
  func.func @transform_9(%arg0: i32) -> (i32, i32) {
    %c0_i32 = arith.constant 0 : i32
    %c0_i32_0 = arith.constant 0 : i32
    %c0_i32_1 = arith.constant 0 : i32
    return %c0_i32, %c0_i32_0 : i32, i32
  }
  func.func @transform_10(%arg0: i32) -> (i32, i32) {
    %c0_i32 = arith.constant 0 : i32
    %c0_i32_0 = arith.constant 0 : i32
    %c0_i32_1 = arith.constant 0 : i32
    return %c0_i32, %c0_i32_0 : i32, i32
  }
  func.func @transform_11(%arg0: i32) -> (i32, i32, i32, i32) {
    %c0_i32 = arith.constant 0 : i32
    %c0_i32_0 = arith.constant 0 : i32
    %c0_i32_1 = arith.constant 0 : i32
    %c0_i32_2 = arith.constant 0 : i32
    return %arg0, %c0_i32, %c0_i32_0, %c0_i32_1 : i32, i32, i32, i32
  }
}

</mosaic_0001>

<llo_original>
// kernel: tpu_custom_call.1
$region0: #{tpu_custom_call.1}
  #allocation0 [shape = 'u32[]', space=smem, size = 0x4, offset = 0x4, fixed_abs, tag = 'smem constant byte address 0x4 - core index']
  #allocation1 [shape = 'u32[144,128]{1,0:T(1,128)}', space=vmem, size = 0x12000, scoped, tag = 'internal scratch']
  %s0 = inlined_call_operand.hbm [shape: f32[8,8,8,32], index: 0, kind: input, shape index: {}]
  %s1 = inlined_call_operand.hbm [shape: f32[8,1,32], index: 1, kind: input, shape index: {}]
  %s2 = inlined_call_operand.hbm [shape: f32[256,9], index: 2, kind: input, shape index: {}]
  %s3 = inlined_call_operand.hbm [shape: f32[1,32], index: 3, kind: input, shape index: {}]
  %s4 = inlined_call_operand.hbm [shape: f32[1,32], index: 4, kind: input, shape index: {}]
  %s5 = inlined_call_operand.hbm [shape: bf16[288,32], index: 5, kind: input, shape index: {}]
  %s6 = inlined_call_operand.hbm [shape: f32[1,32], index: 6, kind: input, shape index: {}]
  %s7 = inlined_call_operand.hbm [shape: f32[1,32], index: 7, kind: input, shape index: {}]
  %s8 = inlined_call_operand.hbm [shape: f32[1,32], index: 8, kind: input, shape index: {}]
  %s9 = inlined_call_operand.hbm [shape: bf16[288,32], index: 9, kind: input, shape index: {}]
  %s10 = inlined_call_operand.hbm [shape: f32[1,32], index: 10, kind: input, shape index: {}]
  %s11 = inlined_call_operand.hbm [shape: f32[8,8,8,32], index: 11, kind: output, shape index: {}]
  %s12 = sld [smem:[#allocation0]]
  $region121: #{tpu_custom_call.1} parent=0
    _
  %s14 = ssub.s32 1, %s12
  %s15 = scalar_select 0, %s14, %s12
  $region1: #{tpu_custom_call.1} parent=0
    #allocation2 [shape = 'u8[262144]{0}', space=vmem, size = 0x40000, scoped, tag = 'input window, operand 0']
    #allocation3 [shape = 's32[2]{0}', space=sflag, size = 0x8, scoped, tag = 'scoped memory for tpu_custom_call.1']
    #allocation4 [shape = 's32[2]{0}', space=sflag, size = 0x8, scoped, tag = 'scoped memory for tpu_custom_call.1']
    #allocation5 [shape = 'u8[4096]{0}', space=vmem, size = 0x1000, scoped, tag = 'input window, operand 1']
    #allocation6 [shape = 's32[2]{0}', space=sflag, size = 0x8, scoped, tag = 'scoped memory for tpu_custom_call.1']
    #allocation7 [shape = 'u8[131072]{0}', space=vmem, size = 0x20000, scoped, tag = 'input window, operand 2, single buffered']
    #allocation8 [shape = 'u8[512]{0}', space=vmem, size = 0x400, scoped, tag = 'input window, operand 3, single buffered']
    #allocation9 [shape = 's32[1]{0}', space=sflag, size = 0x4, scoped, tag = 'scoped memory for tpu_custom_call.1']
    #allocation10 [shape = 'u8[512]{0}', space=vmem, size = 0x400, scoped, tag = 'input window, operand 4, single buffered']
    #allocation11 [shape = 'u8[73728]{0}', space=vmem, size = 0x12000, scoped, tag = 'input window, operand 5, single buffered']
    #allocation12 [shape = 's32[1]{0}', space=sflag, size = 0x4, scoped, tag = 'scoped memory for tpu_custom_call.1']
    #allocation13 [shape = 'u8[512]{0}', space=vmem, size = 0x400, scoped, tag = 'input window, operand 6, single buffered']
    #allocation14 [shape = 'u8[512]{0}', space=vmem, size = 0x400, scoped, tag = 'input window, operand 7, single buffered']
    #allocation15 [shape = 's32[1]{0}', space=sflag, size = 0x4, scoped, tag = 'scoped memory for tpu_custom_call.1']
    #allocation16 [shape = 'u8[512]{0}', space=vmem, size = 0x400, scoped, tag = 'input window, operand 8, single buffered']
    #allocation17 [shape = 'u8[73728]{0}', space=vmem, size = 0x12000, scoped, tag = 'input window, operand 9, single buffered']
    #allocation18 [shape = 's32[1]{0}', space=sflag, size = 0x4, scoped, tag = 'scoped memory for tpu_custom_call.1']
    #allocation19 [shape = 'u8[512]{0}', space=vmem, size = 0x400, scoped, tag = 'input window, operand 10, single buffered']
    #allocation20 [shape = 'u8[262144]{0}', space=vmem, size = 0x40000, scoped, tag = 'output window, operand 0']
    %16 = vsyncpa [#allocation3], 0
    %s17 = scalar_lea.sflag [#allocation3], 1
    %18 = vsyncpa %s17, 0
    %19 = vsyncpa [#allocation6], 0
    %s20 = scalar_lea.sflag [#allocation6], 1
    %21 = vsyncpa %s20, 0
    %22 = vsyncpa [#allocation9], 0
    %23 = vsyncpa [#allocation12], 0
    %24 = vsyncpa [#allocation15], 0
    %25 = vsyncpa [#allocation18], 0
    %26 = vsyncpa [#allocation4], 0
    %s27 = scalar_lea.sflag [#allocation4], 1
    %28 = vsyncpa %s27, 0
    loop: start=0, step=1, limit=4
    $region2: #{tpu_custom_call.1} parent=1 // loop_pre_header
      _
    $region3: #{tpu_custom_call.1} parent=1 // loop_header
      %s30 = sphi 0, %s34
      %p31 = scmp.ge.s32.totalorder %s30, 4
      %s40 = sphi 0, %s42
      %s43 = sphi 0, %s40
      %s44 = sphi 0, %s43
      %s60 = sphi 0, %s44
      %s66 = sphi 0, %s68
      %s69 = sphi 0, %s66
      %s70 = sphi 0, %s69
      %s86 = sphi 0, %s70
      %s90 = sphi 0, %s90
      %s92 = sphi 0, %s90
      %s93 = sphi 0, %s92
      %s107 = sphi 0, %s93
      %s111 = sphi 0, %s111
      %s113 = sphi 0, %s111
      %s114 = sphi 0, %s113
      %s128 = sphi 0, %s114
      %s132 = sphi 0, %s132
      %s134 = sphi 0, %s132
      %s135 = sphi 0, %s134
      %s149 = sphi 0, %s135
      %s153 = sphi 0, %s153
      %s155 = sphi 0, %s153
      %s156 = sphi 0, %s155
      %s170 = sphi 0, %s156
      %s174 = sphi 0, %s174
      %s176 = sphi 0, %s174
      %s177 = sphi 0, %s176
      %s191 = sphi 0, %s177
      %s195 = sphi 0, %s195
      %s197 = sphi 0, %s195
      %s198 = sphi 0, %s197
      %s212 = sphi 0, %s198
      %s216 = sphi 0, %s216
      %s218 = sphi 0, %s216
      %s219 = sphi 0, %s218
      %s233 = sphi 0, %s219
      %s237 = sphi 0, %s237
      %s239 = sphi 0, %s237
      %s240 = sphi 0, %s239
      %s254 = sphi 0, %s240
      %s258 = sphi 0, %s258
      %s260 = sphi 0, %s258
      %s261 = sphi 0, %s260
      %s275 = sphi 0, %s261
      %s281 = sphi 0, %s283
      %s284 = sphi 0, %s281
      %s285 = sphi 0, %s284
      %s301 = sphi 0, %s285
    $region4: #{tpu_custom_call.1} parent=1 // loop_header_branch
      %33 = sbr.rel (%p31) target = $region8
    $region5: #{tpu_custom_call.1} parent=1 // loop_body
      %s35 = ssub.s32 %s30, 1
      %s36 = ssub.s32 %s30, 2
      %s37 = sadd.s32 %s30, 1
      %s38 = ssub.s32 %s30, %s37
      %p39 = scmp.eq.s32.totalorder %s38, 0
      %s41 = sadd.s32 %s40, 1
      %s42 = scalar_select %p39, %s40, %s41
      %p45 = pneg %p39
      %p46 = scmp.eq.s32.totalorder %s30, 1
      %p47 = por %p45, %p46
      %p48 = scmp.ne.s32.totalorder %s40, %s43
      %p49 = scmp.eq.s32.totalorder %s30, 0
      %p50 = por %p48, %p49
      %p51 = scmp.ne.s32.totalorder %s40, %s43
      %p52 = scmp.eq.s32.totalorder %s35, 1
      %p53 = por %p51, %p52
      %p54 = scmp.ne.s32.totalorder %s43, %s44
      %p55 = scmp.eq.s32.totalorder %s35, 0
      %p56 = por %p54, %p55
      %p57 = scmp.ne.s32.totalorder %s43, %s44
      %p58 = scmp.eq.s32.totalorder %s36, 1
      %p59 = por %p57, %p58
      %p61 = scmp.ne.s32.totalorder %s44, %s60
      %p62 = scmp.eq.s32.totalorder %s36, 0
      %p63 = por %p61, %p62
      %s64 = ssub.s32 %s30, %s37
      %p65 = scmp.eq.s32.totalorder %s64, 0
      %s67 = sadd.s32 %s66, 1
      %s68 = scalar_select %p65, %s66, %s67
      %p71 = pneg %p65
      %p72 = scmp.eq.s32.totalorder %s30, 1
      %p73 = por %p71, %p72
      %p74 = scmp.ne.s32.totalorder %s66, %s69
      %p75 = scmp.eq.s32.totalorder %s30, 0
      %p76 = por %p74, %p75
      %p77 = scmp.ne.s32.totalorder %s66, %s69
      %p78 = scmp.eq.s32.totalorder %s35, 1
      %p79 = por %p77, %p78
      %p80 = scmp.ne.s32.totalorder %s69, %s70
      %p81 = scmp.eq.s32.totalorder %s35, 0
      %p82 = por %p80, %p81
      %p83 = scmp.ne.s32.totalorder %s69, %s70
      %p84 = scmp.eq.s32.totalorder %s36, 1
      %p85 = por %p83, %p84
      %p87 = scmp.ne.s32.totalorder %s70, %s86
      %p88 = scmp.eq.s32.totalorder %s36, 0
      %p89 = por %p87, %p88
      %s91 = sadd.s32 %s90, 1
      %p94 = scmp.eq.s32.totalorder %s30, 1
      %p95 = scmp.ne.s32.totalorder %s90, %s92
      %p96 = scmp.eq.s32.totalorder %s30, 0
      %p97 = por %p95, %p96
      %p98 = scmp.ne.s32.totalorder %s90, %s92
      %p99 = scmp.eq.s32.totalorder %s35, 1
      %p100 = por %p98, %p99
      %p101 = scmp.ne.s32.totalorder %s92, %s93
      %p102 = scmp.eq.s32.totalorder %s35, 0
      %p103 = por %p101, %p102
      %p104 = scmp.ne.s32.totalorder %s92, %s93
      %p105 = scmp.eq.s32.totalorder %s36, 1
      %p106 = por %p104, %p105
      %p108 = scmp.ne.s32.totalorder %s93, %s107
      %p109 = scmp.eq.s32.totalorder %s36, 0
      %p110 = por %p108, %p109
      %s112 = sadd.s32 %s111, 1
      %p115 = scmp.eq.s32.totalorder %s30, 1
      %p116 = scmp.ne.s32.totalorder %s111, %s113
      %p117 = scmp.eq.s32.totalorder %s30, 0
      %p118 = por %p116, %p117
      %p119 = scmp.ne.s32.totalorder %s111, %s113
      %p120 = scmp.eq.s32.totalorder %s35, 1
      %p121 = por %p119, %p120
      %p122 = scmp.ne.s32.totalorder %s113, %s114
      %p123 = scmp.eq.s32.totalorder %s35, 0
      %p124 = por %p122, %p123
      %p125 = scmp.ne.s32.totalorder %s113, %s114
      %p126 = scmp.eq.s32.totalorder %s36, 1
      %p127 = por %p125, %p126
      %p129 = scmp.ne.s32.totalorder %s114, %s128
      %p130 = scmp.eq.s32.totalorder %s36, 0
      %p131 = por %p129, %p130
      %s133 = sadd.s32 %s132, 1
      %p136 = scmp.eq.s32.totalorder %s30, 1
      %p137 = scmp.ne.s32.totalorder %s132, %s134
      %p138 = scmp.eq.s32.totalorder %s30, 0
      %p139 = por %p137, %p138
      %p140 = scmp.ne.s32.totalorder %s132, %s134
      %p141 = scmp.eq.s32.totalorder %s35, 1
      %p142 = por %p140, %p141
      %p143 = scmp.ne.s32.totalorder %s134, %s135
      %p144 = scmp.eq.s32.totalorder %s35, 0
      %p145 = por %p143, %p144
      %p146 = scmp.ne.s32.totalorder %s134, %s135
      %p147 = scmp.eq.s32.totalorder %s36, 1
      %p148 = por %p146, %p147
      %p150 = scmp.ne.s32.totalorder %s135, %s149
      %p151 = scmp.eq.s32.totalorder %s36, 0
      %p152 = por %p150, %p151
      %s154 = sadd.s32 %s153, 1
      %p157 = scmp.eq.s32.totalorder %s30, 1
      %p158 = scmp.ne.s32.totalorder %s153, %s155
      %p159 = scmp.eq.s32.totalorder %s30, 0
      %p160 = por %p158, %p159
      %p161 = scmp.ne.s32.totalorder %s153, %s155
      %p162 = scmp.eq.s32.totalorder %s35, 1
      %p163 = por %p161, %p162
      %p164 = scmp.ne.s32.totalorder %s155, %s156
      %p165 = scmp.eq.s32.totalorder %s35, 0
      %p166 = por %p164, %p165
      %p167 = scmp.ne.s32.totalorder %s155, %s156
      %p168 = scmp.eq.s32.totalorder %s36, 1
      %p169 = por %p167, %p168
      %p171 = scmp.ne.s32.totalorder %s156, %s170
      %p172 = scmp.eq.s32.totalorder %s36, 0
      %p173 = por %p171, %p172
      %s175 = sadd.s32 %s174, 1
      %p178 = scmp.eq.s32.totalorder %s30, 1
      %p179 = scmp.ne.s32.totalorder %s174, %s176
      %p180 = scmp.eq.s32.totalorder %s30, 0
      %p181 = por %p179, %p180
      %p182 = scmp.ne.s32.totalorder %s174, %s176
      %p183 = scmp.eq.s32.totalorder %s35, 1
      %p184 = por %p182, %p183
      %p185 = scmp.ne.s32.totalorder %s176, %s177
      %p186 = scmp.eq.s32.totalorder %s35, 0
      %p187 = por %p185, %p186
      %p188 = scmp.ne.s32.totalorder %s176, %s177
      %p189 = scmp.eq.s32.totalorder %s36, 1
      %p190 = por %p188, %p189
      %p192 = scmp.ne.s32.totalorder %s177, %s191
      %p193 = scmp.eq.s32.totalorder %s36, 0
      %p194 = por %p192, %p193
      %s196 = sadd.s32 %s195, 1
      %p199 = scmp.eq.s32.totalorder %s30, 1
      %p200 = scmp.ne.s32.totalorder %s195, %s197
      %p201 = scmp.eq.s32.totalorder %s30, 0
      %p202 = por %p200, %p201
      %p203 = scmp.ne.s32.totalorder %s195, %s197
      %p204 = scmp.eq.s32.totalorder %s35, 1
      %p205 = por %p203, %p204
      %p206 = scmp.ne.s32.totalorder %s197, %s198
      %p207 = scmp.eq.s32.totalorder %s35, 0
      %p208 = por %p206, %p207
      %p209 = scmp.ne.s32.totalorder %s197, %s198
      %p210 = scmp.eq.s32.totalorder %s36, 1
      %p211 = por %p209, %p210
      %p213 = scmp.ne.s32.totalorder %s198, %s212
      %p214 = scmp.eq.s32.totalorder %s36, 0
      %p215 = por %p213, %p214
      %s217 = sadd.s32 %s216, 1
      %p220 = scmp.eq.s32.totalorder %s30, 1
      %p221 = scmp.ne.s32.totalorder %s216, %s218
      %p222 = scmp.eq.s32.totalorder %s30, 0
      %p223 = por %p221, %p222
      %p224 = scmp.ne.s32.totalorder %s216, %s218
      %p225 = scmp.eq.s32.totalorder %s35, 1
      %p226 = por %p224, %p225
      %p227 = scmp.ne.s32.totalorder %s218, %s219
      %p228 = scmp.eq.s32.totalorder %s35, 0
      %p229 = por %p227, %p228
      %p230 = scmp.ne.s32.totalorder %s218, %s219
      %p231 = scmp.eq.s32.totalorder %s36, 1
      %p232 = por %p230, %p231
      %p234 = scmp.ne.s32.totalorder %s219, %s233
      %p235 = scmp.eq.s32.totalorder %s36, 0
      %p236 = por %p234, %p235
      %s238 = sadd.s32 %s237, 1
      %p241 = scmp.eq.s32.totalorder %s30, 1
      %p242 = scmp.ne.s32.totalorder %s237, %s239
      %p243 = scmp.eq.s32.totalorder %s30, 0
      %p244 = por %p242, %p243
      %p245 = scmp.ne.s32.totalorder %s237, %s239
      %p246 = scmp.eq.s32.totalorder %s35, 1
      %p247 = por %p245, %p246
      %p248 = scmp.ne.s32.totalorder %s239, %s240
      %p249 = scmp.eq.s32.totalorder %s35, 0
      %p250 = por %p248, %p249
      %p251 = scmp.ne.s32.totalorder %s239, %s240
      %p252 = scmp.eq.s32.totalorder %s36, 1
      %p253 = por %p251, %p252
      %p255 = scmp.ne.s32.totalorder %s240, %s254
      %p256 = scmp.eq.s32.totalorder %s36, 0
      %p257 = por %p255, %p256
      %s259 = sadd.s32 %s258, 1
      %p262 = scmp.eq.s32.totalorder %s30, 1
      %p263 = scmp.ne.s32.totalorder %s258, %s260
      %p264 = scmp.eq.s32.totalorder %s30, 0
      %p265 = por %p263, %p264
      %p266 = scmp.ne.s32.totalorder %s258, %s260
      %p267 = scmp.eq.s32.totalorder %s35, 1
      %p268 = por %p266, %p267
      %p269 = scmp.ne.s32.totalorder %s260, %s261
      %p270 = scmp.eq.s32.totalorder %s35, 0
      %p271 = por %p269, %p270
      %p272 = scmp.ne.s32.totalorder %s260, %s261
      %p273 = scmp.eq.s32.totalorder %s36, 1
      %p274 = por %p272, %p273
      %p276 = scmp.ne.s32.totalorder %s261, %s275
      %p277 = scmp.eq.s32.totalorder %s36, 0
      %p278 = por %p276, %p277
      %s279 = ssub.s32 %s30, %s37
      %p280 = scmp.eq.s32.totalorder %s279, 0
      %s282 = sadd.s32 %s281, 1
      %s283 = scalar_select %p280, %s281, %s282
      %p286 = pneg %p280
      %p287 = scmp.eq.s32.totalorder %s30, 1
      %p288 = por %p286, %p287
      %p289 = scmp.ne.s32.totalorder %s281, %s284
      %p290 = scmp.eq.s32.totalorder %s30, 0
      %p291 = por %p289, %p290
      %p292 = scmp.ne.s32.totalorder %s281, %s284
      %p293 = scmp.eq.s32.totalorder %s35, 1
      %p294 = por %p292, %p293
      %p295 = scmp.ne.s32.totalorder %s284, %s285
      %p296 = scmp.eq.s32.totalorder %s35, 0
      %p297 = por %p295, %p296
      %p298 = scmp.ne.s32.totalorder %s284, %s285
      %p299 = scmp.eq.s32.totalorder %s36, 1
      %p300 = por %p298, %p299
      %p302 = scmp.ne.s32.totalorder %s285, %s301
      %p303 = scmp.eq.s32.totalorder %s36, 0
      %p304 = por %p302, %p303
      %p305 = scmp.le.s32.totalorder 1, %s30
      %p306 = scmp.lt.s32.totalorder %s30, 3
      %p307 = pnand %p305, %p306
      %p308 = pneg %p307
      // Predicated region
      $region9: #{tpu_custom_call.1} parent=5 // pred_check
        _
      $region10: #{tpu_custom_call.1} parent=5 // pred_check_branch
        %310 = sbr.rel (%p307) target = $region12
      $region11: #{tpu_custom_call.1} parent=5 // pred_region
        %s311 = ssub.s32 %s30, 1
        // Predicated region
        $region13: #{tpu_custom_call.1} parent=11 // pred_check
          %p312 = pneg %p103
        $region14: #{tpu_custom_call.1} parent=11 // pred_check_branch
          %314 = sbr.rel (%p312) target = $region16
        $region15: #{tpu_custom_call.1} parent=11 // pred_region
          %s316 = ssub.s32 4096, 4096
          %317 = vsyncadd [#allocation6], %s316
          %s318 = sshll.u32 [#allocation7], 4
          %s319 = int_to_ptr.vmem [resolvable:$true] %s318
          %324 = dma.hbm_to_vmem [thread:$0]  %s2, 4096, %s319, [#allocation6], 128, 128, 8
        $region16: #{tpu_custom_call.1} parent=11 // pred_fallthru
          _
        // Predicated region
        $region17: #{tpu_custom_call.1} parent=11 // pred_check
          %p325 = pneg %p124
        $region18: #{tpu_custom_call.1} parent=11 // pred_check_branch
          %327 = sbr.rel (%p325) target = $region20
        $region19: #{tpu_custom_call.1} parent=11 // pred_region
          %s329 = ssub.s32 16, 16
          %330 = vsyncadd [#allocation9], %s329
          %s332 = sshll.u32 [#allocation8], 4
          %s333 = int_to_ptr.vmem [resolvable:$true] %s332
          %335 = dma.hbm_to_vmem [thread:$0]  %s3, 16, %s333, [#allocation9]
        $region20: #{tpu_custom_call.1} parent=11 // pred_fallthru
          _
        // Predicated region
        $region21: #{tpu_custom_call.1} parent=11 // pred_check
          %p336 = pneg %p145
        $region22: #{tpu_custom_call.1} parent=11 // pred_check_branch
          %338 = sbr.rel (%p336) target = $region24
        $region23: #{tpu_custom_call.1} parent=11 // pred_region
          %s340 = ssub.s32 16, 16
          %341 = vsyncadd [#allocation9], %s340
          %s343 = sshll.u32 [#allocation10], 4
          %s344 = int_to_ptr.vmem [resolvable:$true] %s343
          %346 = dma.hbm_to_vmem [thread:$0]  %s4, 16, %s344, [#allocation9]
        $region24: #{tpu_custom_call.1} parent=11 // pred_fallthru
          _
        // Predicated region
        $region25: #{tpu_custom_call.1} parent=11 // pred_check
          %p347 = pneg %p166
        $region26: #{tpu_custom_call.1} parent=11 // pred_check_branch
          %349 = sbr.rel (%p347) target = $region28
        $region27: #{tpu_custom_call.1} parent=11 // pred_region
          %s351 = ssub.s32 2304, 2304
          %352 = vsyncadd [#allocation12], %s351
          %s353 = sshll.u32 [#allocation11], 4
          %s354 = int_to_ptr.vmem [resolvable:$true] %s353
          %359 = dma.hbm_to_vmem [thread:$0]  %s5, 2304, %s354, [#allocation12], 64, 64, 4
        $region28: #{tpu_custom_call.1} parent=11 // pred_fallthru
          _
        // Predicated region
        $region29: #{tpu_custom_call.1} parent=11 // pred_check
          %p360 = pneg %p187
        $region30: #{tpu_custom_call.1} parent=11 // pred_check_branch
          %362 = sbr.rel (%p360) target = $region32
        $region31: #{tpu_custom_call.1} parent=11 // pred_region
          %s364 = ssub.s32 16, 16
          %365 = vsyncadd [#allocation12], %s364
          %s367 = sshll.u32 [#allocation13], 4
          %s368 = int_to_ptr.vmem [resolvable:$true] %s367
          %370 = dma.hbm_to_vmem [thread:$0]  %s6, 16, %s368, [#allocation12]
        $region32: #{tpu_custom_call.1} parent=11 // pred_fallthru
          _
        // Predicated region
        $region33: #{tpu_custom_call.1} parent=11 // pred_check
          %p371 = pneg %p208
        $region34: #{tpu_custom_call.1} parent=11 // pred_check_branch
          %373 = sbr.rel (%p371) target = $region36
        $region35: #{tpu_custom_call.1} parent=11 // pred_region
          %s375 = ssub.s32 16, 16
          %376 = vsyncadd [#allocation15], %s375
          %s378 = sshll.u32 [#allocation14], 4
          %s379 = int_to_ptr.vmem [resolvable:$true] %s378
          %381 = dma.hbm_to_vmem [thread:$0]  %s7, 16, %s379, [#allocation15]
        $region36: #{tpu_custom_call.1} parent=11 // pred_fallthru
          _
        // Predicated region
        $region37: #{tpu_custom_call.1} parent=11 // pred_check
          %p382 = pneg %p229
        $region38: #{tpu_custom_call.1} parent=11 // pred_check_branch
          %384 = sbr.rel (%p382) target = $region40
        $region39: #{tpu_custom_call.1} parent=11 // pred_region
          %s386 = ssub.s32 16, 16
          %387 = vsyncadd [#allocation15], %s386
          %s389 = sshll.u32 [#allocation16], 4
          %s390 = int_to_ptr.vmem [resolvable:$true] %s389
          %392 = dma.hbm_to_vmem [thread:$0]  %s8, 16, %s390, [#allocation15]
        $region40: #{tpu_custom_call.1} parent=11 // pred_fallthru
          _
        // Predicated region
        $region41: #{tpu_custom_call.1} parent=11 // pred_check
          %p393 = pneg %p250
        $region42: #{tpu_custom_call.1} parent=11 // pred_check_branch
          %395 = sbr.rel (%p393) target = $region44
        $region43: #{tpu_custom_call.1} parent=11 // pred_region
          %s397 = ssub.s32 2304, 2304
          %398 = vsyncadd [#allocation18], %s397
          %s399 = sshll.u32 [#allocation17], 4
          %s400 = int_to_ptr.vmem [resolvable:$true] %s399
          %405 = dma.hbm_to_vmem [thread:$0]  %s9, 2304, %s400, [#allocation18], 64, 64, 4
        $region44: #{tpu_custom_call.1} parent=11 // pred_fallthru
          _
        // Predicated region
        $region45: #{tpu_custom_call.1} parent=11 // pred_check
          %p406 = pneg %p271
        $region46: #{tpu_custom_call.1} parent=11 // pred_check_branch
          %408 = sbr.rel (%p406) target = $region48
        $region47: #{tpu_custom_call.1} parent=11 // pred_region
          %s410 = ssub.s32 16, 16
          %411 = vsyncadd [#allocation18], %s410
          %s413 = sshll.u32 [#allocation19], 4
          %s414 = int_to_ptr.vmem [resolvable:$true] %s413
          %416 = dma.hbm_to_vmem [thread:$0]  %s10, 16, %s414, [#allocation18]
        $region48: #{tpu_custom_call.1} parent=11 // pred_fallthru
          _
      $region12: #{tpu_custom_call.1} parent=5 // pred_fallthru
        _
      %p417 = scmp.lt.s32.totalorder %s30, 2
      // Predicated region
      $region49: #{tpu_custom_call.1} parent=5 // pred_check
        %p418 = pneg %p417
      $region50: #{tpu_custom_call.1} parent=5 // pred_check_branch
        %420 = sbr.rel (%p418) target = $region52
      $region51: #{tpu_custom_call.1} parent=5 // pred_region
        // Predicated region
        $region53: #{tpu_custom_call.1} parent=51 // pred_check
          %p421 = pneg %p50
        $region54: #{tpu_custom_call.1} parent=51 // pred_check_branch
          %423 = sbr.rel (%p421) target = $region56
        $region55: #{tpu_custom_call.1} parent=51 // pred_region
          %s424 = sand.u32 %s40, 1
          %s425 = scalar_lea.sflag [#allocation3], %s424
          %s426 = sand.u32 %s40, 1
          %s427 = smul.addr %s426, 256
          %s428 = scalar_lea.vmem [#allocation2], %s427
          %s429 = smul.u32 4, %s30
          %s431 = ssub.s32 4096, 4096
          %432 = vsyncadd %s425, %s431
          %s433 = smul.addr %s429, 8
          %s434 = smul.addr %s433, 128
          %s435 = scalar_lea.hbm %s0, %s434
          %s436 = sshll.u32 %s428, 4
          %s437 = int_to_ptr.vmem [resolvable:$true] %s436
          %442 = dma.hbm_to_vmem [thread:$0]  %s435, 4096, %s437, %s425, 128, 128, 8
        $region56: #{tpu_custom_call.1} parent=51 // pred_fallthru
          _
        // Predicated region
        $region57: #{tpu_custom_call.1} parent=51 // pred_check
          %p443 = pneg %p76
        $region58: #{tpu_custom_call.1} parent=51 // pred_check_branch
          %445 = sbr.rel (%p443) target = $region60
        $region59: #{tpu_custom_call.1} parent=51 // pred_region
          %s446 = sand.u32 %s30, 1
          %s447 = scalar_lea.sflag [#allocation6], %s446
          %s448 = sand.u32 %s66, 1
          %s449 = smul.addr %s448, 4
          %s450 = scalar_lea.vmem [#allocation5], %s449
          %s451 = smul.u32 4, %s30
          %s453 = ssub.s32 64, 64
          %454 = vsyncadd %s447, %s453
          %s455 = smul.addr %s451, 16
          %s456 = scalar_lea.hbm %s1, %s455
          %s457 = sshll.u32 %s450, 4
          %s458 = int_to_ptr.vmem [resolvable:$true] %s457
          %463 = dma.hbm_to_vmem [thread:$0]  %s456, 64, %s458, %s447, 16, 16, 1
        $region60: #{tpu_custom_call.1} parent=51 // pred_fallthru
          _
      $region52: #{tpu_custom_call.1} parent=5 // pred_fallthru
        _
      %p464 = scmp.le.s32.totalorder 1, %s30
      %p465 = scmp.lt.s32.totalorder %s30, 3
      %p466 = pnand %p464, %p465
      %p467 = pneg %p466
      // Predicated region
      $region61: #{tpu_custom_call.1} parent=5 // pred_check
        _
      $region62: #{tpu_custom_call.1} parent=5 // pred_check_branch
        %469 = sbr.rel (%p466) target = $region64
      $region63: #{tpu_custom_call.1} parent=5 // pred_region
        %s470 = ssub.s32 %s30, 1
        %s471 = sand.u32 %s43, 1
        %s472 = scalar_lea.sflag [#allocation3], %s471
        %s473 = sand.u32 %s43, 1
        %s474 = smul.addr %s473, 256
        %s475 = scalar_lea.vmem [#allocation2], %s474
        // Predicated region
        $region65: #{tpu_custom_call.1} parent=63 // pred_check
          %p476 = pneg %p56
        $region66: #{tpu_custom_call.1} parent=63 // pred_check_branch
          %478 = sbr.rel (%p476) target = $region68
        $region67: #{tpu_custom_call.1} parent=63 // pred_region
          %479 = dma.done %s472, 4096
        $region68: #{tpu_custom_call.1} parent=63 // pred_fallthru
          _
        %s480 = sand.u32 %s35, 1
        %s481 = scalar_lea.sflag [#allocation6], %s480
        %s482 = sand.u32 %s69, 1
        %s483 = smul.addr %s482, 4
        %s484 = scalar_lea.vmem [#allocation5], %s483
        // Predicated region
        $region69: #{tpu_custom_call.1} parent=63 // pred_check
          %p485 = pneg %p82
        $region70: #{tpu_custom_call.1} parent=63 // pred_check_branch
          %487 = sbr.rel (%p485) target = $region72
        $region71: #{tpu_custom_call.1} parent=63 // pred_region
          %488 = dma.done %s481, 64
        $region72: #{tpu_custom_call.1} parent=63 // pred_fallthru
          _
        // Predicated region
        $region73: #{tpu_custom_call.1} parent=63 // pred_check
          %p489 = pneg %p103
        $region74: #{tpu_custom_call.1} parent=63 // pred_check_branch
          %491 = sbr.rel (%p489) target = $region76
        $region75: #{tpu_custom_call.1} parent=63 // pred_region
          %492 = dma.done [#allocation6], 4096
        $region76: #{tpu_custom_call.1} parent=63 // pred_fallthru
          _
        // Predicated region
        $region77: #{tpu_custom_call.1} parent=63 // pred_check
          %p493 = pneg %p124
        $region78: #{tpu_custom_call.1} parent=63 // pred_check_branch
          %495 = sbr.rel (%p493) target = $region80
        $region79: #{tpu_custom_call.1} parent=63 // pred_region
          %496 = dma.done [#allocation9], 16
        $region80: #{tpu_custom_call.1} parent=63 // pred_fallthru
          _
        // Predicated region
        $region81: #{tpu_custom_call.1} parent=63 // pred_check
          %p497 = pneg %p145
        $region82: #{tpu_custom_call.1} parent=63 // pred_check_branch
          %499 = sbr.rel (%p497) target = $region84
        $region83: #{tpu_custom_call.1} parent=63 // pred_region
          %500 = dma.done [#allocation9], 16
        $region84: #{tpu_custom_call.1} parent=63 // pred_fallthru
          _
        // Predicated region
        $region85: #{tpu_custom_call.1} parent=63 // pred_check
          %p501 = pneg %p166
        $region86: #{tpu_custom_call.1} parent=63 // pred_check_branch
          %503 = sbr.rel (%p501) target = $region88
        $region87: #{tpu_custom_call.1} parent=63 // pred_region
          %504 = dma.done [#allocation12], 2304
        $region88: #{tpu_custom_call.1} parent=63 // pred_fallthru
          _
        // Predicated region
        $region89: #{tpu_custom_call.1} parent=63 // pred_check
          %p505 = pneg %p187
        $region90: #{tpu_custom_call.1} parent=63 // pred_check_branch
          %507 = sbr.rel (%p505) target = $region92
        $region91: #{tpu_custom_call.1} parent=63 // pred_region
          %508 = dma.done [#allocation12], 16
        $region92: #{tpu_custom_call.1} parent=63 // pred_fallthru
          _
        // Predicated region
        $region93: #{tpu_custom_call.1} parent=63 // pred_check
          %p509 = pneg %p208
        $region94: #{tpu_custom_call.1} parent=63 // pred_check_branch
          %511 = sbr.rel (%p509) target = $region96
        $region95: #{tpu_custom_call.1} parent=63 // pred_region
          %512 = dma.done [#allocation15], 16
        $region96: #{tpu_custom_call.1} parent=63 // pred_fallthru
          _
        // Predicated region
        $region97: #{tpu_custom_call.1} parent=63 // pred_check
          %p513 = pneg %p229
        $region98: #{tpu_custom_call.1} parent=63 // pred_check_branch
          %515 = sbr.rel (%p513) target = $region100
        $region99: #{tpu_custom_call.1} parent=63 // pred_region
          %516 = dma.done [#allocation15], 16
        $region100: #{tpu_custom_call.1} parent=63 // pred_fallthru
          _
        // Predicated region
        $region101: #{tpu_custom_call.1} parent=63 // pred_check
          %p517 = pneg %p250
        $region102: #{tpu_custom_call.1} parent=63 // pred_check_branch
          %519 = sbr.rel (%p517) target = $region104
        $region103: #{tpu_custom_call.1} parent=63 // pred_region
          %520 = dma.done [#allocation18], 2304
        $region104: #{tpu_custom_call.1} parent=63 // pred_fallthru
          _
        // Predicated region
        $region105: #{tpu_custom_call.1} parent=63 // pred_check
          %p521 = pneg %p271
        $region106: #{tpu_custom_call.1} parent=63 // pred_check_branch
          %523 = sbr.rel (%p521) target = $region108
        $region107: #{tpu_custom_call.1} parent=63 // pred_region
          %524 = dma.done [#allocation18], 16
        $region108: #{tpu_custom_call.1} parent=63 // pred_fallthru
          _
        %s525 = sand.u32 %s43, 1
        %s526 = scalar_lea.sflag [#allocation3], %s525
        %s527 = sand.u32 %s43, 1
        %s528 = smul.addr %s527, 256
        %s529 = scalar_lea.vmem [#allocation2], %s528
        %p530 = pneg %p56
        %p531 = pneg %p53
        %s532 = sand.u32 %s35, 1
        %s533 = scalar_lea.sflag [#allocation6], %s532
        %s534 = sand.u32 %s69, 1
        %s535 = smul.addr %s534, 4
        %s536 = scalar_lea.vmem [#allocation5], %s535
        %p537 = pneg %p82
        %p538 = pneg %p79
        %p539 = pneg %p103
        %p540 = pneg %p100
        %p541 = pneg %p124
        %p542 = pneg %p121
        %p543 = pneg %p145
        %p544 = pneg %p142
        %p545 = pneg %p166
        %p546 = pneg %p163
        %p547 = pneg %p187
        %p548 = pneg %p184
        %p549 = pneg %p208
        %p550 = pneg %p205
        %p551 = pneg %p229
        %p552 = pneg %p226
        %p553 = pneg %p250
        %p554 = pneg %p247
        %p555 = pneg %p271
        %p556 = pneg %p268
        %p557 = pneg %p297
        %p558 = pneg %p294
        %s559 = sand.u32 %s284, 1
        %s560 = scalar_lea.sflag [#allocation4], %s559
        %s561 = sand.u32 %s284, 1
        %s562 = smul.addr %s561, 256
        %s563 = scalar_lea.vmem [#allocation20], %s562
        %s564 = smul.u32 4, %s35
        %s565 = smul.u32 4, %s35
        %s566 = smul.u32 4, %s35
        %v568 = vld [vmem:[%s475] sm:$0xff]
        %v569 = vld [vmem:[%s475 + $0x8] sm:$0xff]
        %v570 = vld [vmem:[%s475 + $0x10] sm:$0xff]
        %v571 = vld [vmem:[%s475 + $0x18] sm:$0xff]
        %v572 = vld [vmem:[%s475 + $0x20] sm:$0xff]
        %v573 = vld [vmem:[%s475 + $0x28] sm:$0xff]
        %v574 = vld [vmem:[%s475 + $0x30] sm:$0xff]
        %v575 = vld [vmem:[%s475 + $0x38] sm:$0xff]
        %v576 = vld [vmem:[%s475 + $0x40] sm:$0xff]
        %v577 = vld [vmem:[%s475 + $0x48] sm:$0xff]
        %v578 = vld [vmem:[%s475 + $0x50] sm:$0xff]
        %v579 = vld [vmem:[%s475 + $0x58] sm:$0xff]
        %v580 = vld [vmem:[%s475 + $0x60] sm:$0xff]
        %v581 = vld [vmem:[%s475 + $0x68] sm:$0xff]
        %v582 = vld [vmem:[%s475 + $0x70] sm:$0xff]
        %v583 = vld [vmem:[%s475 + $0x78] sm:$0xff]
        %v584 = vld [vmem:[%s475 + $0x80] sm:$0xff]
        %v585 = vld [vmem:[%s475 + $0x88] sm:$0xff]
        %v586 = vld [vmem:[%s475 + $0x90] sm:$0xff]
        %v587 = vld [vmem:[%s475 + $0x98] sm:$0xff]
        %v588 = vld [vmem:[%s475 + $0xa0] sm:$0xff]
        %v589 = vld [vmem:[%s475 + $0xa8] sm:$0xff]
        %v590 = vld [vmem:[%s475 + $0xb0] sm:$0xff]
        %v591 = vld [vmem:[%s475 + $0xb8] sm:$0xff]
        %v592 = vld [vmem:[%s475 + $0xc0] sm:$0xff]
        %v593 = vld [vmem:[%s475 + $0xc8] sm:$0xff]
        %v594 = vld [vmem:[%s475 + $0xd0] sm:$0xff]
        %v595 = vld [vmem:[%s475 + $0xd8] sm:$0xff]
        %v596 = vld [vmem:[%s475 + $0xe0] sm:$0xff]
        %v597 = vld [vmem:[%s475 + $0xe8] sm:$0xff]
        %v598 = vld [vmem:[%s475 + $0xf0] sm:$0xff]
        %v599 = vld [vmem:[%s475 + $0xf8] sm:$0xff]
        %vm600 = vcmask 261120
        %v601 = vsel %vm600, %v568, 0.0
        %v602 = vsel %vm600, %v569, 0.0
        %v603 = vadd.f32 %v601, %v602
        %v604 = vsel %vm600, %v570, 0.0
        %v605 = vadd.f32 %v603, %v604
        %v606 = vsel %vm600, %v571, 0.0
        %v607 = vadd.f32 %v605, %v606
        %v608 = vsel %vm600, %v572, 0.0
        %v609 = vadd.f32 %v607, %v608
        %v610 = vsel %vm600, %v573, 0.0
        %v611 = vadd.f32 %v609, %v610
        %v612 = vsel %vm600, %v574, 0.0
        %v613 = vadd.f32 %v611, %v612
        %v614 = vsel %vm600, %v575, 0.0
        %v615 = vadd.f32 %v613, %v614
        %v616 = vrot.slane %v615, 4
        %v617 = vadd.f32 %v615, %v616
        %v618 = vrot.slane %v617, 2
        %v619 = vadd.f32 %v617, %v618
        %v620 = vrot.slane %v619, 1
        %v621 = vadd.f32 %v619, %v620
        %v622 = vsel %vm600, %v576, 0.0
        %v623 = vsel %vm600, %v577, 0.0
        %v624 = vadd.f32 %v622, %v623
        %v625 = vsel %vm600, %v578, 0.0
        %v626 = vadd.f32 %v624, %v625
        %v627 = vsel %vm600, %v579, 0.0
        %v628 = vadd.f32 %v626, %v627
        %v629 = vsel %vm600, %v580, 0.0
        %v630 = vadd.f32 %v628, %v629
        %v631 = vsel %vm600, %v581, 0.0
        %v632 = vadd.f32 %v630, %v631
        %v633 = vsel %vm600, %v582, 0.0
        %v634 = vadd.f32 %v632, %v633
        %v635 = vsel %vm600, %v583, 0.0
        %v636 = vadd.f32 %v634, %v635
        %v637 = vrot.slane %v636, 4
        %v638 = vadd.f32 %v636, %v637
        %v639 = vrot.slane %v638, 2
        %v640 = vadd.f32 %v638, %v639
        %v641 = vrot.slane %v640, 1
        %v642 = vadd.f32 %v640, %v641
        %v643 = vsel %vm600, %v584, 0.0
        %v644 = vsel %vm600, %v585, 0.0
        %v645 = vadd.f32 %v643, %v644
        %v646 = vsel %vm600, %v586, 0.0
        %v647 = vadd.f32 %v645, %v646
        %v648 = vsel %vm600, %v587, 0.0
        %v649 = vadd.f32 %v647, %v648
        %v650 = vsel %vm600, %v588, 0.0
        %v651 = vadd.f32 %v649, %v650
        %v652 = vsel %vm600, %v589, 0.0
        %v653 = vadd.f32 %v651, %v652
        %v654 = vsel %vm600, %v590, 0.0
        %v655 = vadd.f32 %v653, %v654
        %v656 = vsel %vm600, %v591, 0.0
        %v657 = vadd.f32 %v655, %v656
        %v658 = vrot.slane %v657, 4
        %v659 = vadd.f32 %v657, %v658
        %v660 = vrot.slane %v659, 2
        %v661 = vadd.f32 %v659, %v660
        %v662 = vrot.slane %v661, 1
        %v663 = vadd.f32 %v661, %v662
        %v664 = vsel %vm600, %v592, 0.0
        %v665 = vsel %vm600, %v593, 0.0
        %v666 = vadd.f32 %v664, %v665
        %v667 = vsel %vm600, %v594, 0.0
        %v668 = vadd.f32 %v666, %v667
        %v669 = vsel %vm600, %v595, 0.0
        %v670 = vadd.f32 %v668, %v669
        %v671 = vsel %vm600, %v596, 0.0
        %v672 = vadd.f32 %v670, %v671
        %v673 = vsel %vm600, %v597, 0.0
        %v674 = vadd.f32 %v672, %v673
        %v675 = vsel %vm600, %v598, 0.0
        %v676 = vadd.f32 %v674, %v675
        %v677 = vsel %vm600, %v599, 0.0
        %v678 = vadd.f32 %v676, %v677
        %v679 = vrot.slane %v678, 4
        %v680 = vadd.f32 %v678, %v679
        %v681 = vrot.slane %v680, 2
        %v682 = vadd.f32 %v680, %v681
        %v683 = vrot.slane %v682, 1
        %v684 = vadd.f32 %v682, %v683
        %v685 = vrcp.pop 64.0
        %v686 = vmul.f32 %v621, %v685
        %v687 = vmul.f32 %v642, %v685
        %v688 = vmul.f32 %v663, %v685
        %v689 = vmul.f32 %v684, %v685
        %v690 = vmul.f32 %v568, %v568
        %v691 = vmul.f32 %v569, %v569
        %v692 = vmul.f32 %v570, %v570
        %v693 = vmul.f32 %v571, %v571
        %v694 = vmul.f32 %v572, %v572
        %v695 = vmul.f32 %v573, %v573
        %v696 = vmul.f32 %v574, %v574
        %v697 = vmul.f32 %v575, %v575
        %v698 = vmul.f32 %v576, %v576
        %v699 = vmul.f32 %v577, %v577
        %v700 = vmul.f32 %v578, %v578
        %v701 = vmul.f32 %v579, %v579
        %v702 = vmul.f32 %v580, %v580
        %v703 = vmul.f32 %v581, %v581
        %v704 = vmul.f32 %v582, %v582
        %v705 = vmul.f32 %v583, %v583
        %v706 = vmul.f32 %v584, %v584
        %v707 = vmul.f32 %v585, %v585
        %v708 = vmul.f32 %v586, %v586
        %v709 = vmul.f32 %v587, %v587
        %v710 = vmul.f32 %v588, %v588
        %v711 = vmul.f32 %v589, %v589
        %v712 = vmul.f32 %v590, %v590
        %v713 = vmul.f32 %v591, %v591
        %v714 = vmul.f32 %v592, %v592
        %v715 = vmul.f32 %v593, %v593
        %v716 = vmul.f32 %v594, %v594
        %v717 = vmul.f32 %v595, %v595
        %v718 = vmul.f32 %v596, %v596
        %v719 = vmul.f32 %v597, %v597
        %v720 = vmul.f32 %v598, %v598
        %v721 = vmul.f32 %v599, %v599
        %v722 = vsel %vm600, %v690, 0.0
        %v723 = vsel %vm600, %v691, 0.0
        %v724 = vadd.f32 %v722, %v723
        %v725 = vsel %vm600, %v692, 0.0
        %v726 = vadd.f32 %v724, %v725
        %v727 = vsel %vm600, %v693, 0.0
        %v728 = vadd.f32 %v726, %v727
        %v729 = vsel %vm600, %v694, 0.0
        %v730 = vadd.f32 %v728, %v729
        %v731 = vsel %vm600, %v695, 0.0
        %v732 = vadd.f32 %v730, %v731
        %v733 = vsel %vm600, %v696, 0.0
        %v734 = vadd.f32 %v732, %v733
        %v735 = vsel %vm600, %v697, 0.0
        %v736 = vadd.f32 %v734, %v735
        %v737 = vrot.slane %v736, 4
        %v738 = vadd.f32 %v736, %v737
        %v739 = vrot.slane %v738, 2
        %v740 = vadd.f32 %v738, %v739
        %v741 = vrot.slane %v740, 1
        %v742 = vadd.f32 %v740, %v741
        %v743 = vsel %vm600, %v698, 0.0
        %v744 = vsel %vm600, %v699, 0.0
        %v745 = vadd.f32 %v743, %v744
        %v746 = vsel %vm600, %v700, 0.0
        %v747 = vadd.f32 %v745, %v746
        %v748 = vsel %vm600, %v701, 0.0
        %v749 = vadd.f32 %v747, %v748
        %v750 = vsel %vm600, %v702, 0.0
        %v751 = vadd.f32 %v749, %v750
        %v752 = vsel %vm600, %v703, 0.0
        %v753 = vadd.f32 %v751, %v752
        %v754 = vsel %vm600, %v704, 0.0
        %v755 = vadd.f32 %v753, %v754
        %v756 = vsel %vm600, %v705, 0.0
        %v757 = vadd.f32 %v755, %v756
        %v758 = vrot.slane %v757, 4
        %v759 = vadd.f32 %v757, %v758
        %v760 = vrot.slane %v759, 2
        %v761 = vadd.f32 %v759, %v760
        %v762 = vrot.slane %v761, 1
        %v763 = vadd.f32 %v761, %v762
        %v764 = vsel %vm600, %v706, 0.0
        %v765 = vsel %vm600, %v707, 0.0
        %v766 = vadd.f32 %v764, %v765
        %v767 = vsel %vm600, %v708, 0.0
        %v768 = vadd.f32 %v766, %v767
        %v769 = vsel %vm600, %v709, 0.0
        %v770 = vadd.f32 %v768, %v769
        %v771 = vsel %vm600, %v710, 0.0
        %v772 = vadd.f32 %v770, %v771
        %v773 = vsel %vm600, %v711, 0.0
        %v774 = vadd.f32 %v772, %v773
        %v775 = vsel %vm600, %v712, 0.0
        %v776 = vadd.f32 %v774, %v775
        %v777 = vsel %vm600, %v713, 0.0
        %v778 = vadd.f32 %v776, %v777
        %v779 = vrot.slane %v778, 4
        %v780 = vadd.f32 %v778, %v779
        %v781 = vrot.slane %v780, 2
        %v782 = vadd.f32 %v780, %v781
        %v783 = vrot.slane %v782, 1
        %v784 = vadd.f32 %v782, %v783
        %v785 = vsel %vm600, %v714, 0.0
        %v786 = vsel %vm600, %v715, 0.0
        %v787 = vadd.f32 %v785, %v786
        %v788 = vsel %vm600, %v716, 0.0
        %v789 = vadd.f32 %v787, %v788
        %v790 = vsel %vm600, %v717, 0.0
        %v791 = vadd.f32 %v789, %v790
        %v792 = vsel %vm600, %v718, 0.0
        %v793 = vadd.f32 %v791, %v792
        %v794 = vsel %vm600, %v719, 0.0
        %v795 = vadd.f32 %v793, %v794
        %v796 = vsel %vm600, %v720, 0.0
        %v797 = vadd.f32 %v795, %v796
        %v798 = vsel %vm600, %v721, 0.0
        %v799 = vadd.f32 %v797, %v798
        %v800 = vrot.slane %v799, 4
        %v801 = vadd.f32 %v799, %v800
        %v802 = vrot.slane %v801, 2
        %v803 = vadd.f32 %v801, %v802
        %v804 = vrot.slane %v803, 1
        %v805 = vadd.f32 %v803, %v804
        %v806 = vmul.f32 %v742, %v685
        %v807 = vmul.f32 %v763, %v685
        %v808 = vmul.f32 %v784, %v685
        %v809 = vmul.f32 %v805, %v685
        %v810 = vmul.f32 %v686, %v686
        %v811 = vmul.f32 %v687, %v687
        %v812 = vmul.f32 %v688, %v688
        %v813 = vmul.f32 %v689, %v689
        %v814 = vsub.f32 %v806, %v810
        %v815 = vsub.f32 %v807, %v811
        %v816 = vsub.f32 %v808, %v812
        %v817 = vsub.f32 %v809, %v813
        %v818 = vadd.f32 %v814, 1e-05
        %v819 = vadd.f32 %v815, 1e-05
        %v820 = vadd.f32 %v816, 1e-05
        %v821 = vadd.f32 %v817, 1e-05
        %v822 = vrsqrt.pop %v818
        %v823 = vrsqrt.pop %v819
        %v824 = vrsqrt.pop %v820
        %v825 = vrsqrt.pop %v821
        %v826 = vld [vmem:[#allocation8] sm:$0x1]
        %v827 = vmul.f32 %v822, %v826
        %v828 = vmul.f32 %v823, %v826
        %v829 = vmul.f32 %v824, %v826
        %v830 = vmul.f32 %v825, %v826
        %v831 = vld [vmem:[#allocation10] sm:$0x1]
        %v832 = vmul.f32 %v686, %v827
        %v833 = vmul.f32 %v687, %v828
        %v834 = vmul.f32 %v688, %v829
        %v835 = vmul.f32 %v689, %v830
        %v836 = vsub.f32 %v831, %v832
        %v837 = vsub.f32 %v831, %v833
        %v838 = vsub.f32 %v831, %v834
        %v839 = vsub.f32 %v831, %v835
        %v840 = vlaneseq
        %v841 = vshrl.u32 %v840, 7
        %v842 = vsub.s32 0, %v841
        %v843 = vrot.slane %v827, %v842
        %v844 = vlaneseq
        %v845 = vshrl.u32 %v844, 7
        %v846 = vsub.s32 0, %v845
        %v847 = vrot.slane %v828, %v846
        %v848 = vlaneseq
        %v849 = vshrl.u32 %v848, 7
        %v850 = vsub.s32 0, %v849
        %v851 = vrot.slane %v829, %v850
        %v852 = vlaneseq
        %v853 = vshrl.u32 %v852, 7
        %v854 = vsub.s32 0, %v853
        %v855 = vrot.slane %v830, %v854
        %v856 = vmul.f32 %v568, %v843
        %v857 = vmul.f32 %v569, %v843
        %v858 = vmul.f32 %v570, %v843
        %v859 = vmul.f32 %v571, %v843
        %v860 = vmul.f32 %v572, %v843
        %v861 = vmul.f32 %v573, %v843
        %v862 = vmul.f32 %v574, %v843
        %v863 = vmul.f32 %v575, %v843
        %v864 = vmul.f32 %v576, %v847
        %v865 = vmul.f32 %v577, %v847
        %v866 = vmul.f32 %v578, %v847
        %v867 = vmul.f32 %v579, %v847
        %v868 = vmul.f32 %v580, %v847
        %v869 = vmul.f32 %v581, %v847
        %v870 = vmul.f32 %v582, %v847
        %v871 = vmul.f32 %v583, %v847
        %v872 = vmul.f32 %v584, %v851
        %v873 = vmul.f32 %v585, %v851
        %v874 = vmul.f32 %v586, %v851
        %v875 = vmul.f32 %v587, %v851
        %v876 = vmul.f32 %v588, %v851
        %v877 = vmul.f32 %v589, %v851
        %v878 = vmul.f32 %v590, %v851
        %v879 = vmul.f32 %v591, %v851
        %v880 = vmul.f32 %v592, %v855
        %v881 = vmul.f32 %v593, %v855
        %v882 = vmul.f32 %v594, %v855
        %v883 = vmul.f32 %v595, %v855
        %v884 = vmul.f32 %v596, %v855
        %v885 = vmul.f32 %v597, %v855
        %v886 = vmul.f32 %v598, %v855
        %v887 = vmul.f32 %v599, %v855
        %v892 = vlaneseq
        %v893 = vshrl.u32 %v892, 7
        %v894 = vsub.s32 0, %v893
        %v895 = vrot.slane %v836, %v894
        %v896 = vlaneseq
        %v897 = vshrl.u32 %v896, 7
        %v898 = vsub.s32 0, %v897
        %v899 = vrot.slane %v837, %v898
        %v900 = vlaneseq
        %v901 = vshrl.u32 %v900, 7
        %v902 = vsub.s32 0, %v901
        %v903 = vrot.slane %v838, %v902
        %v904 = vlaneseq
        %v905 = vshrl.u32 %v904, 7
        %v906 = vsub.s32 0, %v905
        %v907 = vrot.slane %v839, %v906
        %v912 = vadd.f32 %v856, %v895
        %v913 = vadd.f32 %v857, %v895
        %v914 = vadd.f32 %v858, %v895
        %v915 = vadd.f32 %v859, %v895
        %v916 = vadd.f32 %v860, %v895
        %v917 = vadd.f32 %v861, %v895
        %v918 = vadd.f32 %v862, %v895
        %v919 = vadd.f32 %v863, %v895
        %v920 = vadd.f32 %v864, %v899
        %v921 = vadd.f32 %v865, %v899
        %v922 = vadd.f32 %v866, %v899
        %v923 = vadd.f32 %v867, %v899
        %v924 = vadd.f32 %v868, %v899
        %v925 = vadd.f32 %v869, %v899
        %v926 = vadd.f32 %v870, %v899
        %v927 = vadd.f32 %v871, %v899
        %v928 = vadd.f32 %v872, %v903
        %v929 = vadd.f32 %v873, %v903
        %v930 = vadd.f32 %v874, %v903
        %v931 = vadd.f32 %v875, %v903
        %v932 = vadd.f32 %v876, %v903
        %v933 = vadd.f32 %v877, %v903
        %v934 = vadd.f32 %v878, %v903
        %v935 = vadd.f32 %v879, %v903
        %v936 = vadd.f32 %v880, %v907
        %v937 = vadd.f32 %v881, %v907
        %v938 = vadd.f32 %v882, %v907
        %v939 = vadd.f32 %v883, %v907
        %v940 = vadd.f32 %v884, %v907
        %v941 = vadd.f32 %v885, %v907
        %v942 = vadd.f32 %v886, %v907
        %v943 = vadd.f32 %v887, %v907
        %v944 = vsub.f32 0.0, %v912
        %v945 = vsub.f32 0.0, %v913
        %v946 = vsub.f32 0.0, %v914
        %v947 = vsub.f32 0.0, %v915
        %v948 = vsub.f32 0.0, %v916
        %v949 = vsub.f32 0.0, %v917
        %v950 = vsub.f32 0.0, %v918
        %v951 = vsub.f32 0.0, %v919
        %v952 = vsub.f32 0.0, %v920
        %v953 = vsub.f32 0.0, %v921
        %v954 = vsub.f32 0.0, %v922
        %v955 = vsub.f32 0.0, %v923
        %v956 = vsub.f32 0.0, %v924
        %v957 = vsub.f32 0.0, %v925
        %v958 = vsub.f32 0.0, %v926
        %v959 = vsub.f32 0.0, %v927
        %v960 = vsub.f32 0.0, %v928
        %v961 = vsub.f32 0.0, %v929
        %v962 = vsub.f32 0.0, %v930
        %v963 = vsub.f32 0.0, %v931
        %v964 = vsub.f32 0.0, %v932
        %v965 = vsub.f32 0.0, %v933
        %v966 = vsub.f32 0.0, %v934
        %v967 = vsub.f32 0.0, %v935
        %v968 = vsub.f32 0.0, %v936
        %v969 = vsub.f32 0.0, %v937
        %v970 = vsub.f32 0.0, %v938
        %v971 = vsub.f32 0.0, %v939
        %v972 = vsub.f32 0.0, %v940
        %v973 = vsub.f32 0.0, %v941
        %v974 = vsub.f32 0.0, %v942
        %v975 = vsub.f32 0.0, %v943
        %v976 = vmul.f32 %v944, 1.442695
        %v977 = vpow.pop %v976
        %v978 = vmul.f32 %v945, 1.442695
        %v979 = vpow.pop %v978
        %v980 = vmul.f32 %v946, 1.442695
        %v981 = vpow.pop %v980
        %v982 = vmul.f32 %v947, 1.442695
        %v983 = vpow.pop %v982
        %v984 = vmul.f32 %v948, 1.442695
        %v985 = vpow.pop %v984
        %v986 = vmul.f32 %v949, 1.442695
        %v987 = vpow.pop %v986
        %v988 = vmul.f32 %v950, 1.442695
        %v989 = vpow.pop %v988
        %v990 = vmul.f32 %v951, 1.442695
        %v991 = vpow.pop %v990
        %v992 = vmul.f32 %v952, 1.442695
        %v993 = vpow.pop %v992
        %v994 = vmul.f32 %v953, 1.442695
        %v995 = vpow.pop %v994
        %v996 = vmul.f32 %v954, 1.442695
        %v997 = vpow.pop %v996
        %v998 = vmul.f32 %v955, 1.442695
        %v999 = vpow.pop %v998
        %v1000 = vmul.f32 %v956, 1.442695
        %v1001 = vpow.pop %v1000
        %v1002 = vmul.f32 %v957, 1.442695
        %v1003 = vpow.pop %v1002
        %v1004 = vmul.f32 %v958, 1.442695
        %v1005 = vpow.pop %v1004
        %v1006 = vmul.f32 %v959, 1.442695
        %v1007 = vpow.pop %v1006
        %v1008 = vmul.f32 %v960, 1.442695
        %v1009 = vpow.pop %v1008
        %v1010 = vmul.f32 %v961, 1.442695
        %v1011 = vpow.pop %v1010
        %v1012 = vmul.f32 %v962, 1.442695
        %v1013 = vpow.pop %v1012
        %v1014 = vmul.f32 %v963, 1.442695
        %v1015 = vpow.pop %v1014
        %v1016 = vmul.f32 %v964, 1.442695
        %v1017 = vpow.pop %v1016
        %v1018 = vmul.f32 %v965, 1.442695
        %v1019 = vpow.pop %v1018
        %v1020 = vmul.f32 %v966, 1.442695
        %v1021 = vpow.pop %v1020
        %v1022 = vmul.f32 %v967, 1.442695
        %v1023 = vpow.pop %v1022
        %v1024 = vmul.f32 %v968, 1.442695
        %v1025 = vpow.pop %v1024
        %v1026 = vmul.f32 %v969, 1.442695
        %v1027 = vpow.pop %v1026
        %v1028 = vmul.f32 %v970, 1.442695
        %v1029 = vpow.pop %v1028
        %v1030 = vmul.f32 %v971, 1.442695
        %v1031 = vpow.pop %v1030
        %v1032 = vmul.f32 %v972, 1.442695
        %v1033 = vpow.pop %v1032
        %v1034 = vmul.f32 %v973, 1.442695
        %v1035 = vpow.pop %v1034
        %v1036 = vmul.f32 %v974, 1.442695
        %v1037 = vpow.pop %v1036
        %v1038 = vmul.f32 %v975, 1.442695
        %v1039 = vpow.pop %v1038
        %v1040 = vadd.f32 %v977, 1.0
        %v1041 = vadd.f32 %v979, 1.0
        %v1042 = vadd.f32 %v981, 1.0
        %v1043 = vadd.f32 %v983, 1.0
        %v1044 = vadd.f32 %v985, 1.0
        %v1045 = vadd.f32 %v987, 1.0
        %v1046 = vadd.f32 %v989, 1.0
        %v1047 = vadd.f32 %v991, 1.0
        %v1048 = vadd.f32 %v993, 1.0
        %v1049 = vadd.f32 %v995, 1.0
        %v1050 = vadd.f32 %v997, 1.0
        %v1051 = vadd.f32 %v999, 1.0
        %v1052 = vadd.f32 %v1001, 1.0
        %v1053 = vadd.f32 %v1003, 1.0
        %v1054 = vadd.f32 %v1005, 1.0
        %v1055 = vadd.f32 %v1007, 1.0
        %v1056 = vadd.f32 %v1009, 1.0
        %v1057 = vadd.f32 %v1011, 1.0
        %v1058 = vadd.f32 %v1013, 1.0
        %v1059 = vadd.f32 %v1015, 1.0
        %v1060 = vadd.f32 %v1017, 1.0
        %v1061 = vadd.f32 %v1019, 1.0
        %v1062 = vadd.f32 %v1021, 1.0
        %v1063 = vadd.f32 %v1023, 1.0
        %v1064 = vadd.f32 %v1025, 1.0
        %v1065 = vadd.f32 %v1027, 1.0
        %v1066 = vadd.f32 %v1029, 1.0
        %v1067 = vadd.f32 %v1031, 1.0
        %v1068 = vadd.f32 %v1033, 1.0
        %v1069 = vadd.f32 %v1035, 1.0
        %v1070 = vadd.f32 %v1037, 1.0
        %v1071 = vadd.f32 %v1039, 1.0
        %v1072 = vrcp.pop %v1040
        %v1073 = vrcp.pop %v1041
        %v1074 = vrcp.pop %v1042
        %v1075 = vrcp.pop %v1043
        %v1076 = vrcp.pop %v1044
        %v1077 = vrcp.pop %v1045
        %v1078 = vrcp.pop %v1046
        %v1079 = vrcp.pop %v1047
        %v1080 = vrcp.pop %v1048
        %v1081 = vrcp.pop %v1049
        %v1082 = vrcp.pop %v1050
        %v1083 = vrcp.pop %v1051
        %v1084 = vrcp.pop %v1052
        %v1085 = vrcp.pop %v1053
        %v1086 = vrcp.pop %v1054
        %v1087 = vrcp.pop %v1055
        %v1088 = vrcp.pop %v1056
        %v1089 = vrcp.pop %v1057
        %v1090 = vrcp.pop %v1058
        %v1091 = vrcp.pop %v1059
        %v1092 = vrcp.pop %v1060
        %v1093 = vrcp.pop %v1061
        %v1094 = vrcp.pop %v1062
        %v1095 = vrcp.pop %v1063
        %v1096 = vrcp.pop %v1064
        %v1097 = vrcp.pop %v1065
        %v1098 = vrcp.pop %v1066
        %v1099 = vrcp.pop %v1067
        %v1100 = vrcp.pop %v1068
        %v1101 = vrcp.pop %v1069
        %v1102 = vrcp.pop %v1070
        %v1103 = vrcp.pop %v1071
        %v1104 = vmul.f32 %v912, %v1072
        %v1105 = vmul.f32 %v913, %v1073
        %v1106 = vmul.f32 %v914, %v1074
        %v1107 = vmul.f32 %v915, %v1075
        %v1108 = vmul.f32 %v916, %v1076
        %v1109 = vmul.f32 %v917, %v1077
        %v1110 = vmul.f32 %v918, %v1078
        %v1111 = vmul.f32 %v919, %v1079
        %v1112 = vmul.f32 %v920, %v1080
        %v1113 = vmul.f32 %v921, %v1081
        %v1114 = vmul.f32 %v922, %v1082
        %v1115 = vmul.f32 %v923, %v1083
        %v1116 = vmul.f32 %v924, %v1084
        %v1117 = vmul.f32 %v925, %v1085
        %v1118 = vmul.f32 %v926, %v1086
        %v1119 = vmul.f32 %v927, %v1087
        %v1120 = vmul.f32 %v928, %v1088
        %v1121 = vmul.f32 %v929, %v1089
        %v1122 = vmul.f32 %v930, %v1090
        %v1123 = vmul.f32 %v931, %v1091
        %v1124 = vmul.f32 %v932, %v1092
        %v1125 = vmul.f32 %v933, %v1093
        %v1126 = vmul.f32 %v934, %v1094
        %v1127 = vmul.f32 %v935, %v1095
        %v1128 = vmul.f32 %v936, %v1096
        %v1129 = vmul.f32 %v937, %v1097
        %v1130 = vmul.f32 %v938, %v1098
        %v1131 = vmul.f32 %v939, %v1099
        %v1132 = vmul.f32 %v940, %v1100
        %v1133 = vmul.f32 %v941, %v1101
        %v1134 = vmul.f32 %v942, %v1102
        %v1135 = vmul.f32 %v943, %v1103
        %v1136 = vrot.slane %v1104, 7
        %v1137 = vrot.slane %v1105, 7
        %v1138 = vrot.slane %v1106, 7
        %v1139 = vrot.slane %v1107, 7
        %v1140 = vrot.slane %v1108, 7
        %v1141 = vrot.slane %v1109, 7
        %v1142 = vrot.slane %v1110, 7
        %v1143 = vrot.slane %v1111, 7
        %v1144 = vrot.slane %v1112, 7
        %v1145 = vrot.slane %v1113, 7
        %v1146 = vrot.slane %v1114, 7
        %v1147 = vrot.slane %v1115, 7
        %v1148 = vrot.slane %v1116, 7
        %v1149 = vrot.slane %v1117, 7
        %v1150 = vrot.slane %v1118, 7
        %v1151 = vrot.slane %v1119, 7
        %v1152 = vrot.slane %v1120, 7
        %v1153 = vrot.slane %v1121, 7
        %v1154 = vrot.slane %v1122, 7
        %v1155 = vrot.slane %v1123, 7
        %v1156 = vrot.slane %v1124, 7
        %v1157 = vrot.slane %v1125, 7
        %v1158 = vrot.slane %v1126, 7
        %v1159 = vrot.slane %v1127, 7
        %v1160 = vrot.slane %v1128, 7
        %v1161 = vrot.slane %v1129, 7
        %v1162 = vrot.slane %v1130, 7
        %v1163 = vrot.slane %v1131, 7
        %v1164 = vrot.slane %v1132, 7
        %v1165 = vrot.slane %v1133, 7
        %v1166 = vrot.slane %v1134, 7
        %v1167 = vrot.slane %v1135, 7
        %v1168 = vlaneseq
        %v1169 = vshrl.u32 %v1168, 7
        %vm1170 = vcmp.lt.s32.totalorder %v1169, 1
        %v1171 = vsel %vm1170, %v1166, %v1167
        %v1172 = vsel %vm1170, %v1165, %v1166
        %v1173 = vsel %vm1170, %v1164, %v1165
        %v1174 = vsel %vm1170, %v1163, %v1164
        %v1175 = vsel %vm1170, %v1162, %v1163
        %v1176 = vsel %vm1170, %v1161, %v1162
        %v1177 = vsel %vm1170, %v1160, %v1161
        %v1178 = vsel %vm1170, %v1159, %v1160
        %v1179 = vsel %vm1170, %v1158, %v1159
        %v1180 = vsel %vm1170, %v1157, %v1158
        %v1181 = vsel %vm1170, %v1156, %v1157
        %v1182 = vsel %vm1170, %v1155, %v1156
        %v1183 = vsel %vm1170, %v1154, %v1155
        %v1184 = vsel %vm1170, %v1153, %v1154
        %v1185 = vsel %vm1170, %v1152, %v1153
        %v1186 = vsel %vm1170, %v1151, %v1152
        %v1187 = vsel %vm1170, %v1150, %v1151
        %v1188 = vsel %vm1170, %v1149, %v1150
        %v1189 = vsel %vm1170, %v1148, %v1149
        %v1190 = vsel %vm1170, %v1147, %v1148
        %v1191 = vsel %vm1170, %v1146, %v1147
        %v1192 = vsel %vm1170, %v1145, %v1146
        %v1193 = vsel %vm1170, %v1144, %v1145
        %v1194 = vsel %vm1170, %v1143, %v1144
        %v1195 = vsel %vm1170, %v1142, %v1143
        %v1196 = vsel %vm1170, %v1141, %v1142
        %v1197 = vsel %vm1170, %v1140, %v1141
        %v1198 = vsel %vm1170, %v1139, %v1140
        %v1199 = vsel %vm1170, %v1138, %v1139
        %v1200 = vsel %vm1170, %v1137, %v1138
        %v1201 = vsel %vm1170, %v1136, %v1137
        %v1202 = vsel %vm1170, %v1167, %v1136
        %v1203 = vld [vmem:[#allocation7] sm:$0xff]
        %v1204 = vld [vmem:[#allocation7 + $0x8] sm:$0xff]
        %v1205 = vld [vmem:[#allocation7 + $0x10] sm:$0xff]
        %v1206 = vld [vmem:[#allocation7 + $0x18] sm:$0xff]
        %v1207 = vld [vmem:[#allocation7 + $0x20] sm:$0xff]
        %v1208 = vld [vmem:[#allocation7 + $0x28] sm:$0xff]
        %v1209 = vld [vmem:[#allocation7 + $0x30] sm:$0xff]
        %v1210 = vld [vmem:[#allocation7 + $0x38] sm:$0xff]
        %v1211 = vld [vmem:[#allocation7 + $0x40] sm:$0xff]
        %v1212 = vld [vmem:[#allocation7 + $0x48] sm:$0xff]
        %v1213 = vld [vmem:[#allocation7 + $0x50] sm:$0xff]
        %v1214 = vld [vmem:[#allocation7 + $0x58] sm:$0xff]
        %v1215 = vld [vmem:[#allocation7 + $0x60] sm:$0xff]
        %v1216 = vld [vmem:[#allocation7 + $0x68] sm:$0xff]
        %v1217 = vld [vmem:[#allocation7 + $0x70] sm:$0xff]
        %v1218 = vld [vmem:[#allocation7 + $0x78] sm:$0xff]
        %v1219 = vld [vmem:[#allocation7 + $0x80] sm:$0xff]
        %v1220 = vld [vmem:[#allocation7 + $0x88] sm:$0xff]
        %v1221 = vld [vmem:[#allocation7 + $0x90] sm:$0xff]
        %v1222 = vld [vmem:[#allocation7 + $0x98] sm:$0xff]
        %v1223 = vld [vmem:[#allocation7 + $0xa0] sm:$0xff]
        %v1224 = vld [vmem:[#allocation7 + $0xa8] sm:$0xff]
        %v1225 = vld [vmem:[#allocation7 + $0xb0] sm:$0xff]
        %v1226 = vld [vmem:[#allocation7 + $0xb8] sm:$0xff]
        %v1227 = vld [vmem:[#allocation7 + $0xc0] sm:$0xff]
        %v1228 = vld [vmem:[#allocation7 + $0xc8] sm:$0xff]
        %v1229 = vld [vmem:[#allocation7 + $0xd0] sm:$0xff]
        %v1230 = vld [vmem:[#allocation7 + $0xd8] sm:$0xff]
        %v1231 = vld [vmem:[#allocation7 + $0xe0] sm:$0xff]
        %v1232 = vld [vmem:[#allocation7 + $0xe8] sm:$0xff]
        %v1233 = vld [vmem:[#allocation7 + $0xf0] sm:$0xff]
        %v1234 = vld [vmem:[#allocation7 + $0xf8] sm:$0xff]
        %1236 = vset.pattern.permute.xlu0 0
        %1237 = vperm.xlu0 %1236, %v1203
        %v1238 = vpop.permute.xlu0 %1237
        %1241 = vset.pattern.permute.xlu0 0
        %1242 = vperm.xlu0 %1241, %v1204
        %v1243 = vpop.permute.xlu0 %1242
        %1246 = vset.pattern.permute.xlu0 0
        %1247 = vperm.xlu0 %1246, %v1205
        %v1248 = vpop.permute.xlu0 %1247
        %1251 = vset.pattern.permute.xlu0 0
        %1252 = vperm.xlu0 %1251, %v1206
        %v1253 = vpop.permute.xlu0 %1252
        %1256 = vset.pattern.permute.xlu0 0
        %1257 = vperm.xlu0 %1256, %v1207
        %v1258 = vpop.permute.xlu0 %1257
        %1261 = vset.pattern.permute.xlu0 0
        %1262 = vperm.xlu0 %1261, %v1208
        %v1263 = vpop.permute.xlu0 %1262
        %1266 = vset.pattern.permute.xlu0 0
        %1267 = vperm.xlu0 %1266, %v1209
        %v1268 = vpop.permute.xlu0 %1267
        %1271 = vset.pattern.permute.xlu0 0
        %1272 = vperm.xlu0 %1271, %v1210
        %v1273 = vpop.permute.xlu0 %1272
        %1276 = vset.pattern.permute.xlu0 0
        %1277 = vperm.xlu0 %1276, %v1211
        %v1278 = vpop.permute.xlu0 %1277
        %1281 = vset.pattern.permute.xlu0 0
        %1282 = vperm.xlu0 %1281, %v1212
        %v1283 = vpop.permute.xlu0 %1282
        %1286 = vset.pattern.permute.xlu0 0
        %1287 = vperm.xlu0 %1286, %v1213
        %v1288 = vpop.permute.xlu0 %1287
        %1291 = vset.pattern.permute.xlu0 0
        %1292 = vperm.xlu0 %1291, %v1214
        %v1293 = vpop.permute.xlu0 %1292
        %1296 = vset.pattern.permute.xlu0 0
        %1297 = vperm.xlu0 %1296, %v1215
        %v1298 = vpop.permute.xlu0 %1297
        %1301 = vset.pattern.permute.xlu0 0
        %1302 = vperm.xlu0 %1301, %v1216
        %v1303 = vpop.permute.xlu0 %1302
        %1306 = vset.pattern.permute.xlu0 0
        %1307 = vperm.xlu0 %1306, %v1217
        %v1308 = vpop.permute.xlu0 %1307
        %1311 = vset.pattern.permute.xlu0 0
        %1312 = vperm.xlu0 %1311, %v1218
        %v1313 = vpop.permute.xlu0 %1312
        %1316 = vset.pattern.permute.xlu0 0
        %1317 = vperm.xlu0 %1316, %v1219
        %v1318 = vpop.permute.xlu0 %1317
        %1321 = vset.pattern.permute.xlu0 0
        %1322 = vperm.xlu0 %1321, %v1220
        %v1323 = vpop.permute.xlu0 %1322
        %1326 = vset.pattern.permute.xlu0 0
        %1327 = vperm.xlu0 %1326, %v1221
        %v1328 = vpop.permute.xlu0 %1327
        %1331 = vset.pattern.permute.xlu0 0
        %1332 = vperm.xlu0 %1331, %v1222
        %v1333 = vpop.permute.xlu0 %1332
        %1336 = vset.pattern.permute.xlu0 0
        %1337 = vperm.xlu0 %1336, %v1223
        %v1338 = vpop.permute.xlu0 %1337
        %1341 = vset.pattern.permute.xlu0 0
        %1342 = vperm.xlu0 %1341, %v1224
        %v1343 = vpop.permute.xlu0 %1342
        %1346 = vset.pattern.permute.xlu0 0
        %1347 = vperm.xlu0 %1346, %v1225
        %v1348 = vpop.permute.xlu0 %1347
        %1351 = vset.pattern.permute.xlu0 0
        %1352 = vperm.xlu0 %1351, %v1226
        %v1353 = vpop.permute.xlu0 %1352
        %1356 = vset.pattern.permute.xlu0 0
        %1357 = vperm.xlu0 %1356, %v1227
        %v1358 = vpop.permute.xlu0 %1357
        %1361 = vset.pattern.permute.xlu0 0
        %1362 = vperm.xlu0 %1361, %v1228
        %v1363 = vpop.permute.xlu0 %1362
        %1366 = vset.pattern.permute.xlu0 0
        %1367 = vperm.xlu0 %1366, %v1229
        %v1368 = vpop.permute.xlu0 %1367
        %1371 = vset.pattern.permute.xlu0 0
        %1372 = vperm.xlu0 %1371, %v1230
        %v1373 = vpop.permute.xlu0 %1372
        %1376 = vset.pattern.permute.xlu0 0
        %1377 = vperm.xlu0 %1376, %v1231
        %v1378 = vpop.permute.xlu0 %1377
        %1381 = vset.pattern.permute.xlu0 0
        %1382 = vperm.xlu0 %1381, %v1232
        %v1383 = vpop.permute.xlu0 %1382
        %1386 = vset.pattern.permute.xlu0 0
        %1387 = vperm.xlu0 %1386, %v1233
        %v1388 = vpop.permute.xlu0 %1387
        %1391 = vset.pattern.permute.xlu0 0
        %1392 = vperm.xlu0 %1391, %v1234
        %v1393 = vpop.permute.xlu0 %1392
        %v1395 = vmul.f32 %v1171, %v1238
        %v1396 = vmul.f32 %v1202, %v1243
        %v1397 = vmul.f32 %v1201, %v1248
        %v1398 = vmul.f32 %v1200, %v1253
        %v1399 = vmul.f32 %v1199, %v1258
        %v1400 = vmul.f32 %v1198, %v1263
        %v1401 = vmul.f32 %v1197, %v1268
        %v1402 = vmul.f32 %v1196, %v1273
        %v1403 = vmul.f32 %v1195, %v1278
        %v1404 = vmul.f32 %v1194, %v1283
        %v1405 = vmul.f32 %v1193, %v1288
        %v1406 = vmul.f32 %v1192, %v1293
        %v1407 = vmul.f32 %v1191, %v1298
        %v1408 = vmul.f32 %v1190, %v1303
        %v1409 = vmul.f32 %v1189, %v1308
        %v1410 = vmul.f32 %v1188, %v1313
        %v1411 = vmul.f32 %v1187, %v1318
        %v1412 = vmul.f32 %v1186, %v1323
        %v1413 = vmul.f32 %v1185, %v1328
        %v1414 = vmul.f32 %v1184, %v1333
        %v1415 = vmul.f32 %v1183, %v1338
        %v1416 = vmul.f32 %v1182, %v1343
        %v1417 = vmul.f32 %v1181, %v1348
        %v1418 = vmul.f32 %v1180, %v1353
        %v1419 = vmul.f32 %v1179, %v1358
        %v1420 = vmul.f32 %v1178, %v1363
        %v1421 = vmul.f32 %v1177, %v1368
        %v1422 = vmul.f32 %v1176, %v1373
        %v1423 = vmul.f32 %v1175, %v1378
        %v1424 = vmul.f32 %v1174, %v1383
        %v1425 = vmul.f32 %v1173, %v1388
        %v1426 = vmul.f32 %v1172, %v1393
        %v1427 = vpack.c.bf16 %v1396, %v1395
        %v1428 = vpack.c.bf16 %v1398, %v1397
        %v1429 = vpack.c.bf16 %v1400, %v1399
        %v1430 = vpack.c.bf16 %v1402, %v1401
        %v1431 = vpack.c.bf16 %v1404, %v1403
        %v1432 = vpack.c.bf16 %v1406, %v1405
        %v1433 = vpack.c.bf16 %v1408, %v1407
        %v1434 = vpack.c.bf16 %v1410, %v1409
        %v1435 = vpack.c.bf16 %v1412, %v1411
        %v1436 = vpack.c.bf16 %v1414, %v1413
        %v1437 = vpack.c.bf16 %v1416, %v1415
        %v1438 = vpack.c.bf16 %v1418, %v1417
        %v1439 = vpack.c.bf16 %v1420, %v1419
        %v1440 = vpack.c.bf16 %v1422, %v1421
        %v1441 = vpack.c.bf16 %v1424, %v1423
        %v1442 = vpack.c.bf16 %v1426, %v1425
        %1443 = vset.pattern.permute.xlu0 1
        %1444 = vperm.xlu0 %1443, %v1203
        %v1445 = vpop.permute.xlu0 %1444
        %1447 = vset.pattern.permute.xlu0 1
        %1448 = vperm.xlu0 %1447, %v1204
        %v1449 = vpop.permute.xlu0 %1448
        %1451 = vset.pattern.permute.xlu0 1
        %1452 = vperm.xlu0 %1451, %v1205
        %v1453 = vpop.permute.xlu0 %1452
        %1455 = vset.pattern.permute.xlu0 1
        %1456 = vperm.xlu0 %1455, %v1206
        %v1457 = vpop.permute.xlu0 %1456
        %1459 = vset.pattern.permute.xlu0 1
        %1460 = vperm.xlu0 %1459, %v1207
        %v1461 = vpop.permute.xlu0 %1460
        %1463 = vset.pattern.permute.xlu0 1
        %1464 = vperm.xlu0 %1463, %v1208
        %v1465 = vpop.permute.xlu0 %1464
        %1467 = vset.pattern.permute.xlu0 1
        %1468 = vperm.xlu0 %1467, %v1209
        %v1469 = vpop.permute.xlu0 %1468
        %1471 = vset.pattern.permute.xlu0 1
        %1472 = vperm.xlu0 %1471, %v1210
        %v1473 = vpop.permute.xlu0 %1472
        %1475 = vset.pattern.permute.xlu0 1
        %1476 = vperm.xlu0 %1475, %v1211
        %v1477 = vpop.permute.xlu0 %1476
        %1479 = vset.pattern.permute.xlu0 1
        %1480 = vperm.xlu0 %1479, %v1212
        %v1481 = vpop.permute.xlu0 %1480
        %1483 = vset.pattern.permute.xlu0 1
        %1484 = vperm.xlu0 %1483, %v1213
        %v1485 = vpop.permute.xlu0 %1484
        %1487 = vset.pattern.permute.xlu0 1
        %1488 = vperm.xlu0 %1487, %v1214
        %v1489 = vpop.permute.xlu0 %1488
        %1491 = vset.pattern.permute.xlu0 1
        %1492 = vperm.xlu0 %1491, %v1215
        %v1493 = vpop.permute.xlu0 %1492
        %1495 = vset.pattern.permute.xlu0 1
        %1496 = vperm.xlu0 %1495, %v1216
        %v1497 = vpop.permute.xlu0 %1496
        %1499 = vset.pattern.permute.xlu0 1
        %1500 = vperm.xlu0 %1499, %v1217
        %v1501 = vpop.permute.xlu0 %1500
        %1503 = vset.pattern.permute.xlu0 1
        %1504 = vperm.xlu0 %1503, %v1218
        %v1505 = vpop.permute.xlu0 %1504
        %1507 = vset.pattern.permute.xlu0 1
        %1508 = vperm.xlu0 %1507, %v1219
        %v1509 = vpop.permute.xlu0 %1508
        %1511 = vset.pattern.permute.xlu0 1
        %1512 = vperm.xlu0 %1511, %v1220
        %v1513 = vpop.permute.xlu0 %1512
        %1515 = vset.pattern.permute.xlu0 1
        %1516 = vperm.xlu0 %1515, %v1221
        %v1517 = vpop.permute.xlu0 %1516
        %1519 = vset.pattern.permute.xlu0 1
        %1520 = vperm.xlu0 %1519, %v1222
        %v1521 = vpop.permute.xlu0 %1520
        %1523 = vset.pattern.permute.xlu0 1
        %1524 = vperm.xlu0 %1523, %v1223
        %v1525 = vpop.permute.xlu0 %1524
        %1527 = vset.pattern.permute.xlu0 1
        %1528 = vperm.xlu0 %1527, %v1224
        %v1529 = vpop.permute.xlu0 %1528
        %1531 = vset.pattern.permute.xlu0 1
        %1532 = vperm.xlu0 %1531, %v1225
        %v1533 = vpop.permute.xlu0 %1532
        %1535 = vset.pattern.permute.xlu0 1
        %1536 = vperm.xlu0 %1535, %v1226
        %v1537 = vpop.permute.xlu0 %1536
        %1539 = vset.pattern.permute.xlu0 1
        %1540 = vperm.xlu0 %1539, %v1227
        %v1541 = vpop.permute.xlu0 %1540
        %1543 = vset.pattern.permute.xlu0 1
        %1544 = vperm.xlu0 %1543, %v1228
        %v1545 = vpop.permute.xlu0 %1544
        %1547 = vset.pattern.permute.xlu0 1
        %1548 = vperm.xlu0 %1547, %v1229
        %v1549 = vpop.permute.xlu0 %1548
        %1551 = vset.pattern.permute.xlu0 1
        %1552 = vperm.xlu0 %1551, %v1230
        %v1553 = vpop.permute.xlu0 %1552
        %1555 = vset.pattern.permute.xlu0 1
        %1556 = vperm.xlu0 %1555, %v1231
        %v1557 = vpop.permute.xlu0 %1556
        %1559 = vset.pattern.permute.xlu0 1
        %1560 = vperm.xlu0 %1559, %v1232
        %v1561 = vpop.permute.xlu0 %1560
        %1563 = vset.pattern.permute.xlu0 1
        %1564 = vperm.xlu0 %1563, %v1233
        %v1565 = vpop.permute.xlu0 %1564
        %1567 = vset.pattern.permute.xlu0 1
        %1568 = vperm.xlu0 %1567, %v1234
        %v1569 = vpop.permute.xlu0 %1568
        %v1571 = vmul.f32 %v1135, %v1445
        %v1572 = vmul.f32 %v1104, %v1449
        %v1573 = vmul.f32 %v1105, %v1453
        %v1574 = vmul.f32 %v1106, %v1457
        %v1575 = vmul.f32 %v1107, %v1461
        %v1576 = vmul.f32 %v1108, %v1465
        %v1577 = vmul.f32 %v1109, %v1469
        %v1578 = vmul.f32 %v1110, %v1473
        %v1579 = vmul.f32 %v1111, %v1477
        %v1580 = vmul.f32 %v1112, %v1481
        %v1581 = vmul.f32 %v1113, %v1485
        %v1582 = vmul.f32 %v1114, %v1489
        %v1583 = vmul.f32 %v1115, %v1493
        %v1584 = vmul.f32 %v1116, %v1497
        %v1585 = vmul.f32 %v1117, %v1501
        %v1586 = vmul.f32 %v1118, %v1505
        %v1587 = vmul.f32 %v1119, %v1509
        %v1588 = vmul.f32 %v1120, %v1513
        %v1589 = vmul.f32 %v1121, %v1517
        %v1590 = vmul.f32 %v1122, %v1521
        %v1591 = vmul.f32 %v1123, %v1525
        %v1592 = vmul.f32 %v1124, %v1529
        %v1593 = vmul.f32 %v1125, %v1533
        %v1594 = vmul.f32 %v1126, %v1537
        %v1595 = vmul.f32 %v1127, %v1541
        %v1596 = vmul.f32 %v1128, %v1545
        %v1597 = vmul.f32 %v1129, %v1549
        %v1598 = vmul.f32 %v1130, %v1553
        %v1599 = vmul.f32 %v1131, %v1557
        %v1600 = vmul.f32 %v1132, %v1561
        %v1601 = vmul.f32 %v1133, %v1565
        %v1602 = vmul.f32 %v1134, %v1569
        %v1603 = vpack.c.bf16 %v1572, %v1571
        %v1604 = vpack.c.bf16 %v1574, %v1573
        %v1605 = vpack.c.bf16 %v1576, %v1575
        %v1606 = vpack.c.bf16 %v1578, %v1577
        %v1607 = vpack.c.bf16 %v1580, %v1579
        %v1608 = vpack.c.bf16 %v1582, %v1581
        %v1609 = vpack.c.bf16 %v1584, %v1583
        %v1610 = vpack.c.bf16 %v1586, %v1585
        %v1611 = vpack.c.bf16 %v1588, %v1587
        %v1612 = vpack.c.bf16 %v1590, %v1589
        %v1613 = vpack.c.bf16 %v1592, %v1591
        %v1614 = vpack.c.bf16 %v1594, %v1593
        %v1615 = vpack.c.bf16 %v1596, %v1595
        %v1616 = vpack.c.bf16 %v1598, %v1597
        %v1617 = vpack.c.bf16 %v1600, %v1599
        %v1618 = vpack.c.bf16 %v1602, %v1601
        %v1619 = vrot.slane %v1104, 1
        %v1620 = vrot.slane %v1105, 1
        %v1621 = vrot.slane %v1106, 1
        %v1622 = vrot.slane %v1107, 1
        %v1623 = vrot.slane %v1108, 1
        %v1624 = vrot.slane %v1109, 1
        %v1625 = vrot.slane %v1110, 1
        %v1626 = vrot.slane %v1111, 1
        %v1627 = vrot.slane %v1112, 1
        %v1628 = vrot.slane %v1113, 1
        %v1629 = vrot.slane %v1114, 1
        %v1630 = vrot.slane %v1115, 1
        %v1631 = vrot.slane %v1116, 1
        %v1632 = vrot.slane %v1117, 1
        %v1633 = vrot.slane %v1118, 1
        %v1634 = vrot.slane %v1119, 1
        %v1635 = vrot.slane %v1120, 1
        %v1636 = vrot.slane %v1121, 1
        %v1637 = vrot.slane %v1122, 1
        %v1638 = vrot.slane %v1123, 1
        %v1639 = vrot.slane %v1124, 1
        %v1640 = vrot.slane %v1125, 1
        %v1641 = vrot.slane %v1126, 1
        %v1642 = vrot.slane %v1127, 1
        %v1643 = vrot.slane %v1128, 1
        %v1644 = vrot.slane %v1129, 1
        %v1645 = vrot.slane %v1130, 1
        %v1646 = vrot.slane %v1131, 1
        %v1647 = vrot.slane %v1132, 1
        %v1648 = vrot.slane %v1133, 1
        %v1649 = vrot.slane %v1134, 1
        %v1650 = vrot.slane %v1135, 1
        %vm1651 = vcmp.lt.s32.totalorder %v1169, 7
        %v1652 = vsel %vm1651, %v1649, %v1650
        %v1653 = vsel %vm1651, %v1648, %v1649
        %v1654 = vsel %vm1651, %v1647, %v1648
        %v1655 = vsel %vm1651, %v1646, %v1647
        %v1656 = vsel %vm1651, %v1645, %v1646
        %v1657 = vsel %vm1651, %v1644, %v1645
        %v1658 = vsel %vm1651, %v1643, %v1644
        %v1659 = vsel %vm1651, %v1642, %v1643
        %v1660 = vsel %vm1651, %v1641, %v1642
        %v1661 = vsel %vm1651, %v1640, %v1641
        %v1662 = vsel %vm1651, %v1639, %v1640
        %v1663 = vsel %vm1651, %v1638, %v1639
        %v1664 = vsel %vm1651, %v1637, %v1638
        %v1665 = vsel %vm1651, %v1636, %v1637
        %v1666 = vsel %vm1651, %v1635, %v1636
        %v1667 = vsel %vm1651, %v1634, %v1635
        %v1668 = vsel %vm1651, %v1633, %v1634
        %v1669 = vsel %vm1651, %v1632, %v1633
        %v1670 = vsel %vm1651, %v1631, %v1632
        %v1671 = vsel %vm1651, %v1630, %v1631
        %v1672 = vsel %vm1651, %v1629, %v1630
        %v1673 = vsel %vm1651, %v1628, %v1629
        %v1674 = vsel %vm1651, %v1627, %v1628
        %v1675 = vsel %vm1651, %v1626, %v1627
        %v1676 = vsel %vm1651, %v1625, %v1626
        %v1677 = vsel %vm1651, %v1624, %v1625
        %v1678 = vsel %vm1651, %v1623, %v1624
        %v1679 = vsel %vm1651, %v1622, %v1623
        %v1680 = vsel %vm1651, %v1621, %v1622
        %v1681 = vsel %vm1651, %v1620, %v1621
        %v1682 = vsel %vm1651, %v1619, %v1620
        %v1683 = vsel %vm1651, %v1650, %v1619
        %1684 = vset.pattern.permute.xlu0 2
        %1685 = vperm.xlu0 %1684, %v1203
        %v1686 = vpop.permute.xlu0 %1685
        %1688 = vset.pattern.permute.xlu0 2
        %1689 = vperm.xlu0 %1688, %v1204
        %v1690 = vpop.permute.xlu0 %1689
        %1692 = vset.pattern.permute.xlu0 2
        %1693 = vperm.xlu0 %1692, %v1205
        %v1694 = vpop.permute.xlu0 %1693
        %1696 = vset.pattern.permute.xlu0 2
        %1697 = vperm.xlu0 %1696, %v1206
        %v1698 = vpop.permute.xlu0 %1697
        %1700 = vset.pattern.permute.xlu0 2
        %1701 = vperm.xlu0 %1700, %v1207
        %v1702 = vpop.permute.xlu0 %1701
        %1704 = vset.pattern.permute.xlu0 2
        %1705 = vperm.xlu0 %1704, %v1208
        %v1706 = vpop.permute.xlu0 %1705
        %1708 = vset.pattern.permute.xlu0 2
        %1709 = vperm.xlu0 %1708, %v1209
        %v1710 = vpop.permute.xlu0 %1709
        %1712 = vset.pattern.permute.xlu0 2
        %1713 = vperm.xlu0 %1712, %v1210
        %v1714 = vpop.permute.xlu0 %1713
        %1716 = vset.pattern.permute.xlu0 2
        %1717 = vperm.xlu0 %1716, %v1211
        %v1718 = vpop.permute.xlu0 %1717
        %1720 = vset.pattern.permute.xlu0 2
        %1721 = vperm.xlu0 %1720, %v1212
        %v1722 = vpop.permute.xlu0 %1721
        %1724 = vset.pattern.permute.xlu0 2
        %1725 = vperm.xlu0 %1724, %v1213
        %v1726 = vpop.permute.xlu0 %1725
        %1728 = vset.pattern.permute.xlu0 2
        %1729 = vperm.xlu0 %1728, %v1214
        %v1730 = vpop.permute.xlu0 %1729
        %1732 = vset.pattern.permute.xlu0 2
        %1733 = vperm.xlu0 %1732, %v1215
        %v1734 = vpop.permute.xlu0 %1733
        %1736 = vset.pattern.permute.xlu0 2
        %1737 = vperm.xlu0 %1736, %v1216
        %v1738 = vpop.permute.xlu0 %1737
        %1740 = vset.pattern.permute.xlu0 2
        %1741 = vperm.xlu0 %1740, %v1217
        %v1742 = vpop.permute.xlu0 %1741
        %1744 = vset.pattern.permute.xlu0 2
        %1745 = vperm.xlu0 %1744, %v1218
        %v1746 = vpop.permute.xlu0 %1745
        %1748 = vset.pattern.permute.xlu0 2
        %1749 = vperm.xlu0 %1748, %v1219
        %v1750 = vpop.permute.xlu0 %1749
        %1752 = vset.pattern.permute.xlu0 2
        %1753 = vperm.xlu0 %1752, %v1220
        %v1754 = vpop.permute.xlu0 %1753
        %1756 = vset.pattern.permute.xlu0 2
        %1757 = vperm.xlu0 %1756, %v1221
        %v1758 = vpop.permute.xlu0 %1757
        %1760 = vset.pattern.permute.xlu0 2
        %1761 = vperm.xlu0 %1760, %v1222
        %v1762 = vpop.permute.xlu0 %1761
        %1764 = vset.pattern.permute.xlu0 2
        %1765 = vperm.xlu0 %1764, %v1223
        %v1766 = vpop.permute.xlu0 %1765
        %1768 = vset.pattern.permute.xlu0 2
        %1769 = vperm.xlu0 %1768, %v1224
        %v1770 = vpop.permute.xlu0 %1769
        %1772 = vset.pattern.permute.xlu0 2
        %1773 = vperm.xlu0 %1772, %v1225
        %v1774 = vpop.permute.xlu0 %1773
        %1776 = vset.pattern.permute.xlu0 2
        %1777 = vperm.xlu0 %1776, %v1226
        %v1778 = vpop.permute.xlu0 %1777
        %1780 = vset.pattern.permute.xlu0 2
        %1781 = vperm.xlu0 %1780, %v1227
        %v1782 = vpop.permute.xlu0 %1781
        %1784 = vset.pattern.permute.xlu0 2
        %1785 = vperm.xlu0 %1784, %v1228
        %v1786 = vpop.permute.xlu0 %1785
        %1788 = vset.pattern.permute.xlu0 2
        %1789 = vperm.xlu0 %1788, %v1229
        %v1790 = vpop.permute.xlu0 %1789
        %1792 = vset.pattern.permute.xlu0 2
        %1793 = vperm.xlu0 %1792, %v1230
        %v1794 = vpop.permute.xlu0 %1793
        %1796 = vset.pattern.permute.xlu0 2
        %1797 = vperm.xlu0 %1796, %v1231
        %v1798 = vpop.permute.xlu0 %1797
        %1800 = vset.pattern.permute.xlu0 2
        %1801 = vperm.xlu0 %1800, %v1232
        %v1802 = vpop.permute.xlu0 %1801
        %1804 = vset.pattern.permute.xlu0 2
        %1805 = vperm.xlu0 %1804, %v1233
        %v1806 = vpop.permute.xlu0 %1805
        %1808 = vset.pattern.permute.xlu0 2
        %1809 = vperm.xlu0 %1808, %v1234
        %v1810 = vpop.permute.xlu0 %1809
        %v1812 = vmul.f32 %v1683, %v1686
        %v1813 = vmul.f32 %v1682, %v1690
        %v1814 = vmul.f32 %v1681, %v1694
        %v1815 = vmul.f32 %v1680, %v1698
        %v1816 = vmul.f32 %v1679, %v1702
        %v1817 = vmul.f32 %v1678, %v1706
        %v1818 = vmul.f32 %v1677, %v1710
        %v1819 = vmul.f32 %v1676, %v1714
        %v1820 = vmul.f32 %v1675, %v1718
        %v1821 = vmul.f32 %v1674, %v1722
        %v1822 = vmul.f32 %v1673, %v1726
        %v1823 = vmul.f32 %v1672, %v1730
        %v1824 = vmul.f32 %v1671, %v1734
        %v1825 = vmul.f32 %v1670, %v1738
        %v1826 = vmul.f32 %v1669, %v1742
        %v1827 = vmul.f32 %v1668, %v1746
        %v1828 = vmul.f32 %v1667, %v1750
        %v1829 = vmul.f32 %v1666, %v1754
        %v1830 = vmul.f32 %v1665, %v1758
        %v1831 = vmul.f32 %v1664, %v1762
        %v1832 = vmul.f32 %v1663, %v1766
        %v1833 = vmul.f32 %v1662, %v1770
        %v1834 = vmul.f32 %v1661, %v1774
        %v1835 = vmul.f32 %v1660, %v1778
        %v1836 = vmul.f32 %v1659, %v1782
        %v1837 = vmul.f32 %v1658, %v1786
        %v1838 = vmul.f32 %v1657, %v1790
        %v1839 = vmul.f32 %v1656, %v1794
        %v1840 = vmul.f32 %v1655, %v1798
        %v1841 = vmul.f32 %v1654, %v1802
        %v1842 = vmul.f32 %v1653, %v1806
        %v1843 = vmul.f32 %v1652, %v1810
        %v1844 = vpack.c.bf16 %v1813, %v1812
        %v1845 = vpack.c.bf16 %v1815, %v1814
        %v1846 = vpack.c.bf16 %v1817, %v1816
        %v1847 = vpack.c.bf16 %v1819, %v1818
        %v1848 = vpack.c.bf16 %v1821, %v1820
        %v1849 = vpack.c.bf16 %v1823, %v1822
        %v1850 = vpack.c.bf16 %v1825, %v1824
        %v1851 = vpack.c.bf16 %v1827, %v1826
        %v1852 = vpack.c.bf16 %v1829, %v1828
        %v1853 = vpack.c.bf16 %v1831, %v1830
        %v1854 = vpack.c.bf16 %v1833, %v1832
        %v1855 = vpack.c.bf16 %v1835, %v1834
        %v1856 = vpack.c.bf16 %v1837, %v1836
        %v1857 = vpack.c.bf16 %v1839, %v1838
        %v1858 = vpack.c.bf16 %v1841, %v1840
        %v1859 = vpack.c.bf16 %v1843, %v1842
        %1860 = vset.pattern.permute.xlu0 3
        %1861 = vperm.xlu0 %1860, %v1203
        %v1862 = vpop.permute.xlu0 %1861
        %1864 = vset.pattern.permute.xlu0 3
        %1865 = vperm.xlu0 %1864, %v1204
        %v1866 = vpop.permute.xlu0 %1865
        %1868 = vset.pattern.permute.xlu0 3
        %1869 = vperm.xlu0 %1868, %v1205
        %v1870 = vpop.permute.xlu0 %1869
        %1872 = vset.pattern.permute.xlu0 3
        %1873 = vperm.xlu0 %1872, %v1206
        %v1874 = vpop.permute.xlu0 %1873
        %1876 = vset.pattern.permute.xlu0 3
        %1877 = vperm.xlu0 %1876, %v1207
        %v1878 = vpop.permute.xlu0 %1877
        %1880 = vset.pattern.permute.xlu0 3
        %1881 = vperm.xlu0 %1880, %v1208
        %v1882 = vpop.permute.xlu0 %1881
        %1884 = vset.pattern.permute.xlu0 3
        %1885 = vperm.xlu0 %1884, %v1209
        %v1886 = vpop.permute.xlu0 %1885
        %1888 = vset.pattern.permute.xlu0 3
        %1889 = vperm.xlu0 %1888, %v1210
        %v1890 = vpop.permute.xlu0 %1889
        %1892 = vset.pattern.permute.xlu0 3
        %1893 = vperm.xlu0 %1892, %v1211
        %v1894 = vpop.permute.xlu0 %1893
        %1896 = vset.pattern.permute.xlu0 3
        %1897 = vperm.xlu0 %1896, %v1212
        %v1898 = vpop.permute.xlu0 %1897
        %1900 = vset.pattern.permute.xlu0 3
        %1901 = vperm.xlu0 %1900, %v1213
        %v1902 = vpop.permute.xlu0 %1901
        %1904 = vset.pattern.permute.xlu0 3
        %1905 = vperm.xlu0 %1904, %v1214
        %v1906 = vpop.permute.xlu0 %1905
        %1908 = vset.pattern.permute.xlu0 3
        %1909 = vperm.xlu0 %1908, %v1215
        %v1910 = vpop.permute.xlu0 %1909
        %1912 = vset.pattern.permute.xlu0 3
        %1913 = vperm.xlu0 %1912, %v1216
        %v1914 = vpop.permute.xlu0 %1913
        %1916 = vset.pattern.permute.xlu0 3
        %1917 = vperm.xlu0 %1916, %v1217
        %v1918 = vpop.permute.xlu0 %1917
        %1920 = vset.pattern.permute.xlu0 3
        %1921 = vperm.xlu0 %1920, %v1218
        %v1922 = vpop.permute.xlu0 %1921
        %1924 = vset.pattern.permute.xlu0 3
        %1925 = vperm.xlu0 %1924, %v1219
        %v1926 = vpop.permute.xlu0 %1925
        %1928 = vset.pattern.permute.xlu0 3
        %1929 = vperm.xlu0 %1928, %v1220
        %v1930 = vpop.permute.xlu0 %1929
        %1932 = vset.pattern.permute.xlu0 3
        %1933 = vperm.xlu0 %1932, %v1221
        %v1934 = vpop.permute.xlu0 %1933
        %1936 = vset.pattern.permute.xlu0 3
        %1937 = vperm.xlu0 %1936, %v1222
        %v1938 = vpop.permute.xlu0 %1937
        %1940 = vset.pattern.permute.xlu0 3
        %1941 = vperm.xlu0 %1940, %v1223
        %v1942 = vpop.permute.xlu0 %1941
        %1944 = vset.pattern.permute.xlu0 3
        %1945 = vperm.xlu0 %1944, %v1224
        %v1946 = vpop.permute.xlu0 %1945
        %1948 = vset.pattern.permute.xlu0 3
        %1949 = vperm.xlu0 %1948, %v1225
        %v1950 = vpop.permute.xlu0 %1949
        %1952 = vset.pattern.permute.xlu0 3
        %1953 = vperm.xlu0 %1952, %v1226
        %v1954 = vpop.permute.xlu0 %1953
        %1956 = vset.pattern.permute.xlu0 3
        %1957 = vperm.xlu0 %1956, %v1227
        %v1958 = vpop.permute.xlu0 %1957
        %1960 = vset.pattern.permute.xlu0 3
        %1961 = vperm.xlu0 %1960, %v1228
        %v1962 = vpop.permute.xlu0 %1961
        %1964 = vset.pattern.permute.xlu0 3
        %1965 = vperm.xlu0 %1964, %v1229
        %v1966 = vpop.permute.xlu0 %1965
        %1968 = vset.pattern.permute.xlu0 3
        %1969 = vperm.xlu0 %1968, %v1230
        %v1970 = vpop.permute.xlu0 %1969
        %1972 = vset.pattern.permute.xlu0 3
        %1973 = vperm.xlu0 %1972, %v1231
        %v1974 = vpop.permute.xlu0 %1973
        %1976 = vset.pattern.permute.xlu0 3
        %1977 = vperm.xlu0 %1976, %v1232
        %v1978 = vpop.permute.xlu0 %1977
        %1980 = vset.pattern.permute.xlu0 3
        %1981 = vperm.xlu0 %1980, %v1233
        %v1982 = vpop.permute.xlu0 %1981
        %1984 = vset.pattern.permute.xlu0 3
        %1985 = vperm.xlu0 %1984, %v1234
        %v1986 = vpop.permute.xlu0 %1985
        %v1988 = vmul.f32 %v1202, %v1862
        %v1989 = vmul.f32 %v1201, %v1866
        %v1990 = vmul.f32 %v1200, %v1870
        %v1991 = vmul.f32 %v1199, %v1874
        %v1992 = vmul.f32 %v1198, %v1878
        %v1993 = vmul.f32 %v1197, %v1882
        %v1994 = vmul.f32 %v1196, %v1886
        %v1995 = vmul.f32 %v1195, %v1890
        %v1996 = vmul.f32 %v1194, %v1894
        %v1997 = vmul.f32 %v1193, %v1898
        %v1998 = vmul.f32 %v1192, %v1902
        %v1999 = vmul.f32 %v1191, %v1906
        %v2000 = vmul.f32 %v1190, %v1910
        %v2001 = vmul.f32 %v1189, %v1914
        %v2002 = vmul.f32 %v1188, %v1918
        %v2003 = vmul.f32 %v1187, %v1922
        %v2004 = vmul.f32 %v1186, %v1926
        %v2005 = vmul.f32 %v1185, %v1930
        %v2006 = vmul.f32 %v1184, %v1934
        %v2007 = vmul.f32 %v1183, %v1938
        %v2008 = vmul.f32 %v1182, %v1942
        %v2009 = vmul.f32 %v1181, %v1946
        %v2010 = vmul.f32 %v1180, %v1950
        %v2011 = vmul.f32 %v1179, %v1954
        %v2012 = vmul.f32 %v1178, %v1958
        %v2013 = vmul.f32 %v1177, %v1962
        %v2014 = vmul.f32 %v1176, %v1966
        %v2015 = vmul.f32 %v1175, %v1970
        %v2016 = vmul.f32 %v1174, %v1974
        %v2017 = vmul.f32 %v1173, %v1978
        %v2018 = vmul.f32 %v1172, %v1982
        %v2019 = vmul.f32 %v1171, %v1986
        %v2020 = vpack.c.bf16 %v1989, %v1988
        %v2021 = vpack.c.bf16 %v1991, %v1990
        %v2022 = vpack.c.bf16 %v1993, %v1992
        %v2023 = vpack.c.bf16 %v1995, %v1994
        %v2024 = vpack.c.bf16 %v1997, %v1996
        %v2025 = vpack.c.bf16 %v1999, %v1998
        %v2026 = vpack.c.bf16 %v2001, %v2000
        %v2027 = vpack.c.bf16 %v2003, %v2002
        %v2028 = vpack.c.bf16 %v2005, %v2004
        %v2029 = vpack.c.bf16 %v2007, %v2006
        %v2030 = vpack.c.bf16 %v2009, %v2008
        %v2031 = vpack.c.bf16 %v2011, %v2010
        %v2032 = vpack.c.bf16 %v2013, %v2012
        %v2033 = vpack.c.bf16 %v2015, %v2014
        %v2034 = vpack.c.bf16 %v2017, %v2016
        %v2035 = vpack.c.bf16 %v2019, %v2018
        %v2036 = vpack.c.bf16 %v1105, %v1104
        %v2037 = vpack.c.bf16 %v1107, %v1106
        %v2038 = vpack.c.bf16 %v1109, %v1108
        %v2039 = vpack.c.bf16 %v1111, %v1110
        %v2040 = vpack.c.bf16 %v1113, %v1112
        %v2041 = vpack.c.bf16 %v1115, %v1114
        %v2042 = vpack.c.bf16 %v1117, %v1116
        %v2043 = vpack.c.bf16 %v1119, %v1118
        %v2044 = vpack.c.bf16 %v1121, %v1120
        %v2045 = vpack.c.bf16 %v1123, %v1122
        %v2046 = vpack.c.bf16 %v1125, %v1124
        %v2047 = vpack.c.bf16 %v1127, %v1126
        %v2048 = vpack.c.bf16 %v1129, %v1128
        %v2049 = vpack.c.bf16 %v1131, %v1130
        %v2050 = vpack.c.bf16 %v1133, %v1132
        %v2051 = vpack.c.bf16 %v1135, %v1134
        %2052 = vset.pattern.permute.xlu0 5
        %2053 = vperm.xlu0 %2052, %v1203
        %v2054 = vpop.permute.xlu0 %2053
        %2056 = vset.pattern.permute.xlu0 5
        %2057 = vperm.xlu0 %2056, %v1204
        %v2058 = vpop.permute.xlu0 %2057
        %2060 = vset.pattern.permute.xlu0 5
        %2061 = vperm.xlu0 %2060, %v1205
        %v2062 = vpop.permute.xlu0 %2061
        %2064 = vset.pattern.permute.xlu0 5
        %2065 = vperm.xlu0 %2064, %v1206
        %v2066 = vpop.permute.xlu0 %2065
        %2068 = vset.pattern.permute.xlu0 5
        %2069 = vperm.xlu0 %2068, %v1207
        %v2070 = vpop.permute.xlu0 %2069
        %2072 = vset.pattern.permute.xlu0 5
        %2073 = vperm.xlu0 %2072, %v1208
        %v2074 = vpop.permute.xlu0 %2073
        %2076 = vset.pattern.permute.xlu0 5
        %2077 = vperm.xlu0 %2076, %v1209
        %v2078 = vpop.permute.xlu0 %2077
        %2080 = vset.pattern.permute.xlu0 5
        %2081 = vperm.xlu0 %2080, %v1210
        %v2082 = vpop.permute.xlu0 %2081
        %2084 = vset.pattern.permute.xlu0 5
        %2085 = vperm.xlu0 %2084, %v1211
        %v2086 = vpop.permute.xlu0 %2085
        %2088 = vset.pattern.permute.xlu0 5
        %2089 = vperm.xlu0 %2088, %v1212
        %v2090 = vpop.permute.xlu0 %2089
        %2092 = vset.pattern.permute.xlu0 5
        %2093 = vperm.xlu0 %2092, %v1213
        %v2094 = vpop.permute.xlu0 %2093
        %2096 = vset.pattern.permute.xlu0 5
        %2097 = vperm.xlu0 %2096, %v1214
        %v2098 = vpop.permute.xlu0 %2097
        %2100 = vset.pattern.permute.xlu0 5
        %2101 = vperm.xlu0 %2100, %v1215
        %v2102 = vpop.permute.xlu0 %2101
        %2104 = vset.pattern.permute.xlu0 5
        %2105 = vperm.xlu0 %2104, %v1216
        %v2106 = vpop.permute.xlu0 %2105
        %2108 = vset.pattern.permute.xlu0 5
        %2109 = vperm.xlu0 %2108, %v1217
        %v2110 = vpop.permute.xlu0 %2109
        %2112 = vset.pattern.permute.xlu0 5
        %2113 = vperm.xlu0 %2112, %v1218
        %v2114 = vpop.permute.xlu0 %2113
        %2116 = vset.pattern.permute.xlu0 5
        %2117 = vperm.xlu0 %2116, %v1219
        %v2118 = vpop.permute.xlu0 %2117
        %2120 = vset.pattern.permute.xlu0 5
        %2121 = vperm.xlu0 %2120, %v1220
        %v2122 = vpop.permute.xlu0 %2121
        %2124 = vset.pattern.permute.xlu0 5
        %2125 = vperm.xlu0 %2124, %v1221
        %v2126 = vpop.permute.xlu0 %2125
        %2128 = vset.pattern.permute.xlu0 5
        %2129 = vperm.xlu0 %2128, %v1222
        %v2130 = vpop.permute.xlu0 %2129
        %2132 = vset.pattern.permute.xlu0 5
        %2133 = vperm.xlu0 %2132, %v1223
        %v2134 = vpop.permute.xlu0 %2133
        %2136 = vset.pattern.permute.xlu0 5
        %2137 = vperm.xlu0 %2136, %v1224
        %v2138 = vpop.permute.xlu0 %2137
        %2140 = vset.pattern.permute.xlu0 5
        %2141 = vperm.xlu0 %2140, %v1225
        %v2142 = vpop.permute.xlu0 %2141
        %2144 = vset.pattern.permute.xlu0 5
        %2145 = vperm.xlu0 %2144, %v1226
        %v2146 = vpop.permute.xlu0 %2145
        %2148 = vset.pattern.permute.xlu0 5
        %2149 = vperm.xlu0 %2148, %v1227
        %v2150 = vpop.permute.xlu0 %2149
        %2152 = vset.pattern.permute.xlu0 5
        %2153 = vperm.xlu0 %2152, %v1228
        %v2154 = vpop.permute.xlu0 %2153
        %2156 = vset.pattern.permute.xlu0 5
        %2157 = vperm.xlu0 %2156, %v1229
        %v2158 = vpop.permute.xlu0 %2157
        %2160 = vset.pattern.permute.xlu0 5
        %2161 = vperm.xlu0 %2160, %v1230
        %v2162 = vpop.permute.xlu0 %2161
        %2164 = vset.pattern.permute.xlu0 5
        %2165 = vperm.xlu0 %2164, %v1231
        %v2166 = vpop.permute.xlu0 %2165
        %2168 = vset.pattern.permute.xlu0 5
        %2169 = vperm.xlu0 %2168, %v1232
        %v2170 = vpop.permute.xlu0 %2169
        %2172 = vset.pattern.permute.xlu0 5
        %2173 = vperm.xlu0 %2172, %v1233
        %v2174 = vpop.permute.xlu0 %2173
        %2176 = vset.pattern.permute.xlu0 5
        %2177 = vperm.xlu0 %2176, %v1234
        %v2178 = vpop.permute.xlu0 %2177
        %v2180 = vmul.f32 %v1682, %v2054
        %v2181 = vmul.f32 %v1681, %v2058
        %v2182 = vmul.f32 %v1680, %v2062
        %v2183 = vmul.f32 %v1679, %v2066
        %v2184 = vmul.f32 %v1678, %v2070
        %v2185 = vmul.f32 %v1677, %v2074
        %v2186 = vmul.f32 %v1676, %v2078
        %v2187 = vmul.f32 %v1675, %v2082
        %v2188 = vmul.f32 %v1674, %v2086
        %v2189 = vmul.f32 %v1673, %v2090
        %v2190 = vmul.f32 %v1672, %v2094
        %v2191 = vmul.f32 %v1671, %v2098
        %v2192 = vmul.f32 %v1670, %v2102
        %v2193 = vmul.f32 %v1669, %v2106
        %v2194 = vmul.f32 %v1668, %v2110
        %v2195 = vmul.f32 %v1667, %v2114
        %v2196 = vmul.f32 %v1666, %v2118
        %v2197 = vmul.f32 %v1665, %v2122
        %v2198 = vmul.f32 %v1664, %v2126
        %v2199 = vmul.f32 %v1663, %v2130
        %v2200 = vmul.f32 %v1662, %v2134
        %v2201 = vmul.f32 %v1661, %v2138
        %v2202 = vmul.f32 %v1660, %v2142
        %v2203 = vmul.f32 %v1659, %v2146
        %v2204 = vmul.f32 %v1658, %v2150
        %v2205 = vmul.f32 %v1657, %v2154
        %v2206 = vmul.f32 %v1656, %v2158
        %v2207 = vmul.f32 %v1655, %v2162
        %v2208 = vmul.f32 %v1654, %v2166
        %v2209 = vmul.f32 %v1653, %v2170
        %v2210 = vmul.f32 %v1652, %v2174
        %v2211 = vmul.f32 %v1683, %v2178
        %v2212 = vpack.c.bf16 %v2181, %v2180
        %v2213 = vpack.c.bf16 %v2183, %v2182
        %v2214 = vpack.c.bf16 %v2185, %v2184
        %v2215 = vpack.c.bf16 %v2187, %v2186
        %v2216 = vpack.c.bf16 %v2189, %v2188
        %v2217 = vpack.c.bf16 %v2191, %v2190
        %v2218 = vpack.c.bf16 %v2193, %v2192
        %v2219 = vpack.c.bf16 %v2195, %v2194
        %v2220 = vpack.c.bf16 %v2197, %v2196
        %v2221 = vpack.c.bf16 %v2199, %v2198
        %v2222 = vpack.c.bf16 %v2201, %v2200
        %v2223 = vpack.c.bf16 %v2203, %v2202
        %v2224 = vpack.c.bf16 %v2205, %v2204
        %v2225 = vpack.c.bf16 %v2207, %v2206
        %v2226 = vpack.c.bf16 %v2209, %v2208
        %v2227 = vpack.c.bf16 %v2211, %v2210
        %2228 = vset.pattern.permute.xlu0 6
        %2229 = vperm.xlu0 %2228, %v1203
        %v2230 = vpop.permute.xlu0 %2229
        %2232 = vset.pattern.permute.xlu0 6
        %2233 = vperm.xlu0 %2232, %v1204
        %v2234 = vpop.permute.xlu0 %2233
        %2236 = vset.pattern.permute.xlu0 6
        %2237 = vperm.xlu0 %2236, %v1205
        %v2238 = vpop.permute.xlu0 %2237
        %2240 = vset.pattern.permute.xlu0 6
        %2241 = vperm.xlu0 %2240, %v1206
        %v2242 = vpop.permute.xlu0 %2241
        %2244 = vset.pattern.permute.xlu0 6
        %2245 = vperm.xlu0 %2244, %v1207
        %v2246 = vpop.permute.xlu0 %2245
        %2248 = vset.pattern.permute.xlu0 6
        %2249 = vperm.xlu0 %2248, %v1208
        %v2250 = vpop.permute.xlu0 %2249
        %2252 = vset.pattern.permute.xlu0 6
        %2253 = vperm.xlu0 %2252, %v1209
        %v2254 = vpop.permute.xlu0 %2253
        %2256 = vset.pattern.permute.xlu0 6
        %2257 = vperm.xlu0 %2256, %v1210
        %v2258 = vpop.permute.xlu0 %2257
        %2260 = vset.pattern.permute.xlu0 6
        %2261 = vperm.xlu0 %2260, %v1211
        %v2262 = vpop.permute.xlu0 %2261
        %2264 = vset.pattern.permute.xlu0 6
        %2265 = vperm.xlu0 %2264, %v1212
        %v2266 = vpop.permute.xlu0 %2265
        %2268 = vset.pattern.permute.xlu0 6
        %2269 = vperm.xlu0 %2268, %v1213
        %v2270 = vpop.permute.xlu0 %2269
        %2272 = vset.pattern.permute.xlu0 6
        %2273 = vperm.xlu0 %2272, %v1214
        %v2274 = vpop.permute.xlu0 %2273
        %2276 = vset.pattern.permute.xlu0 6
        %2277 = vperm.xlu0 %2276, %v1215
        %v2278 = vpop.permute.xlu0 %2277
        %2280 = vset.pattern.permute.xlu0 6
        %2281 = vperm.xlu0 %2280, %v1216
        %v2282 = vpop.permute.xlu0 %2281
        %2284 = vset.pattern.permute.xlu0 6
        %2285 = vperm.xlu0 %2284, %v1217
        %v2286 = vpop.permute.xlu0 %2285
        %2288 = vset.pattern.permute.xlu0 6
        %2289 = vperm.xlu0 %2288, %v1218
        %v2290 = vpop.permute.xlu0 %2289
        %2292 = vset.pattern.permute.xlu0 6
        %2293 = vperm.xlu0 %2292, %v1219
        %v2294 = vpop.permute.xlu0 %2293
        %2296 = vset.pattern.permute.xlu0 6
        %2297 = vperm.xlu0 %2296, %v1220
        %v2298 = vpop.permute.xlu0 %2297
        %2300 = vset.pattern.permute.xlu0 6
        %2301 = vperm.xlu0 %2300, %v1221
        %v2302 = vpop.permute.xlu0 %2301
        %2304 = vset.pattern.permute.xlu0 6
        %2305 = vperm.xlu0 %2304, %v1222
        %v2306 = vpop.permute.xlu0 %2305
        %2308 = vset.pattern.permute.xlu0 6
        %2309 = vperm.xlu0 %2308, %v1223
        %v2310 = vpop.permute.xlu0 %2309
        %2312 = vset.pattern.permute.xlu0 6
        %2313 = vperm.xlu0 %2312, %v1224
        %v2314 = vpop.permute.xlu0 %2313
        %2316 = vset.pattern.permute.xlu0 6
        %2317 = vperm.xlu0 %2316, %v1225
        %v2318 = vpop.permute.xlu0 %2317
        %2320 = vset.pattern.permute.xlu0 6
        %2321 = vperm.xlu0 %2320, %v1226
        %v2322 = vpop.permute.xlu0 %2321
        %2324 = vset.pattern.permute.xlu0 6
        %2325 = vperm.xlu0 %2324, %v1227
        %v2326 = vpop.permute.xlu0 %2325
        %2328 = vset.pattern.permute.xlu0 6
        %2329 = vperm.xlu0 %2328, %v1228
        %v2330 = vpop.permute.xlu0 %2329
        %2332 = vset.pattern.permute.xlu0 6
        %2333 = vperm.xlu0 %2332, %v1229
        %v2334 = vpop.permute.xlu0 %2333
        %2336 = vset.pattern.permute.xlu0 6
        %2337 = vperm.xlu0 %2336, %v1230
        %v2338 = vpop.permute.xlu0 %2337
        %2340 = vset.pattern.permute.xlu0 6
        %2341 = vperm.xlu0 %2340, %v1231
        %v2342 = vpop.permute.xlu0 %2341
        %2344 = vset.pattern.permute.xlu0 6
        %2345 = vperm.xlu0 %2344, %v1232
        %v2346 = vpop.permute.xlu0 %2345
        %2348 = vset.pattern.permute.xlu0 6
        %2349 = vperm.xlu0 %2348, %v1233
        %v2350 = vpop.permute.xlu0 %2349
        %2352 = vset.pattern.permute.xlu0 6
        %2353 = vperm.xlu0 %2352, %v1234
        %v2354 = vpop.permute.xlu0 %2353
        %v2356 = vmul.f32 %v1201, %v2230
        %v2357 = vmul.f32 %v1200, %v2234
        %v2358 = vmul.f32 %v1199, %v2238
        %v2359 = vmul.f32 %v1198, %v2242
        %v2360 = vmul.f32 %v1197, %v2246
        %v2361 = vmul.f32 %v1196, %v2250
        %v2362 = vmul.f32 %v1195, %v2254
        %v2363 = vmul.f32 %v1194, %v2258
        %v2364 = vmul.f32 %v1193, %v2262
        %v2365 = vmul.f32 %v1192, %v2266
        %v2366 = vmul.f32 %v1191, %v2270
        %v2367 = vmul.f32 %v1190, %v2274
        %v2368 = vmul.f32 %v1189, %v2278
        %v2369 = vmul.f32 %v1188, %v2282
        %v2370 = vmul.f32 %v1187, %v2286
        %v2371 = vmul.f32 %v1186, %v2290
        %v2372 = vmul.f32 %v1185, %v2294
        %v2373 = vmul.f32 %v1184, %v2298
        %v2374 = vmul.f32 %v1183, %v2302
        %v2375 = vmul.f32 %v1182, %v2306
        %v2376 = vmul.f32 %v1181, %v2310
        %v2377 = vmul.f32 %v1180, %v2314
        %v2378 = vmul.f32 %v1179, %v2318
        %v2379 = vmul.f32 %v1178, %v2322
        %v2380 = vmul.f32 %v1177, %v2326
        %v2381 = vmul.f32 %v1176, %v2330
        %v2382 = vmul.f32 %v1175, %v2334
        %v2383 = vmul.f32 %v1174, %v2338
        %v2384 = vmul.f32 %v1173, %v2342
        %v2385 = vmul.f32 %v1172, %v2346
        %v2386 = vmul.f32 %v1171, %v2350
        %v2387 = vmul.f32 %v1202, %v2354
        %v2388 = vpack.c.bf16 %v2357, %v2356
        %v2389 = vpack.c.bf16 %v2359, %v2358
        %v2390 = vpack.c.bf16 %v2361, %v2360
        %v2391 = vpack.c.bf16 %v2363, %v2362
        %v2392 = vpack.c.bf16 %v2365, %v2364
        %v2393 = vpack.c.bf16 %v2367, %v2366
        %v2394 = vpack.c.bf16 %v2369, %v2368
        %v2395 = vpack.c.bf16 %v2371, %v2370
        %v2396 = vpack.c.bf16 %v2373, %v2372
        %v2397 = vpack.c.bf16 %v2375, %v2374
        %v2398 = vpack.c.bf16 %v2377, %v2376
        %v2399 = vpack.c.bf16 %v2379, %v2378
        %v2400 = vpack.c.bf16 %v2381, %v2380
        %v2401 = vpack.c.bf16 %v2383, %v2382
        %v2402 = vpack.c.bf16 %v2385, %v2384
        %v2403 = vpack.c.bf16 %v2387, %v2386
        %2404 = vset.pattern.permute.xlu0 7
        %2405 = vperm.xlu0 %2404, %v1203
        %v2406 = vpop.permute.xlu0 %2405
        %2408 = vset.pattern.permute.xlu0 7
        %2409 = vperm.xlu0 %2408, %v1204
        %v2410 = vpop.permute.xlu0 %2409
        %2412 = vset.pattern.permute.xlu0 7
        %2413 = vperm.xlu0 %2412, %v1205
        %v2414 = vpop.permute.xlu0 %2413
        %2416 = vset.pattern.permute.xlu0 7
        %2417 = vperm.xlu0 %2416, %v1206
        %v2418 = vpop.permute.xlu0 %2417
        %2420 = vset.pattern.permute.xlu0 7
        %2421 = vperm.xlu0 %2420, %v1207
        %v2422 = vpop.permute.xlu0 %2421
        %2424 = vset.pattern.permute.xlu0 7
        %2425 = vperm.xlu0 %2424, %v1208
        %v2426 = vpop.permute.xlu0 %2425
        %2428 = vset.pattern.permute.xlu0 7
        %2429 = vperm.xlu0 %2428, %v1209
        %v2430 = vpop.permute.xlu0 %2429
        %2432 = vset.pattern.permute.xlu0 7
        %2433 = vperm.xlu0 %2432, %v1210
        %v2434 = vpop.permute.xlu0 %2433
        %2436 = vset.pattern.permute.xlu0 7
        %2437 = vperm.xlu0 %2436, %v1211
        %v2438 = vpop.permute.xlu0 %2437
        %2440 = vset.pattern.permute.xlu0 7
        %2441 = vperm.xlu0 %2440, %v1212
        %v2442 = vpop.permute.xlu0 %2441
        %2444 = vset.pattern.permute.xlu0 7
        %2445 = vperm.xlu0 %2444, %v1213
        %v2446 = vpop.permute.xlu0 %2445
        %2448 = vset.pattern.permute.xlu0 7
        %2449 = vperm.xlu0 %2448, %v1214
        %v2450 = vpop.permute.xlu0 %2449
        %2452 = vset.pattern.permute.xlu0 7
        %2453 = vperm.xlu0 %2452, %v1215
        %v2454 = vpop.permute.xlu0 %2453
        %2456 = vset.pattern.permute.xlu0 7
        %2457 = vperm.xlu0 %2456, %v1216
        %v2458 = vpop.permute.xlu0 %2457
        %2460 = vset.pattern.permute.xlu0 7
        %2461 = vperm.xlu0 %2460, %v1217
        %v2462 = vpop.permute.xlu0 %2461
        %2464 = vset.pattern.permute.xlu0 7
        %2465 = vperm.xlu0 %2464, %v1218
        %v2466 = vpop.permute.xlu0 %2465
        %2468 = vset.pattern.permute.xlu0 7
        %2469 = vperm.xlu0 %2468, %v1219
        %v2470 = vpop.permute.xlu0 %2469
        %2472 = vset.pattern.permute.xlu0 7
        %2473 = vperm.xlu0 %2472, %v1220
        %v2474 = vpop.permute.xlu0 %2473
        %2476 = vset.pattern.permute.xlu0 7
        %2477 = vperm.xlu0 %2476, %v1221
        %v2478 = vpop.permute.xlu0 %2477
        %2480 = vset.pattern.permute.xlu0 7
        %2481 = vperm.xlu0 %2480, %v1222
        %v2482 = vpop.permute.xlu0 %2481
        %2484 = vset.pattern.permute.xlu0 7
        %2485 = vperm.xlu0 %2484, %v1223
        %v2486 = vpop.permute.xlu0 %2485
        %2488 = vset.pattern.permute.xlu0 7
        %2489 = vperm.xlu0 %2488, %v1224
        %v2490 = vpop.permute.xlu0 %2489
        %2492 = vset.pattern.permute.xlu0 7
        %2493 = vperm.xlu0 %2492, %v1225
        %v2494 = vpop.permute.xlu0 %2493
        %2496 = vset.pattern.permute.xlu0 7
        %2497 = vperm.xlu0 %2496, %v1226
        %v2498 = vpop.permute.xlu0 %2497
        %2500 = vset.pattern.permute.xlu0 7
        %2501 = vperm.xlu0 %2500, %v1227
        %v2502 = vpop.permute.xlu0 %2501
        %2504 = vset.pattern.permute.xlu0 7
        %2505 = vperm.xlu0 %2504, %v1228
        %v2506 = vpop.permute.xlu0 %2505
        %2508 = vset.pattern.permute.xlu0 7
        %2509 = vperm.xlu0 %2508, %v1229
        %v2510 = vpop.permute.xlu0 %2509
        %2512 = vset.pattern.permute.xlu0 7
        %2513 = vperm.xlu0 %2512, %v1230
        %v2514 = vpop.permute.xlu0 %2513
        %2516 = vset.pattern.permute.xlu0 7
        %2517 = vperm.xlu0 %2516, %v1231
        %v2518 = vpop.permute.xlu0 %2517
        %2520 = vset.pattern.permute.xlu0 7
        %2521 = vperm.xlu0 %2520, %v1232
        %v2522 = vpop.permute.xlu0 %2521
        %2524 = vset.pattern.permute.xlu0 7
        %2525 = vperm.xlu0 %2524, %v1233
        %v2526 = vpop.permute.xlu0 %2525
        %2528 = vset.pattern.permute.xlu0 7
        %2529 = vperm.xlu0 %2528, %v1234
        %v2530 = vpop.permute.xlu0 %2529
        %v2532 = vmul.f32 %v1105, %v2406
        %v2533 = vmul.f32 %v1106, %v2410
        %v2534 = vmul.f32 %v1107, %v2414
        %v2535 = vmul.f32 %v1108, %v2418
        %v2536 = vmul.f32 %v1109, %v2422
        %v2537 = vmul.f32 %v1110, %v2426
        %v2538 = vmul.f32 %v1111, %v2430
        %v2539 = vmul.f32 %v1112, %v2434
        %v2540 = vmul.f32 %v1113, %v2438
        %v2541 = vmul.f32 %v1114, %v2442
        %v2542 = vmul.f32 %v1115, %v2446
        %v2543 = vmul.f32 %v1116, %v2450
        %v2544 = vmul.f32 %v1117, %v2454
        %v2545 = vmul.f32 %v1118, %v2458
        %v2546 = vmul.f32 %v1119, %v2462
        %v2547 = vmul.f32 %v1120, %v2466
        %v2548 = vmul.f32 %v1121, %v2470
        %v2549 = vmul.f32 %v1122, %v2474
        %v2550 = vmul.f32 %v1123, %v2478
        %v2551 = vmul.f32 %v1124, %v2482
        %v2552 = vmul.f32 %v1125, %v2486
        %v2553 = vmul.f32 %v1126, %v2490
        %v2554 = vmul.f32 %v1127, %v2494
        %v2555 = vmul.f32 %v1128, %v2498
        %v2556 = vmul.f32 %v1129, %v2502
        %v2557 = vmul.f32 %v1130, %v2506
        %v2558 = vmul.f32 %v1131, %v2510
        %v2559 = vmul.f32 %v1132, %v2514
        %v2560 = vmul.f32 %v1133, %v2518
        %v2561 = vmul.f32 %v1134, %v2522
        %v2562 = vmul.f32 %v1135, %v2526
        %v2563 = vmul.f32 %v1104, %v2530
        %v2564 = vpack.c.bf16 %v2533, %v2532
        %v2565 = vpack.c.bf16 %v2535, %v2534
        %v2566 = vpack.c.bf16 %v2537, %v2536
        %v2567 = vpack.c.bf16 %v2539, %v2538
        %v2568 = vpack.c.bf16 %v2541, %v2540
        %v2569 = vpack.c.bf16 %v2543, %v2542
        %v2570 = vpack.c.bf16 %v2545, %v2544
        %v2571 = vpack.c.bf16 %v2547, %v2546
        %v2572 = vpack.c.bf16 %v2549, %v2548
        %v2573 = vpack.c.bf16 %v2551, %v2550
        %v2574 = vpack.c.bf16 %v2553, %v2552
        %v2575 = vpack.c.bf16 %v2555, %v2554
        %v2576 = vpack.c.bf16 %v2557, %v2556
        %v2577 = vpack.c.bf16 %v2559, %v2558
        %v2578 = vpack.c.bf16 %v2561, %v2560
        %v2579 = vpack.c.bf16 %v2563, %v2562
        %2580 = vset.pattern.permute.xlu0 8
        %2581 = vperm.xlu0 %2580, %v1203
        %v2582 = vpop.permute.xlu0 %2581
        %2584 = vset.pattern.permute.xlu0 8
        %2585 = vperm.xlu0 %2584, %v1204
        %v2586 = vpop.permute.xlu0 %2585
        %2588 = vset.pattern.permute.xlu0 8
        %2589 = vperm.xlu0 %2588, %v1205
        %v2590 = vpop.permute.xlu0 %2589
        %2592 = vset.pattern.permute.xlu0 8
        %2593 = vperm.xlu0 %2592, %v1206
        %v2594 = vpop.permute.xlu0 %2593
        %2596 = vset.pattern.permute.xlu0 8
        %2597 = vperm.xlu0 %2596, %v1207
        %v2598 = vpop.permute.xlu0 %2597
        %2600 = vset.pattern.permute.xlu0 8
        %2601 = vperm.xlu0 %2600, %v1208
        %v2602 = vpop.permute.xlu0 %2601
        %2604 = vset.pattern.permute.xlu0 8
        %2605 = vperm.xlu0 %2604, %v1209
        %v2606 = vpop.permute.xlu0 %2605
        %2608 = vset.pattern.permute.xlu0 8
        %2609 = vperm.xlu0 %2608, %v1210
        %v2610 = vpop.permute.xlu0 %2609
        %2612 = vset.pattern.permute.xlu0 8
        %2613 = vperm.xlu0 %2612, %v1211
        %v2614 = vpop.permute.xlu0 %2613
        %2616 = vset.pattern.permute.xlu0 8
        %2617 = vperm.xlu0 %2616, %v1212
        %v2618 = vpop.permute.xlu0 %2617
        %2620 = vset.pattern.permute.xlu0 8
        %2621 = vperm.xlu0 %2620, %v1213
        %v2622 = vpop.permute.xlu0 %2621
        %2624 = vset.pattern.permute.xlu0 8
        %2625 = vperm.xlu0 %2624, %v1214
        %v2626 = vpop.permute.xlu0 %2625
        %2628 = vset.pattern.permute.xlu0 8
        %2629 = vperm.xlu0 %2628, %v1215
        %v2630 = vpop.permute.xlu0 %2629
        %2632 = vset.pattern.permute.xlu0 8
        %2633 = vperm.xlu0 %2632, %v1216
        %v2634 = vpop.permute.xlu0 %2633
        %2636 = vset.pattern.permute.xlu0 8
        %2637 = vperm.xlu0 %2636, %v1217
        %v2638 = vpop.permute.xlu0 %2637
        %2640 = vset.pattern.permute.xlu0 8
        %2641 = vperm.xlu0 %2640, %v1218
        %v2642 = vpop.permute.xlu0 %2641
        %2644 = vset.pattern.permute.xlu0 8
        %2645 = vperm.xlu0 %2644, %v1219
        %v2646 = vpop.permute.xlu0 %2645
        %2648 = vset.pattern.permute.xlu0 8
        %2649 = vperm.xlu0 %2648, %v1220
        %v2650 = vpop.permute.xlu0 %2649
        %2652 = vset.pattern.permute.xlu0 8
        %2653 = vperm.xlu0 %2652, %v1221
        %v2654 = vpop.permute.xlu0 %2653
        %2656 = vset.pattern.permute.xlu0 8
        %2657 = vperm.xlu0 %2656, %v1222
        %v2658 = vpop.permute.xlu0 %2657
        %2660 = vset.pattern.permute.xlu0 8
        %2661 = vperm.xlu0 %2660, %v1223
        %v2662 = vpop.permute.xlu0 %2661
        %2664 = vset.pattern.permute.xlu0 8
        %2665 = vperm.xlu0 %2664, %v1224
        %v2666 = vpop.permute.xlu0 %2665
        %2668 = vset.pattern.permute.xlu0 8
        %2669 = vperm.xlu0 %2668, %v1225
        %v2670 = vpop.permute.xlu0 %2669
        %2672 = vset.pattern.permute.xlu0 8
        %2673 = vperm.xlu0 %2672, %v1226
        %v2674 = vpop.permute.xlu0 %2673
        %2676 = vset.pattern.permute.xlu0 8
        %2677 = vperm.xlu0 %2676, %v1227
        %v2678 = vpop.permute.xlu0 %2677
        %2680 = vset.pattern.permute.xlu0 8
        %2681 = vperm.xlu0 %2680, %v1228
        %v2682 = vpop.permute.xlu0 %2681
        %2684 = vset.pattern.permute.xlu0 8
        %2685 = vperm.xlu0 %2684, %v1229
        %v2686 = vpop.permute.xlu0 %2685
        %2688 = vset.pattern.permute.xlu0 8
        %2689 = vperm.xlu0 %2688, %v1230
        %v2690 = vpop.permute.xlu0 %2689
        %2692 = vset.pattern.permute.xlu0 8
        %2693 = vperm.xlu0 %2692, %v1231
        %v2694 = vpop.permute.xlu0 %2693
        %2696 = vset.pattern.permute.xlu0 8
        %2697 = vperm.xlu0 %2696, %v1232
        %v2698 = vpop.permute.xlu0 %2697
        %2700 = vset.pattern.permute.xlu0 8
        %2701 = vperm.xlu0 %2700, %v1233
        %v2702 = vpop.permute.xlu0 %2701
        %2704 = vset.pattern.permute.xlu0 8
        %2705 = vperm.xlu0 %2704, %v1234
        %v2706 = vpop.permute.xlu0 %2705
        %v2708 = vmul.f32 %v1681, %v2582
        %v2709 = vmul.f32 %v1680, %v2586
        %v2710 = vmul.f32 %v1679, %v2590
        %v2711 = vmul.f32 %v1678, %v2594
        %v2712 = vmul.f32 %v1677, %v2598
        %v2713 = vmul.f32 %v1676, %v2602
        %v2714 = vmul.f32 %v1675, %v2606
        %v2715 = vmul.f32 %v1674, %v2610
        %v2716 = vmul.f32 %v1673, %v2614
        %v2717 = vmul.f32 %v1672, %v2618
        %v2718 = vmul.f32 %v1671, %v2622
        %v2719 = vmul.f32 %v1670, %v2626
        %v2720 = vmul.f32 %v1669, %v2630
        %v2721 = vmul.f32 %v1668, %v2634
        %v2722 = vmul.f32 %v1667, %v2638
        %v2723 = vmul.f32 %v1666, %v2642
        %v2724 = vmul.f32 %v1665, %v2646
        %v2725 = vmul.f32 %v1664, %v2650
        %v2726 = vmul.f32 %v1663, %v2654
        %v2727 = vmul.f32 %v1662, %v2658
        %v2728 = vmul.f32 %v1661, %v2662
        %v2729 = vmul.f32 %v1660, %v2666
        %v2730 = vmul.f32 %v1659, %v2670
        %v2731 = vmul.f32 %v1658, %v2674
        %v2732 = vmul.f32 %v1657, %v2678
        %v2733 = vmul.f32 %v1656, %v2682
        %v2734 = vmul.f32 %v1655, %v2686
        %v2735 = vmul.f32 %v1654, %v2690
        %v2736 = vmul.f32 %v1653, %v2694
        %v2737 = vmul.f32 %v1652, %v2698
        %v2738 = vmul.f32 %v1683, %v2702
        %v2739 = vmul.f32 %v1682, %v2706
        %v2740 = vpack.c.bf16 %v2709, %v2708
        %v2741 = vpack.c.bf16 %v2711, %v2710
        %v2742 = vpack.c.bf16 %v2713, %v2712
        %v2743 = vpack.c.bf16 %v2715, %v2714
        %v2744 = vpack.c.bf16 %v2717, %v2716
        %v2745 = vpack.c.bf16 %v2719, %v2718
        %v2746 = vpack.c.bf16 %v2721, %v2720
        %v2747 = vpack.c.bf16 %v2723, %v2722
        %v2748 = vpack.c.bf16 %v2725, %v2724
        %v2749 = vpack.c.bf16 %v2727, %v2726
        %v2750 = vpack.c.bf16 %v2729, %v2728
        %v2751 = vpack.c.bf16 %v2731, %v2730
        %v2752 = vpack.c.bf16 %v2733, %v2732
        %v2753 = vpack.c.bf16 %v2735, %v2734
        %v2754 = vpack.c.bf16 %v2737, %v2736
        %v2755 = vpack.c.bf16 %v2739, %v2738
        %2772 = vrot.lane.b32.xlu0 %v1603, 32
        %v2773 = vpop.permute.xlu0 %2772
        %2774 = vrot.lane.b32.xlu0 %v1604, 32
        %v2775 = vpop.permute.xlu0 %2774
        %2776 = vrot.lane.b32.xlu0 %v1605, 32
        %v2777 = vpop.permute.xlu0 %2776
        %2778 = vrot.lane.b32.xlu0 %v1606, 32
        %v2779 = vpop.permute.xlu0 %2778
        %2780 = vrot.lane.b32.xlu0 %v1607, 32
        %v2781 = vpop.permute.xlu0 %2780
        %2782 = vrot.lane.b32.xlu0 %v1608, 32
        %v2783 = vpop.permute.xlu0 %2782
        %2784 = vrot.lane.b32.xlu0 %v1609, 32
        %v2785 = vpop.permute.xlu0 %2784
        %2786 = vrot.lane.b32.xlu0 %v1610, 32
        %v2787 = vpop.permute.xlu0 %2786
        %2788 = vrot.lane.b32.xlu0 %v1611, 32
        %v2789 = vpop.permute.xlu0 %2788
        %2790 = vrot.lane.b32.xlu0 %v1612, 32
        %v2791 = vpop.permute.xlu0 %2790
        %2792 = vrot.lane.b32.xlu0 %v1613, 32
        %v2793 = vpop.permute.xlu0 %2792
        %2794 = vrot.lane.b32.xlu0 %v1614, 32
        %v2795 = vpop.permute.xlu0 %2794
        %2796 = vrot.lane.b32.xlu0 %v1615, 32
        %v2797 = vpop.permute.xlu0 %2796
        %2798 = vrot.lane.b32.xlu0 %v1616, 32
        %v2799 = vpop.permute.xlu0 %2798
        %2800 = vrot.lane.b32.xlu0 %v1617, 32
        %v2801 = vpop.permute.xlu0 %2800
        %2802 = vrot.lane.b32.xlu0 %v1618, 32
        %v2803 = vpop.permute.xlu0 %2802
        %2820 = vrot.lane.b32.xlu0 %v1844, 64
        %v2821 = vpop.permute.xlu0 %2820
        %2822 = vrot.lane.b32.xlu0 %v1845, 64
        %v2823 = vpop.permute.xlu0 %2822
        %2824 = vrot.lane.b32.xlu0 %v1846, 64
        %v2825 = vpop.permute.xlu0 %2824
        %2826 = vrot.lane.b32.xlu0 %v1847, 64
        %v2827 = vpop.permute.xlu0 %2826
        %2828 = vrot.lane.b32.xlu0 %v1848, 64
        %v2829 = vpop.permute.xlu0 %2828
        %2830 = vrot.lane.b32.xlu0 %v1849, 64
        %v2831 = vpop.permute.xlu0 %2830
        %2832 = vrot.lane.b32.xlu0 %v1850, 64
        %v2833 = vpop.permute.xlu0 %2832
        %2834 = vrot.lane.b32.xlu0 %v1851, 64
        %v2835 = vpop.permute.xlu0 %2834
        %2836 = vrot.lane.b32.xlu0 %v1852, 64
        %v2837 = vpop.permute.xlu0 %2836
        %2838 = vrot.lane.b32.xlu0 %v1853, 64
        %v2839 = vpop.permute.xlu0 %2838
        %2840 = vrot.lane.b32.xlu0 %v1854, 64
        %v2841 = vpop.permute.xlu0 %2840
        %2842 = vrot.lane.b32.xlu0 %v1855, 64
        %v2843 = vpop.permute.xlu0 %2842
        %2844 = vrot.lane.b32.xlu0 %v1856, 64
        %v2845 = vpop.permute.xlu0 %2844
        %2846 = vrot.lane.b32.xlu0 %v1857, 64
        %v2847 = vpop.permute.xlu0 %2846
        %2848 = vrot.lane.b32.xlu0 %v1858, 64
        %v2849 = vpop.permute.xlu0 %2848
        %2850 = vrot.lane.b32.xlu0 %v1859, 64
        %v2851 = vpop.permute.xlu0 %2850
        %2868 = vrot.lane.b32.xlu0 %v2020, 96
        %v2869 = vpop.permute.xlu0 %2868
        %2870 = vrot.lane.b32.xlu0 %v2021, 96
        %v2871 = vpop.permute.xlu0 %2870
        %2872 = vrot.lane.b32.xlu0 %v2022, 96
        %v2873 = vpop.permute.xlu0 %2872
        %2874 = vrot.lane.b32.xlu0 %v2023, 96
        %v2875 = vpop.permute.xlu0 %2874
        %2876 = vrot.lane.b32.xlu0 %v2024, 96
        %v2877 = vpop.permute.xlu0 %2876
        %2878 = vrot.lane.b32.xlu0 %v2025, 96
        %v2879 = vpop.permute.xlu0 %2878
        %2880 = vrot.lane.b32.xlu0 %v2026, 96
        %v2881 = vpop.permute.xlu0 %2880
        %2882 = vrot.lane.b32.xlu0 %v2027, 96
        %v2883 = vpop.permute.xlu0 %2882
        %2884 = vrot.lane.b32.xlu0 %v2028, 96
        %v2885 = vpop.permute.xlu0 %2884
        %2886 = vrot.lane.b32.xlu0 %v2029, 96
        %v2887 = vpop.permute.xlu0 %2886
        %2888 = vrot.lane.b32.xlu0 %v2030, 96
        %v2889 = vpop.permute.xlu0 %2888
        %2890 = vrot.lane.b32.xlu0 %v2031, 96
        %v2891 = vpop.permute.xlu0 %2890
        %2892 = vrot.lane.b32.xlu0 %v2032, 96
        %v2893 = vpop.permute.xlu0 %2892
        %2894 = vrot.lane.b32.xlu0 %v2033, 96
        %v2895 = vpop.permute.xlu0 %2894
        %2896 = vrot.lane.b32.xlu0 %v2034, 96
        %v2897 = vpop.permute.xlu0 %2896
        %2898 = vrot.lane.b32.xlu0 %v2035, 96
        %v2899 = vpop.permute.xlu0 %2898
        %2916 = vrot.lane.b32.xlu0 %v2212, 32
        %v2917 = vpop.permute.xlu0 %2916
        %2918 = vrot.lane.b32.xlu0 %v2213, 32
        %v2919 = vpop.permute.xlu0 %2918
        %2920 = vrot.lane.b32.xlu0 %v2214, 32
        %v2921 = vpop.permute.xlu0 %2920
        %2922 = vrot.lane.b32.xlu0 %v2215, 32
        %v2923 = vpop.permute.xlu0 %2922
        %2924 = vrot.lane.b32.xlu0 %v2216, 32
        %v2925 = vpop.permute.xlu0 %2924
        %2926 = vrot.lane.b32.xlu0 %v2217, 32
        %v2927 = vpop.permute.xlu0 %2926
        %2928 = vrot.lane.b32.xlu0 %v2218, 32
        %v2929 = vpop.permute.xlu0 %2928
        %2930 = vrot.lane.b32.xlu0 %v2219, 32
        %v2931 = vpop.permute.xlu0 %2930
        %2932 = vrot.lane.b32.xlu0 %v2220, 32
        %v2933 = vpop.permute.xlu0 %2932
        %2934 = vrot.lane.b32.xlu0 %v2221, 32
        %v2935 = vpop.permute.xlu0 %2934
        %2936 = vrot.lane.b32.xlu0 %v2222, 32
        %v2937 = vpop.permute.xlu0 %2936
        %2938 = vrot.lane.b32.xlu0 %v2223, 32
        %v2939 = vpop.permute.xlu0 %2938
        %2940 = vrot.lane.b32.xlu0 %v2224, 32
        %v2941 = vpop.permute.xlu0 %2940
        %2942 = vrot.lane.b32.xlu0 %v2225, 32
        %v2943 = vpop.permute.xlu0 %2942
        %2944 = vrot.lane.b32.xlu0 %v2226, 32
        %v2945 = vpop.permute.xlu0 %2944
        %2946 = vrot.lane.b32.xlu0 %v2227, 32
        %v2947 = vpop.permute.xlu0 %2946
        %2964 = vrot.lane.b32.xlu0 %v2388, 64
        %v2965 = vpop.permute.xlu0 %2964
        %2966 = vrot.lane.b32.xlu0 %v2389, 64
        %v2967 = vpop.permute.xlu0 %2966
        %2968 = vrot.lane.b32.xlu0 %v2390, 64
        %v2969 = vpop.permute.xlu0 %2968
        %2970 = vrot.lane.b32.xlu0 %v2391, 64
        %v2971 = vpop.permute.xlu0 %2970
        %2972 = vrot.lane.b32.xlu0 %v2392, 64
        %v2973 = vpop.permute.xlu0 %2972
        %2974 = vrot.lane.b32.xlu0 %v2393, 64
        %v2975 = vpop.permute.xlu0 %2974
        %2976 = vrot.lane.b32.xlu0 %v2394, 64
        %v2977 = vpop.permute.xlu0 %2976
        %2978 = vrot.lane.b32.xlu0 %v2395, 64
        %v2979 = vpop.permute.xlu0 %2978
        %2980 = vrot.lane.b32.xlu0 %v2396, 64
        %v2981 = vpop.permute.xlu0 %2980
        %2982 = vrot.lane.b32.xlu0 %v2397, 64
        %v2983 = vpop.permute.xlu0 %2982
        %2984 = vrot.lane.b32.xlu0 %v2398, 64
        %v2985 = vpop.permute.xlu0 %2984
        %2986 = vrot.lane.b32.xlu0 %v2399, 64
        %v2987 = vpop.permute.xlu0 %2986
        %2988 = vrot.lane.b32.xlu0 %v2400, 64
        %v2989 = vpop.permute.xlu0 %2988
        %2990 = vrot.lane.b32.xlu0 %v2401, 64
        %v2991 = vpop.permute.xlu0 %2990
        %2992 = vrot.lane.b32.xlu0 %v2402, 64
        %v2993 = vpop.permute.xlu0 %2992
        %2994 = vrot.lane.b32.xlu0 %v2403, 64
        %v2995 = vpop.permute.xlu0 %2994
        %3012 = vrot.lane.b32.xlu0 %v2564, 96
        %v3013 = vpop.permute.xlu0 %3012
        %3014 = vrot.lane.b32.xlu0 %v2565, 96
        %v3015 = vpop.permute.xlu0 %3014
        %3016 = vrot.lane.b32.xlu0 %v2566, 96
        %v3017 = vpop.permute.xlu0 %3016
        %3018 = vrot.lane.b32.xlu0 %v2567, 96
        %v3019 = vpop.permute.xlu0 %3018
        %3020 = vrot.lane.b32.xlu0 %v2568, 96
        %v3021 = vpop.permute.xlu0 %3020
        %3022 = vrot.lane.b32.xlu0 %v2569, 96
        %v3023 = vpop.permute.xlu0 %3022
        %3024 = vrot.lane.b32.xlu0 %v2570, 96
        %v3025 = vpop.permute.xlu0 %3024
        %3026 = vrot.lane.b32.xlu0 %v2571, 96
        %v3027 = vpop.permute.xlu0 %3026
        %3028 = vrot.lane.b32.xlu0 %v2572, 96
        %v3029 = vpop.permute.xlu0 %3028
        %3030 = vrot.lane.b32.xlu0 %v2573, 96
        %v3031 = vpop.permute.xlu0 %3030
        %3032 = vrot.lane.b32.xlu0 %v2574, 96
        %v3033 = vpop.permute.xlu0 %3032
        %3034 = vrot.lane.b32.xlu0 %v2575, 96
        %v3035 = vpop.permute.xlu0 %3034
        %3036 = vrot.lane.b32.xlu0 %v2576, 96
        %v3037 = vpop.permute.xlu0 %3036
        %3038 = vrot.lane.b32.xlu0 %v2577, 96
        %v3039 = vpop.permute.xlu0 %3038
        %3040 = vrot.lane.b32.xlu0 %v2578, 96
        %v3041 = vpop.permute.xlu0 %3040
        %3042 = vrot.lane.b32.xlu0 %v2579, 96
        %v3043 = vpop.permute.xlu0 %3042
        %v3046 = vsel %vm600, %v1427, %v2773
        %v3049 = vsel %vm600, %v1428, %v2775
        %v3052 = vsel %vm600, %v1429, %v2777
        %v3055 = vsel %vm600, %v1430, %v2779
        %v3058 = vsel %vm600, %v1431, %v2781
        %v3061 = vsel %vm600, %v1432, %v2783
        %v3064 = vsel %vm600, %v1433, %v2785
        %v3067 = vsel %vm600, %v1434, %v2787
        %v3070 = vsel %vm600, %v1435, %v2789
        %v3073 = vsel %vm600, %v1436, %v2791
        %v3076 = vsel %vm600, %v1437, %v2793
        %v3079 = vsel %vm600, %v1438, %v2795
        %v3082 = vsel %vm600, %v1439, %v2797
        %v3085 = vsel %vm600, %v1440, %v2799
        %v3088 = vsel %vm600, %v1441, %v2801
        %v3091 = vsel %vm600, %v1442, %v2803
        %vm3092 = vcmask 523264
        %v3094 = vsel %vm3092, %v3046, %v2821
        %v3096 = vsel %vm3092, %v3049, %v2823
        %v3098 = vsel %vm3092, %v3052, %v2825
        %v3100 = vsel %vm3092, %v3055, %v2827
        %v3102 = vsel %vm3092, %v3058, %v2829
        %v3104 = vsel %vm3092, %v3061, %v2831
        %v3106 = vsel %vm3092, %v3064, %v2833
        %v3108 = vsel %vm3092, %v3067, %v2835
        %v3110 = vsel %vm3092, %v3070, %v2837
        %v3112 = vsel %vm3092, %v3073, %v2839
        %v3114 = vsel %vm3092, %v3076, %v2841
        %v3116 = vsel %vm3092, %v3079, %v2843
        %v3118 = vsel %vm3092, %v3082, %v2845
        %v3120 = vsel %vm3092, %v3085, %v2847
        %v3122 = vsel %vm3092, %v3088, %v2849
        %v3124 = vsel %vm3092, %v3091, %v2851
        %vm3125 = vcmask 785408
        %v3127 = vsel %vm3125, %v3094, %v2869
        %v3130 = vsel %vm3125, %v3096, %v2871
        %v3133 = vsel %vm3125, %v3098, %v2873
        %v3136 = vsel %vm3125, %v3100, %v2875
        %v3139 = vsel %vm3125, %v3102, %v2877
        %v3142 = vsel %vm3125, %v3104, %v2879
        %v3145 = vsel %vm3125, %v3106, %v2881
        %v3148 = vsel %vm3125, %v3108, %v2883
        %v3151 = vsel %vm3125, %v3110, %v2885
        %v3154 = vsel %vm3125, %v3112, %v2887
        %v3157 = vsel %vm3125, %v3114, %v2889
        %v3160 = vsel %vm3125, %v3116, %v2891
        %v3163 = vsel %vm3125, %v3118, %v2893
        %v3166 = vsel %vm3125, %v3120, %v2895
        %v3169 = vsel %vm3125, %v3122, %v2897
        %v3172 = vsel %vm3125, %v3124, %v2899
        %v3176 = vsel %vm600, %v2036, %v2917
        %v3179 = vsel %vm600, %v2037, %v2919
        %v3182 = vsel %vm600, %v2038, %v2921
        %v3185 = vsel %vm600, %v2039, %v2923
        %v3188 = vsel %vm600, %v2040, %v2925
        %v3191 = vsel %vm600, %v2041, %v2927
        %v3194 = vsel %vm600, %v2042, %v2929
        %v3197 = vsel %vm600, %v2043, %v2931
        %v3200 = vsel %vm600, %v2044, %v2933
        %v3203 = vsel %vm600, %v2045, %v2935
        %v3206 = vsel %vm600, %v2046, %v2937
        %v3209 = vsel %vm600, %v2047, %v2939
        %v3212 = vsel %vm600, %v2048, %v2941
        %v3215 = vsel %vm600, %v2049, %v2943
        %v3218 = vsel %vm600, %v2050, %v2945
        %v3221 = vsel %vm600, %v2051, %v2947
        %v3223 = vsel %vm3092, %v3176, %v2965
        %v3225 = vsel %vm3092, %v3179, %v2967
        %v3227 = vsel %vm3092, %v3182, %v2969
        %v3229 = vsel %vm3092, %v3185, %v2971
        %v3231 = vsel %vm3092, %v3188, %v2973
        %v3233 = vsel %vm3092, %v3191, %v2975
        %v3235 = vsel %vm3092, %v3194, %v2977
        %v3237 = vsel %vm3092, %v3197, %v2979
        %v3239 = vsel %vm3092, %v3200, %v2981
        %v3241 = vsel %vm3092, %v3203, %v2983
        %v3243 = vsel %vm3092, %v3206, %v2985
        %v3245 = vsel %vm3092, %v3209, %v2987
        %v3247 = vsel %vm3092, %v3212, %v2989
        %v3249 = vsel %vm3092, %v3215, %v2991
        %v3251 = vsel %vm3092, %v3218, %v2993
        %v3253 = vsel %vm3092, %v3221, %v2995
        %v3255 = vsel %vm3125, %v3223, %v3013
        %v3258 = vsel %vm3125, %v3225, %v3015
        %v3261 = vsel %vm3125, %v3227, %v3017
        %v3264 = vsel %vm3125, %v3229, %v3019
        %v3267 = vsel %vm3125, %v3231, %v3021
        %v3270 = vsel %vm3125, %v3233, %v3023
        %v3273 = vsel %vm3125, %v3235, %v3025
        %v3276 = vsel %vm3125, %v3237, %v3027
        %v3279 = vsel %vm3125, %v3239, %v3029
        %v3282 = vsel %vm3125, %v3241, %v3031
        %v3285 = vsel %vm3125, %v3243, %v3033
        %v3288 = vsel %vm3125, %v3245, %v3035
        %v3291 = vsel %vm3125, %v3247, %v3037
        %v3294 = vsel %vm3125, %v3249, %v3039
        %v3297 = vsel %vm3125, %v3251, %v3041
        %v3300 = vsel %vm3125, %v3253, %v3043
        %v3302 = vld [vmem:[#allocation11] sm:$0xf]
        %v3303 = vld [vmem:[#allocation11 + $0x4] sm:$0xf]
        %v3304 = vld [vmem:[#allocation11 + $0x8] sm:$0xf]
        %v3305 = vld [vmem:[#allocation11 + $0xc] sm:$0xf]
        %v3306 = vld [vmem:[#allocation11 + $0x10] sm:$0xf]
        %v3307 = vld [vmem:[#allocation11 + $0x14] sm:$0xf]
        %v3308 = vld [vmem:[#allocation11 + $0x18] sm:$0xf]
        %v3309 = vld [vmem:[#allocation11 + $0x1c] sm:$0xf]
        %v3310 = vld [vmem:[#allocation11 + $0x20] sm:$0xf]
        %v3311 = vld [vmem:[#allocation11 + $0x24] sm:$0xf]
        %v3312 = vld [vmem:[#allocation11 + $0x28] sm:$0xf]
        %v3313 = vld [vmem:[#allocation11 + $0x2c] sm:$0xf]
        %v3314 = vld [vmem:[#allocation11 + $0x30] sm:$0xf]
        %v3315 = vld [vmem:[#allocation11 + $0x34] sm:$0xf]
        %v3316 = vld [vmem:[#allocation11 + $0x38] sm:$0xf]
        %v3317 = vld [vmem:[#allocation11 + $0x3c] sm:$0xf]
        %v3318 = vld [vmem:[#allocation11 + $0x40] sm:$0xf]
        %v3319 = vld [vmem:[#allocation11 + $0x44] sm:$0xf]
        %v3320 = vld [vmem:[#allocation11 + $0x48] sm:$0xf]
        %v3321 = vld [vmem:[#allocation11 + $0x4c] sm:$0xf]
        %v3322 = vld [vmem:[#allocation11 + $0x50] sm:$0xf]
        %v3323 = vld [vmem:[#allocation11 + $0x54] sm:$0xf]
        %v3324 = vld [vmem:[#allocation11 + $0x58] sm:$0xf]
        %v3325 = vld [vmem:[#allocation11 + $0x5c] sm:$0xf]
        %v3326 = vld [vmem:[#allocation11 + $0x60] sm:$0xf]
        %v3327 = vld [vmem:[#allocation11 + $0x64] sm:$0xf]
        %v3328 = vld [vmem:[#allocation11 + $0x68] sm:$0xf]
        %v3329 = vld [vmem:[#allocation11 + $0x6c] sm:$0xf]
        %v3330 = vld [vmem:[#allocation11 + $0x70] sm:$0xf]
        %v3331 = vld [vmem:[#allocation11 + $0x74] sm:$0xf]
        %v3332 = vld [vmem:[#allocation11 + $0x78] sm:$0xf]
        %v3333 = vld [vmem:[#allocation11 + $0x7c] sm:$0xf]
        %v3334 = vld [vmem:[#allocation11 + $0x80] sm:$0xf]
        %v3335 = vld [vmem:[#allocation11 + $0x84] sm:$0xf]
        %v3336 = vld [vmem:[#allocation11 + $0x88] sm:$0xf]
        %v3337 = vld [vmem:[#allocation11 + $0x8c] sm:$0xf]
        %v3338 = vld [vmem:[#allocation13] sm:$0x1]
        %v3340 = vlaneseq
        %v3341 = vshrl.u32 %v3340, 7
        %v3342 = vsub.s32 0, %v3341
        %v3343 = vrot.slane %v3338, %v3342
        %v3381 = vunpack.c.l.b16 %v3302
        %v3382 = vunpack.c.l.b16 %v3303
        %v3383 = vunpack.c.l.b16 %v3304
        %v3384 = vunpack.c.l.b16 %v3305
        %v3385 = vunpack.c.l.b16 %v3306
        %v3386 = vunpack.c.l.b16 %v3307
        %v3387 = vunpack.c.l.b16 %v3308
        %v3388 = vunpack.c.l.b16 %v3309
        %v3389 = vunpack.c.l.b16 %v3310
        %v3390 = vunpack.c.l.b16 %v3311
        %v3391 = vunpack.c.l.b16 %v3312
        %v3392 = vunpack.c.l.b16 %v3313
        %v3393 = vunpack.c.l.b16 %v3314
        %v3394 = vunpack.c.l.b16 %v3315
        %v3395 = vunpack.c.l.b16 %v3316
        %v3396 = vunpack.c.l.b16 %v3317
        %v3397 = vunpack.c.l.b16 %v3318
        %v3398 = vunpack.c.l.b16 %v3319
        %v3399 = vunpack.c.l.b16 %v3320
        %v3400 = vunpack.c.l.b16 %v3321
        %v3401 = vunpack.c.l.b16 %v3322
        %v3402 = vunpack.c.l.b16 %v3323
        %v3403 = vunpack.c.l.b16 %v3324
        %v3404 = vunpack.c.l.b16 %v3325
        %v3405 = vunpack.c.l.b16 %v3326
        %v3406 = vunpack.c.l.b16 %v3327
        %v3407 = vunpack.c.l.b16 %v3328
        %v3408 = vunpack.c.l.b16 %v3329
        %v3409 = vunpack.c.l.b16 %v3330
        %v3410 = vunpack.c.l.b16 %v3331
        %v3411 = vunpack.c.l.b16 %v3332
        %v3412 = vunpack.c.l.b16 %v3333
        %v3413 = vunpack.c.l.b16 %v3334
        %v3414 = vunpack.c.l.b16 %v3335
        %v3415 = vunpack.c.l.b16 %v3336
        %v3416 = vunpack.c.l.b16 %v3337
        %v3417 = vpack.c.b16 %v3382, %v3381
        %v3418 = vpack.c.b16 %v3384, %v3383
        %v3419 = vpack.c.b16 %v3386, %v3385
        %v3420 = vpack.c.b16 %v3388, %v3387
        %v3421 = vpack.c.b16 %v3390, %v3389
        %v3422 = vpack.c.b16 %v3392, %v3391
        %v3423 = vpack.c.b16 %v3394, %v3393
        %v3424 = vpack.c.b16 %v3396, %v3395
        %v3425 = vpack.c.b16 %v3398, %v3397
        %v3426 = vpack.c.b16 %v3400, %v3399
        %v3427 = vpack.c.b16 %v3402, %v3401
        %v3428 = vpack.c.b16 %v3404, %v3403
        %v3429 = vpack.c.b16 %v3406, %v3405
        %v3430 = vpack.c.b16 %v3408, %v3407
        %v3431 = vpack.c.b16 %v3410, %v3409
        %v3432 = vpack.c.b16 %v3412, %v3411
        %v3433 = vpack.c.b16 %v3414, %v3413
        %v3434 = vpack.c.b16 %v3416, %v3415
        %v3454 = vsel %vm600, %v2740, 0
        %v3457 = vsel %vm600, %v2741, 0
        %v3460 = vsel %vm600, %v2742, 0
        %v3463 = vsel %vm600, %v2743, 0
        %v3466 = vsel %vm600, %v2744, 0
        %v3469 = vsel %vm600, %v2745, 0
        %v3472 = vsel %vm600, %v2746, 0
        %v3475 = vsel %vm600, %v2747, 0
        %v3478 = vsel %vm600, %v2748, 0
        %v3481 = vsel %vm600, %v2749, 0
        %v3484 = vsel %vm600, %v2750, 0
        %v3487 = vsel %vm600, %v2751, 0
        %v3490 = vsel %vm600, %v2752, 0
        %v3493 = vsel %vm600, %v2753, 0
        %v3496 = vsel %vm600, %v2754, 0
        %v3499 = vsel %vm600, %v2755, 0
        %3501 = vmatprep.subr.bf16.mxu0 0
        %3502 = vmatpush1.bf16.msra.mxu0 %v3417
        %3503 = vmatprep.subr.bf16.mxu0 0
        %3504 = vmatpush1.bf16.msra.mxu0 %v3418
        %3505 = vmatprep.subr.bf16.mxu0 0
        %3506 = vmatpush1.bf16.msra.mxu0 %v3419
        %3507 = vmatprep.subr.bf16.mxu0 0
        %3508 = vmatpush1.bf16.msra.mxu0 %v3420
        %3509 = vmatprep.subr.bf16.mxu0 0
        %3510 = vmatpush1.bf16.msra.mxu0 %v3421
        %3511 = vmatprep.subr.bf16.mxu0 0
        %3512 = vmatpush1.bf16.msra.mxu0 %v3422
        %3513 = vmatprep.subr.bf16.mxu0 0
        %3514 = vmatpush1.bf16.msra.mxu0 %v3423
        %3515 = vmatprep.subr.bf16.mxu0 0
        %3516 = vmatpush1.bf16.msra.mxu0 %v3424
        %3517 = vmatprep.subr.bf16.mxu0 0
        %3518 = vmatpush1.bf16.msra.mxu0 %v3425
        %3519 = vmatprep.subr.bf16.mxu0 0
        %3520 = vmatpush1.bf16.msra.mxu0 %v3426
        %3521 = vmatprep.subr.bf16.mxu0 0
        %3522 = vmatpush1.bf16.msra.mxu0 %v3427
        %3523 = vmatprep.subr.bf16.mxu0 0
        %3524 = vmatpush1.bf16.msra.mxu0 %v3428
        %3525 = vmatprep.subr.bf16.mxu0 0
        %3526 = vmatpush1.bf16.msra.mxu0 %v3429
        %3527 = vmatprep.subr.bf16.mxu0 0
        %3528 = vmatpush1.bf16.msra.mxu0 %v3430
        %3529 = vmatprep.subr.bf16.mxu0 0
        %3530 = vmatpush1.bf16.msra.mxu0 %v3431
        %3531 = vmatprep.subr.bf16.mxu0 0
        %3532 = vmatpush1.bf16.msra.mxu0 %v3432
        %3533 = vmatprep.mubr.bf16.mxu0 %v3255
        %3534 = vmatmul.mubr.bf16.gmra.mrb[0].mxu0 %v3127
        %v3535 = vpop.f32.mrb[0].mxu0
        %v3536 = vadd.f32 %v3343, %v3535
        %v3537 = vpop.f32.mrb[0].mxu0
        %v3538 = vpop.f32.mrb[0].mxu0
        %v3539 = vadd.f32 %v3343, %v3538
        %v3540 = vpop.f32.mrb[0].mxu0
        %3541 = vmatprep.mubr.bf16.mxu0 %v3258
        %3542 = vmatmul.mubr.bf16.gmra.mrb[0].mxu0 %v3130
        %v3543 = vpop.f32.mrb[0].mxu0
        %v3544 = vadd.f32 %v3343, %v3543
        %v3545 = vpop.f32.mrb[0].mxu0
        %v3546 = vpop.f32.mrb[0].mxu0
        %v3547 = vadd.f32 %v3343, %v3546
        %v3548 = vpop.f32.mrb[0].mxu0
        %3549 = vmatprep.mubr.bf16.mxu0 %v3261
        %3550 = vmatmul.mubr.bf16.gmra.mrb[0].mxu0 %v3133
        %v3551 = vpop.f32.mrb[0].mxu0
        %v3552 = vadd.f32 %v3343, %v3551
        %v3553 = vpop.f32.mrb[0].mxu0
        %v3554 = vpop.f32.mrb[0].mxu0
        %v3555 = vadd.f32 %v3343, %v3554
        %v3556 = vpop.f32.mrb[0].mxu0
        %3557 = vmatprep.mubr.bf16.mxu0 %v3264
        %3558 = vmatmul.mubr.bf16.gmra.mrb[0].mxu0 %v3136
        %v3559 = vpop.f32.mrb[0].mxu0
        %v3560 = vadd.f32 %v3343, %v3559
        %v3561 = vpop.f32.mrb[0].mxu0
        %v3562 = vpop.f32.mrb[0].mxu0
        %v3563 = vadd.f32 %v3343, %v3562
        %v3564 = vpop.f32.mrb[0].mxu0
        %3565 = vmatprep.mubr.bf16.mxu0 %v3267
        %3566 = vmatmul.mubr.bf16.gmra.mrb[0].mxu0 %v3139
        %v3567 = vpop.f32.mrb[0].mxu0
        %v3568 = vadd.f32 %v3343, %v3567
        %v3569 = vpop.f32.mrb[0].mxu0
        %v3570 = vpop.f32.mrb[0].mxu0
        %v3571 = vadd.f32 %v3343, %v3570
        %v3572 = vpop.f32.mrb[0].mxu0
        %3573 = vmatprep.mubr.bf16.mxu0 %v3270
        %3574 = vmatmul.mubr.bf16.gmra.mrb[0].mxu0 %v3142
        %v3575 = vpop.f32.mrb[0].mxu0
        %v3576 = vadd.f32 %v3343, %v3575
        %v3577 = vpop.f32.mrb[0].mxu0
        %v3578 = vpop.f32.mrb[0].mxu0
        %v3579 = vadd.f32 %v3343, %v3578
        %v3580 = vpop.f32.mrb[0].mxu0
        %3581 = vmatprep.mubr.bf16.mxu0 %v3273
        %3582 = vmatmul.mubr.bf16.gmra.mrb[0].mxu0 %v3145
        %v3583 = vpop.f32.mrb[0].mxu0
        %v3584 = vadd.f32 %v3343, %v3583
        %v3585 = vpop.f32.mrb[0].mxu0
        %v3586 = vpop.f32.mrb[0].mxu0
        %v3587 = vadd.f32 %v3343, %v3586
        %v3588 = vpop.f32.mrb[0].mxu0
        %3589 = vmatprep.mubr.bf16.mxu0 %v3276
        %3590 = vmatmul.mubr.bf16.gmra.mrb[0].mxu0 %v3148
        %v3591 = vpop.f32.mrb[0].mxu0
        %v3592 = vadd.f32 %v3343, %v3591
        %v3593 = vpop.f32.mrb[0].mxu0
        %v3594 = vpop.f32.mrb[0].mxu0
        %v3595 = vadd.f32 %v3343, %v3594
        %v3596 = vpop.f32.mrb[0].mxu0
        %3597 = vmatprep.mubr.bf16.mxu0 %v3279
        %3598 = vmatmul.mubr.bf16.gmra.mrb[0].mxu0 %v3151
        %v3599 = vpop.f32.mrb[0].mxu0
        %v3600 = vadd.f32 %v3343, %v3599
        %v3601 = vpop.f32.mrb[0].mxu0
        %v3602 = vpop.f32.mrb[0].mxu0
        %v3603 = vadd.f32 %v3343, %v3602
        %v3604 = vpop.f32.mrb[0].mxu0
        %3605 = vmatprep.mubr.bf16.mxu0 %v3282
        %3606 = vmatmul.mubr.bf16.gmra.mrb[0].mxu0 %v3154
        %v3607 = vpop.f32.mrb[0].mxu0
        %v3608 = vadd.f32 %v3343, %v3607
        %v3609 = vpop.f32.mrb[0].mxu0
        %v3610 = vpop.f32.mrb[0].mxu0
        %v3611 = vadd.f32 %v3343, %v3610
        %v3612 = vpop.f32.mrb[0].mxu0
        %3613 = vmatprep.mubr.bf16.mxu0 %v3285
        %3614 = vmatmul.mubr.bf16.gmra.mrb[0].mxu0 %v3157
        %v3615 = vpop.f32.mrb[0].mxu0
        %v3616 = vadd.f32 %v3343, %v3615
        %v3617 = vpop.f32.mrb[0].mxu0
        %v3618 = vpop.f32.mrb[0].mxu0
        %v3619 = vadd.f32 %v3343, %v3618
        %v3620 = vpop.f32.mrb[0].mxu0
        %3621 = vmatprep.mubr.bf16.mxu0 %v3288
        %3622 = vmatmul.mubr.bf16.gmra.mrb[0].mxu0 %v3160
        %v3623 = vpop.f32.mrb[0].mxu0
        %v3624 = vadd.f32 %v3343, %v3623
        %v3625 = vpop.f32.mrb[0].mxu0
        %v3626 = vpop.f32.mrb[0].mxu0
        %v3627 = vadd.f32 %v3343, %v3626
        %v3628 = vpop.f32.mrb[0].mxu0
        %3629 = vmatprep.mubr.bf16.mxu0 %v3291
        %3630 = vmatmul.mubr.bf16.gmra.mrb[0].mxu0 %v3163
        %v3631 = vpop.f32.mrb[0].mxu0
        %v3632 = vadd.f32 %v3343, %v3631
        %v3633 = vpop.f32.mrb[0].mxu0
        %v3634 = vpop.f32.mrb[0].mxu0
        %v3635 = vadd.f32 %v3343, %v3634
        %v3636 = vpop.f32.mrb[0].mxu0
        %3637 = vmatprep.mubr.bf16.mxu0 %v3294
        %3638 = vmatmul.mubr.bf16.gmra.mrb[0].mxu0 %v3166
        %v3639 = vpop.f32.mrb[0].mxu0
        %v3640 = vadd.f32 %v3343, %v3639
        %v3641 = vpop.f32.mrb[0].mxu0
        %v3642 = vpop.f32.mrb[0].mxu0
        %v3643 = vadd.f32 %v3343, %v3642
        %v3644 = vpop.f32.mrb[0].mxu0
        %3645 = vmatprep.mubr.bf16.mxu0 %v3297
        %3646 = vmatmul.mubr.bf16.gmra.mrb[0].mxu0 %v3169
        %v3647 = vpop.f32.mrb[0].mxu0
        %v3648 = vadd.f32 %v3343, %v3647
        %v3649 = vpop.f32.mrb[0].mxu0
        %v3650 = vpop.f32.mrb[0].mxu0
        %v3651 = vadd.f32 %v3343, %v3650
        %v3652 = vpop.f32.mrb[0].mxu0
        %3653 = vmatprep.mubr.bf16.mxu0 %v3300
        %3654 = vmatmul.mubr.bf16.gmra.mrb[0].mxu0 %v3172
        %v3655 = vpop.f32.mrb[0].mxu0
        %v3656 = vadd.f32 %v3343, %v3655
        %v3657 = vpop.f32.mrb[0].mxu0
        %v3658 = vpop.f32.mrb[0].mxu0
        %v3659 = vadd.f32 %v3343, %v3658
        %v3660 = vpop.f32.mrb[0].mxu0
        %3661 = vdwg.mxu0
        %3662 = vmatprep.subr.bf16.mxu0 0
        %3663 = vmatpush1.bf16.msra.mxu0 %v3433
        %3664 = vmatprep.subr.bf16.mxu0 0
        %3665 = vmatpush1.bf16.msra.mxu0 %v3434
        %3666 = vmatprep.subr.bf16.mxu0 0
        %3667 = vmatpush1.bf16.msra.mxu0 0
        %3668 = vmatprep.subr.bf16.mxu0 0
        %3669 = vmatpush1.bf16.msra.mxu0 0
        %3670 = vmatprep.subr.bf16.mxu0 0
        %3671 = vmatpush1.bf16.msra.mxu0 0
        %3672 = vmatprep.subr.bf16.mxu0 0
        %3673 = vmatpush1.bf16.msra.mxu0 0
        %3674 = vmatprep.subr.bf16.mxu0 0
        %3675 = vmatpush1.bf16.msra.mxu0 0
        %3676 = vmatprep.subr.bf16.mxu0 0
        %3677 = vmatpush1.bf16.msra.mxu0 0
        %3678 = vmatprep.subr.bf16.mxu0 0
        %3679 = vmatpush1.bf16.msra.mxu0 0
        %3680 = vmatprep.subr.bf16.mxu0 0
        %3681 = vmatpush1.bf16.msra.mxu0 0
        %3682 = vmatprep.subr.bf16.mxu0 0
        %3683 = vmatpush1.bf16.msra.mxu0 0
        %3684 = vmatprep.subr.bf16.mxu0 0
        %3685 = vmatpush1.bf16.msra.mxu0 0
        %3686 = vmatprep.subr.bf16.mxu0 0
        %3687 = vmatpush1.bf16.msra.mxu0 0
        %3688 = vmatprep.subr.bf16.mxu0 0
        %3689 = vmatpush1.bf16.msra.mxu0 0
        %3690 = vmatprep.subr.bf16.mxu0 0
        %3691 = vmatpush1.bf16.msra.mxu0 0
        %3692 = vmatprep.subr.bf16.mxu0 0
        %3693 = vmatpush1.bf16.msra.mxu0 0
        %3694 = vmatprep.mubr.bf16.mxu0 0
        %3695 = vmatmul.mubr.bf16.gmra.mrb[0].mxu0 %v3454
        %v3696 = vpop.f32.mrb[0].mxu0
        %v3697 = vadd.f32 %v3536, %v3696
        %v3698 = vpop.f32.mrb[0].mxu0
        %v3699 = vpop.f32.mrb[0].mxu0
        %v3700 = vadd.f32 %v3539, %v3699
        %v3701 = vpop.f32.mrb[0].mxu0
        %3702 = vmatprep.mubr.bf16.mxu0 0
        %3703 = vmatmul.mubr.bf16.gmra.mrb[0].mxu0 %v3457
        %v3704 = vpop.f32.mrb[0].mxu0
        %v3705 = vadd.f32 %v3544, %v3704
        %v3706 = vpop.f32.mrb[0].mxu0
        %v3707 = vpop.f32.mrb[0].mxu0
        %v3708 = vadd.f32 %v3547, %v3707
        %v3709 = vpop.f32.mrb[0].mxu0
        %3710 = vmatprep.mubr.bf16.mxu0 0
        %3711 = vmatmul.mubr.bf16.gmra.mrb[0].mxu0 %v3460
        %v3712 = vpop.f32.mrb[0].mxu0
        %v3713 = vadd.f32 %v3552, %v3712
        %v3714 = vpop.f32.mrb[0].mxu0
        %v3715 = vpop.f32.mrb[0].mxu0
        %v3716 = vadd.f32 %v3555, %v3715
        %v3717 = vpop.f32.mrb[0].mxu0
        %3718 = vmatprep.mubr.bf16.mxu0 0
        %3719 = vmatmul.mubr.bf16.gmra.mrb[0].mxu0 %v3463
        %v3720 = vpop.f32.mrb[0].mxu0
        %v3721 = vadd.f32 %v3560, %v3720
        %v3722 = vpop.f32.mrb[0].mxu0
        %v3723 = vpop.f32.mrb[0].mxu0
        %v3724 = vadd.f32 %v3563, %v3723
        %v3725 = vpop.f32.mrb[0].mxu0
        %3726 = vmatprep.mubr.bf16.mxu0 0
        %3727 = vmatmul.mubr.bf16.gmra.mrb[0].mxu0 %v3466
        %v3728 = vpop.f32.mrb[0].mxu0
        %v3729 = vadd.f32 %v3568, %v3728
        %v3730 = vpop.f32.mrb[0].mxu0
        %v3731 = vpop.f32.mrb[0].mxu0
        %v3732 = vadd.f32 %v3571, %v3731
        %v3733 = vpop.f32.mrb[0].mxu0
        %3734 = vmatprep.mubr.bf16.mxu0 0
        %3735 = vmatmul.mubr.bf16.gmra.mrb[0].mxu0 %v3469
        %v3736 = vpop.f32.mrb[0].mxu0
        %v3737 = vadd.f32 %v3576, %v3736
        %v3738 = vpop.f32.mrb[0].mxu0
        %v3739 = vpop.f32.mrb[0].mxu0
        %v3740 = vadd.f32 %v3579, %v3739
        %v3741 = vpop.f32.mrb[0].mxu0
        %3742 = vmatprep.mubr.bf16.mxu0 0
        %3743 = vmatmul.mubr.bf16.gmra.mrb[0].mxu0 %v3472
        %v3744 = vpop.f32.mrb[0].mxu0
        %v3745 = vadd.f32 %v3584, %v3744
        %v3746 = vpop.f32.mrb[0].mxu0
        %v3747 = vpop.f32.mrb[0].mxu0
        %v3748 = vadd.f32 %v3587, %v3747
        %v3749 = vpop.f32.mrb[0].mxu0
        %3750 = vmatprep.mubr.bf16.mxu0 0
        %3751 = vmatmul.mubr.bf16.gmra.mrb[0].mxu0 %v3475
        %v3752 = vpop.f32.mrb[0].mxu0
        %v3753 = vadd.f32 %v3592, %v3752
        %v3754 = vpop.f32.mrb[0].mxu0
        %v3755 = vpop.f32.mrb[0].mxu0
        %v3756 = vadd.f32 %v3595, %v3755
        %v3757 = vpop.f32.mrb[0].mxu0
        %3758 = vmatprep.mubr.bf16.mxu0 0
        %3759 = vmatmul.mubr.bf16.gmra.mrb[0].mxu0 %v3478
        %v3760 = vpop.f32.mrb[0].mxu0
        %v3761 = vadd.f32 %v3600, %v3760
        %v3762 = vpop.f32.mrb[0].mxu0
        %v3763 = vpop.f32.mrb[0].mxu0
        %v3764 = vadd.f32 %v3603, %v3763
        %v3765 = vpop.f32.mrb[0].mxu0
        %3766 = vmatprep.mubr.bf16.mxu0 0
        %3767 = vmatmul.mubr.bf16.gmra.mrb[0].mxu0 %v3481
        %v3768 = vpop.f32.mrb[0].mxu0
        %v3769 = vadd.f32 %v3608, %v3768
        %v3770 = vpop.f32.mrb[0].mxu0
        %v3771 = vpop.f32.mrb[0].mxu0
        %v3772 = vadd.f32 %v3611, %v3771
        %v3773 = vpop.f32.mrb[0].mxu0
        %3774 = vmatprep.mubr.bf16.mxu0 0
        %3775 = vmatmul.mubr.bf16.gmra.mrb[0].mxu0 %v3484
        %v3776 = vpop.f32.mrb[0].mxu0
        %v3777 = vadd.f32 %v3616, %v3776
        %v3778 = vpop.f32.mrb[0].mxu0
        %v3779 = vpop.f32.mrb[0].mxu0
        %v3780 = vadd.f32 %v3619, %v3779
        %v3781 = vpop.f32.mrb[0].mxu0
        %3782 = vmatprep.mubr.bf16.mxu0 0
        %3783 = vmatmul.mubr.bf16.gmra.mrb[0].mxu0 %v3487
        %v3784 = vpop.f32.mrb[0].mxu0
        %v3785 = vadd.f32 %v3624, %v3784
        %v3786 = vpop.f32.mrb[0].mxu0
        %v3787 = vpop.f32.mrb[0].mxu0
        %v3788 = vadd.f32 %v3627, %v3787
        %v3789 = vpop.f32.mrb[0].mxu0
        %3790 = vmatprep.mubr.bf16.mxu0 0
        %3791 = vmatmul.mubr.bf16.gmra.mrb[0].mxu0 %v3490
        %v3792 = vpop.f32.mrb[0].mxu0
        %v3793 = vadd.f32 %v3632, %v3792
        %v3794 = vpop.f32.mrb[0].mxu0
        %v3795 = vpop.f32.mrb[0].mxu0
        %v3796 = vadd.f32 %v3635, %v3795
        %v3797 = vpop.f32.mrb[0].mxu0
        %3798 = vmatprep.mubr.bf16.mxu0 0
        %3799 = vmatmul.mubr.bf16.gmra.mrb[0].mxu0 %v3493
        %v3800 = vpop.f32.mrb[0].mxu0
        %v3801 = vadd.f32 %v3640, %v3800
        %v3802 = vpop.f32.mrb[0].mxu0
        %v3803 = vpop.f32.mrb[0].mxu0
        %v3804 = vadd.f32 %v3643, %v3803
        %v3805 = vpop.f32.mrb[0].mxu0
        %3806 = vmatprep.mubr.bf16.mxu0 0
        %3807 = vmatmul.mubr.bf16.gmra.mrb[0].mxu0 %v3496
        %v3808 = vpop.f32.mrb[0].mxu0
        %v3809 = vadd.f32 %v3648, %v3808
        %v3810 = vpop.f32.mrb[0].mxu0
        %v3811 = vpop.f32.mrb[0].mxu0
        %v3812 = vadd.f32 %v3651, %v3811
        %v3813 = vpop.f32.mrb[0].mxu0
        %3814 = vmatprep.mubr.bf16.mxu0 0
        %3815 = vmatmul.mubr.bf16.gmra.mrb[0].mxu0 %v3499
        %v3816 = vpop.f32.mrb[0].mxu0
        %v3817 = vadd.f32 %v3656, %v3816
        %v3818 = vpop.f32.mrb[0].mxu0
        %v3819 = vpop.f32.mrb[0].mxu0
        %v3820 = vadd.f32 %v3659, %v3819
        %v3821 = vpop.f32.mrb[0].mxu0
        %3822 = vdwg.mxu0
        %v3823 = vld [vmem:[%s484] sm:$0x1]
        %v3824 = vld [vmem:[%s484 + $0x1] sm:$0x1]
        %v3825 = vld [vmem:[%s484 + $0x2] sm:$0x1]
        %v3826 = vld [vmem:[%s484 + $0x3] sm:$0x1]
        %v3831 = vlaneseq
        %v3832 = vshrl.u32 %v3831, 7
        %v3833 = vsub.s32 0, %v3832
        %v3834 = vrot.slane %v3823, %v3833
        %v3835 = vlaneseq
        %v3836 = vshrl.u32 %v3835, 7
        %v3837 = vsub.s32 0, %v3836
        %v3838 = vrot.slane %v3824, %v3837
        %v3839 = vlaneseq
        %v3840 = vshrl.u32 %v3839, 7
        %v3841 = vsub.s32 0, %v3840
        %v3842 = vrot.slane %v3825, %v3841
        %v3843 = vlaneseq
        %v3844 = vshrl.u32 %v3843, 7
        %v3845 = vsub.s32 0, %v3844
        %v3846 = vrot.slane %v3826, %v3845
        %v3851 = vadd.f32 %v3697, %v3834
        %v3852 = vadd.f32 %v3700, %v3834
        %v3853 = vadd.f32 %v3705, %v3834
        %v3854 = vadd.f32 %v3708, %v3834
        %v3855 = vadd.f32 %v3713, %v3834
        %v3856 = vadd.f32 %v3716, %v3834
        %v3857 = vadd.f32 %v3721, %v3834
        %v3858 = vadd.f32 %v3724, %v3834
        %v3859 = vadd.f32 %v3729, %v3838
        %v3860 = vadd.f32 %v3732, %v3838
        %v3861 = vadd.f32 %v3737, %v3838
        %v3862 = vadd.f32 %v3740, %v3838
        %v3863 = vadd.f32 %v3745, %v3838
        %v3864 = vadd.f32 %v3748, %v3838
        %v3865 = vadd.f32 %v3753, %v3838
        %v3866 = vadd.f32 %v3756, %v3838
        %v3867 = vadd.f32 %v3761, %v3842
        %v3868 = vadd.f32 %v3764, %v3842
        %v3869 = vadd.f32 %v3769, %v3842
        %v3870 = vadd.f32 %v3772, %v3842
        %v3871 = vadd.f32 %v3777, %v3842
        %v3872 = vadd.f32 %v3780, %v3842
        %v3873 = vadd.f32 %v3785, %v3842
        %v3874 = vadd.f32 %v3788, %v3842
        %v3875 = vadd.f32 %v3793, %v3846
        %v3876 = vadd.f32 %v3796, %v3846
        %v3877 = vadd.f32 %v3801, %v3846
        %v3878 = vadd.f32 %v3804, %v3846
        %v3879 = vadd.f32 %v3809, %v3846
        %v3880 = vadd.f32 %v3812, %v3846
        %v3881 = vadd.f32 %v3817, %v3846
        %v3882 = vadd.f32 %v3820, %v3846
        %v3883 = vsel %vm600, %v3851, 0.0
        %v3884 = vsel %vm600, %v3852, 0.0
        %v3885 = vadd.f32 %v3883, %v3884
        %v3886 = vsel %vm600, %v3853, 0.0
        %v3887 = vadd.f32 %v3885, %v3886
        %v3888 = vsel %vm600, %v3854, 0.0
        %v3889 = vadd.f32 %v3887, %v3888
        %v3890 = vsel %vm600, %v3855, 0.0
        %v3891 = vadd.f32 %v3889, %v3890
        %v3892 = vsel %vm600, %v3856, 0.0
        %v3893 = vadd.f32 %v3891, %v3892
        %v3894 = vsel %vm600, %v3857, 0.0
        %v3895 = vadd.f32 %v3893, %v3894
        %v3896 = vsel %vm600, %v3858, 0.0
        %v3897 = vadd.f32 %v3895, %v3896
        %v3898 = vrot.slane %v3897, 4
        %v3899 = vadd.f32 %v3897, %v3898
        %v3900 = vrot.slane %v3899, 2
        %v3901 = vadd.f32 %v3899, %v3900
        %v3902 = vrot.slane %v3901, 1
        %v3903 = vadd.f32 %v3901, %v3902
        %v3904 = vsel %vm600, %v3859, 0.0
        %v3905 = vsel %vm600, %v3860, 0.0
        %v3906 = vadd.f32 %v3904, %v3905
        %v3907 = vsel %vm600, %v3861, 0.0
        %v3908 = vadd.f32 %v3906, %v3907
        %v3909 = vsel %vm600, %v3862, 0.0
        %v3910 = vadd.f32 %v3908, %v3909
        %v3911 = vsel %vm600, %v3863, 0.0
        %v3912 = vadd.f32 %v3910, %v3911
        %v3913 = vsel %vm600, %v3864, 0.0
        %v3914 = vadd.f32 %v3912, %v3913
        %v3915 = vsel %vm600, %v3865, 0.0
        %v3916 = vadd.f32 %v3914, %v3915
        %v3917 = vsel %vm600, %v3866, 0.0
        %v3918 = vadd.f32 %v3916, %v3917
        %v3919 = vrot.slane %v3918, 4
        %v3920 = vadd.f32 %v3918, %v3919
        %v3921 = vrot.slane %v3920, 2
        %v3922 = vadd.f32 %v3920, %v3921
        %v3923 = vrot.slane %v3922, 1
        %v3924 = vadd.f32 %v3922, %v3923
        %v3925 = vsel %vm600, %v3867, 0.0
        %v3926 = vsel %vm600, %v3868, 0.0
        %v3927 = vadd.f32 %v3925, %v3926
        %v3928 = vsel %vm600, %v3869, 0.0
        %v3929 = vadd.f32 %v3927, %v3928
        %v3930 = vsel %vm600, %v3870, 0.0
        %v3931 = vadd.f32 %v3929, %v3930
        %v3932 = vsel %vm600, %v3871, 0.0
        %v3933 = vadd.f32 %v3931, %v3932
        %v3934 = vsel %vm600, %v3872, 0.0
        %v3935 = vadd.f32 %v3933, %v3934
        %v3936 = vsel %vm600, %v3873, 0.0
        %v3937 = vadd.f32 %v3935, %v3936
        %v3938 = vsel %vm600, %v3874, 0.0
        %v3939 = vadd.f32 %v3937, %v3938
        %v3940 = vrot.slane %v3939, 4
        %v3941 = vadd.f32 %v3939, %v3940
        %v3942 = vrot.slane %v3941, 2
        %v3943 = vadd.f32 %v3941, %v3942
        %v3944 = vrot.slane %v3943, 1
        %v3945 = vadd.f32 %v3943, %v3944
        %v3946 = vsel %vm600, %v3875, 0.0
        %v3947 = vsel %vm600, %v3876, 0.0
        %v3948 = vadd.f32 %v3946, %v3947
        %v3949 = vsel %vm600, %v3877, 0.0
        %v3950 = vadd.f32 %v3948, %v3949
        %v3951 = vsel %vm600, %v3878, 0.0
        %v3952 = vadd.f32 %v3950, %v3951
        %v3953 = vsel %vm600, %v3879, 0.0
        %v3954 = vadd.f32 %v3952, %v3953
        %v3955 = vsel %vm600, %v3880, 0.0
        %v3956 = vadd.f32 %v3954, %v3955
        %v3957 = vsel %vm600, %v3881, 0.0
        %v3958 = vadd.f32 %v3956, %v3957
        %v3959 = vsel %vm600, %v3882, 0.0
        %v3960 = vadd.f32 %v3958, %v3959
        %v3961 = vrot.slane %v3960, 4
        %v3962 = vadd.f32 %v3960, %v3961
        %v3963 = vrot.slane %v3962, 2
        %v3964 = vadd.f32 %v3962, %v3963
        %v3965 = vrot.slane %v3964, 1
        %v3966 = vadd.f32 %v3964, %v3965
        %v3967 = vmul.f32 %v3903, %v685
        %v3968 = vmul.f32 %v3924, %v685
        %v3969 = vmul.f32 %v3945, %v685
        %v3970 = vmul.f32 %v3966, %v685
        %v3971 = vmul.f32 %v3851, %v3851
        %v3972 = vmul.f32 %v3852, %v3852
        %v3973 = vmul.f32 %v3853, %v3853
        %v3974 = vmul.f32 %v3854, %v3854
        %v3975 = vmul.f32 %v3855, %v3855
        %v3976 = vmul.f32 %v3856, %v3856
        %v3977 = vmul.f32 %v3857, %v3857
        %v3978 = vmul.f32 %v3858, %v3858
        %v3979 = vmul.f32 %v3859, %v3859
        %v3980 = vmul.f32 %v3860, %v3860
        %v3981 = vmul.f32 %v3861, %v3861
        %v3982 = vmul.f32 %v3862, %v3862
        %v3983 = vmul.f32 %v3863, %v3863
        %v3984 = vmul.f32 %v3864, %v3864
        %v3985 = vmul.f32 %v3865, %v3865
        %v3986 = vmul.f32 %v3866, %v3866
        %v3987 = vmul.f32 %v3867, %v3867
        %v3988 = vmul.f32 %v3868, %v3868
        %v3989 = vmul.f32 %v3869, %v3869
        %v3990 = vmul.f32 %v3870, %v3870
        %v3991 = vmul.f32 %v3871, %v3871
        %v3992 = vmul.f32 %v3872, %v3872
        %v3993 = vmul.f32 %v3873, %v3873
        %v3994 = vmul.f32 %v3874, %v3874
        %v3995 = vmul.f32 %v3875, %v3875
        %v3996 = vmul.f32 %v3876, %v3876
        %v3997 = vmul.f32 %v3877, %v3877
        %v3998 = vmul.f32 %v3878, %v3878
        %v3999 = vmul.f32 %v3879, %v3879
        %v4000 = vmul.f32 %v3880, %v3880
        %v4001 = vmul.f32 %v3881, %v3881
        %v4002 = vmul.f32 %v3882, %v3882
        %v4003 = vsel %vm600, %v3971, 0.0
        %v4004 = vsel %vm600, %v3972, 0.0
        %v4005 = vadd.f32 %v4003, %v4004
        %v4006 = vsel %vm600, %v3973, 0.0
        %v4007 = vadd.f32 %v4005, %v4006
        %v4008 = vsel %vm600, %v3974, 0.0
        %v4009 = vadd.f32 %v4007, %v4008
        %v4010 = vsel %vm600, %v3975, 0.0
        %v4011 = vadd.f32 %v4009, %v4010
        %v4012 = vsel %vm600, %v3976, 0.0
        %v4013 = vadd.f32 %v4011, %v4012
        %v4014 = vsel %vm600, %v3977, 0.0
        %v4015 = vadd.f32 %v4013, %v4014
        %v4016 = vsel %vm600, %v3978, 0.0
        %v4017 = vadd.f32 %v4015, %v4016
        %v4018 = vrot.slane %v4017, 4
        %v4019 = vadd.f32 %v4017, %v4018
        %v4020 = vrot.slane %v4019, 2
        %v4021 = vadd.f32 %v4019, %v4020
        %v4022 = vrot.slane %v4021, 1
        %v4023 = vadd.f32 %v4021, %v4022
        %v4024 = vsel %vm600, %v3979, 0.0
        %v4025 = vsel %vm600, %v3980, 0.0
        %v4026 = vadd.f32 %v4024, %v4025
        %v4027 = vsel %vm600, %v3981, 0.0
        %v4028 = vadd.f32 %v4026, %v4027
        %v4029 = vsel %vm600, %v3982, 0.0
        %v4030 = vadd.f32 %v4028, %v4029
        %v4031 = vsel %vm600, %v3983, 0.0
        %v4032 = vadd.f32 %v4030, %v4031
        %v4033 = vsel %vm600, %v3984, 0.0
        %v4034 = vadd.f32 %v4032, %v4033
        %v4035 = vsel %vm600, %v3985, 0.0
        %v4036 = vadd.f32 %v4034, %v4035
        %v4037 = vsel %vm600, %v3986, 0.0
        %v4038 = vadd.f32 %v4036, %v4037
        %v4039 = vrot.slane %v4038, 4
        %v4040 = vadd.f32 %v4038, %v4039
        %v4041 = vrot.slane %v4040, 2
        %v4042 = vadd.f32 %v4040, %v4041
        %v4043 = vrot.slane %v4042, 1
        %v4044 = vadd.f32 %v4042, %v4043
        %v4045 = vsel %vm600, %v3987, 0.0
        %v4046 = vsel %vm600, %v3988, 0.0
        %v4047 = vadd.f32 %v4045, %v4046
        %v4048 = vsel %vm600, %v3989, 0.0
        %v4049 = vadd.f32 %v4047, %v4048
        %v4050 = vsel %vm600, %v3990, 0.0
        %v4051 = vadd.f32 %v4049, %v4050
        %v4052 = vsel %vm600, %v3991, 0.0
        %v4053 = vadd.f32 %v4051, %v4052
        %v4054 = vsel %vm600, %v3992, 0.0
        %v4055 = vadd.f32 %v4053, %v4054
        %v4056 = vsel %vm600, %v3993, 0.0
        %v4057 = vadd.f32 %v4055, %v4056
        %v4058 = vsel %vm600, %v3994, 0.0
        %v4059 = vadd.f32 %v4057, %v4058
        %v4060 = vrot.slane %v4059, 4
        %v4061 = vadd.f32 %v4059, %v4060
        %v4062 = vrot.slane %v4061, 2
        %v4063 = vadd.f32 %v4061, %v4062
        %v4064 = vrot.slane %v4063, 1
        %v4065 = vadd.f32 %v4063, %v4064
        %v4066 = vsel %vm600, %v3995, 0.0
        %v4067 = vsel %vm600, %v3996, 0.0
        %v4068 = vadd.f32 %v4066, %v4067
        %v4069 = vsel %vm600, %v3997, 0.0
        %v4070 = vadd.f32 %v4068, %v4069
        %v4071 = vsel %vm600, %v3998, 0.0
        %v4072 = vadd.f32 %v4070, %v4071
        %v4073 = vsel %vm600, %v3999, 0.0
        %v4074 = vadd.f32 %v4072, %v4073
        %v4075 = vsel %vm600, %v4000, 0.0
        %v4076 = vadd.f32 %v4074, %v4075
        %v4077 = vsel %vm600, %v4001, 0.0
        %v4078 = vadd.f32 %v4076, %v4077
        %v4079 = vsel %vm600, %v4002, 0.0
        %v4080 = vadd.f32 %v4078, %v4079
        %v4081 = vrot.slane %v4080, 4
        %v4082 = vadd.f32 %v4080, %v4081
        %v4083 = vrot.slane %v4082, 2
        %v4084 = vadd.f32 %v4082, %v4083
        %v4085 = vrot.slane %v4084, 1
        %v4086 = vadd.f32 %v4084, %v4085
        %v4087 = vmul.f32 %v4023, %v685
        %v4088 = vmul.f32 %v4044, %v685
        %v4089 = vmul.f32 %v4065, %v685
        %v4090 = vmul.f32 %v4086, %v685
        %v4091 = vmul.f32 %v3967, %v3967
        %v4092 = vmul.f32 %v3968, %v3968
        %v4093 = vmul.f32 %v3969, %v3969
        %v4094 = vmul.f32 %v3970, %v3970
        %v4095 = vsub.f32 %v4087, %v4091
        %v4096 = vsub.f32 %v4088, %v4092
        %v4097 = vsub.f32 %v4089, %v4093
        %v4098 = vsub.f32 %v4090, %v4094
        %v4099 = vadd.f32 %v4095, 1e-05
        %v4100 = vadd.f32 %v4096, 1e-05
        %v4101 = vadd.f32 %v4097, 1e-05
        %v4102 = vadd.f32 %v4098, 1e-05
        %v4103 = vrsqrt.pop %v4099
        %v4104 = vrsqrt.pop %v4100
        %v4105 = vrsqrt.pop %v4101
        %v4106 = vrsqrt.pop %v4102
        %v4107 = vld [vmem:[#allocation14] sm:$0x1]
        %v4108 = vmul.f32 %v4103, %v4107
        %v4109 = vmul.f32 %v4104, %v4107
        %v4110 = vmul.f32 %v4105, %v4107
        %v4111 = vmul.f32 %v4106, %v4107
        %v4112 = vld [vmem:[#allocation16] sm:$0x1]
        %v4113 = vmul.f32 %v3967, %v4108
        %v4114 = vmul.f32 %v3968, %v4109
        %v4115 = vmul.f32 %v3969, %v4110
        %v4116 = vmul.f32 %v3970, %v4111
        %v4117 = vsub.f32 %v4112, %v4113
        %v4118 = vsub.f32 %v4112, %v4114
        %v4119 = vsub.f32 %v4112, %v4115
        %v4120 = vsub.f32 %v4112, %v4116
        %v4121 = vlaneseq
        %v4122 = vshrl.u32 %v4121, 7
        %v4123 = vsub.s32 0, %v4122
        %v4124 = vrot.slane %v4108, %v4123
        %v4125 = vlaneseq
        %v4126 = vshrl.u32 %v4125, 7
        %v4127 = vsub.s32 0, %v4126
        %v4128 = vrot.slane %v4109, %v4127
        %v4129 = vlaneseq
        %v4130 = vshrl.u32 %v4129, 7
        %v4131 = vsub.s32 0, %v4130
        %v4132 = vrot.slane %v4110, %v4131
        %v4133 = vlaneseq
        %v4134 = vshrl.u32 %v4133, 7
        %v4135 = vsub.s32 0, %v4134
        %v4136 = vrot.slane %v4111, %v4135
        %v4137 = vmul.f32 %v3851, %v4124
        %v4138 = vmul.f32 %v3852, %v4124
        %v4139 = vmul.f32 %v3853, %v4124
        %v4140 = vmul.f32 %v3854, %v4124
        %v4141 = vmul.f32 %v3855, %v4124
        %v4142 = vmul.f32 %v3856, %v4124
        %v4143 = vmul.f32 %v3857, %v4124
        %v4144 = vmul.f32 %v3858, %v4124
        %v4145 = vmul.f32 %v3859, %v4128
        %v4146 = vmul.f32 %v3860, %v4128
        %v4147 = vmul.f32 %v3861, %v4128
        %v4148 = vmul.f32 %v3862, %v4128
        %v4149 = vmul.f32 %v3863, %v4128
        %v4150 = vmul.f32 %v3864, %v4128
        %v4151 = vmul.f32 %v3865, %v4128
        %v4152 = vmul.f32 %v3866, %v4128
        %v4153 = vmul.f32 %v3867, %v4132
        %v4154 = vmul.f32 %v3868, %v4132
        %v4155 = vmul.f32 %v3869, %v4132
        %v4156 = vmul.f32 %v3870, %v4132
        %v4157 = vmul.f32 %v3871, %v4132
        %v4158 = vmul.f32 %v3872, %v4132
        %v4159 = vmul.f32 %v3873, %v4132
        %v4160 = vmul.f32 %v3874, %v4132
        %v4161 = vmul.f32 %v3875, %v4136
        %v4162 = vmul.f32 %v3876, %v4136
        %v4163 = vmul.f32 %v3877, %v4136
        %v4164 = vmul.f32 %v3878, %v4136
        %v4165 = vmul.f32 %v3879, %v4136
        %v4166 = vmul.f32 %v3880, %v4136
        %v4167 = vmul.f32 %v3881, %v4136
        %v4168 = vmul.f32 %v3882, %v4136
        %v4173 = vlaneseq
        %v4174 = vshrl.u32 %v4173, 7
        %v4175 = vsub.s32 0, %v4174
        %v4176 = vrot.slane %v4117, %v4175
        %v4177 = vlaneseq
        %v4178 = vshrl.u32 %v4177, 7
        %v4179 = vsub.s32 0, %v4178
        %v4180 = vrot.slane %v4118, %v4179
        %v4181 = vlaneseq
        %v4182 = vshrl.u32 %v4181, 7
        %v4183 = vsub.s32 0, %v4182
        %v4184 = vrot.slane %v4119, %v4183
        %v4185 = vlaneseq
        %v4186 = vshrl.u32 %v4185, 7
        %v4187 = vsub.s32 0, %v4186
        %v4188 = vrot.slane %v4120, %v4187
        %v4193 = vadd.f32 %v4137, %v4176
        %v4194 = vadd.f32 %v4138, %v4176
        %v4195 = vadd.f32 %v4139, %v4176
        %v4196 = vadd.f32 %v4140, %v4176
        %v4197 = vadd.f32 %v4141, %v4176
        %v4198 = vadd.f32 %v4142, %v4176
        %v4199 = vadd.f32 %v4143, %v4176
        %v4200 = vadd.f32 %v4144, %v4176
        %v4201 = vadd.f32 %v4145, %v4180
        %v4202 = vadd.f32 %v4146, %v4180
        %v4203 = vadd.f32 %v4147, %v4180
        %v4204 = vadd.f32 %v4148, %v4180
        %v4205 = vadd.f32 %v4149, %v4180
        %v4206 = vadd.f32 %v4150, %v4180
        %v4207 = vadd.f32 %v4151, %v4180
        %v4208 = vadd.f32 %v4152, %v4180
        %v4209 = vadd.f32 %v4153, %v4184
        %v4210 = vadd.f32 %v4154, %v4184
        %v4211 = vadd.f32 %v4155, %v4184
        %v4212 = vadd.f32 %v4156, %v4184
        %v4213 = vadd.f32 %v4157, %v4184
        %v4214 = vadd.f32 %v4158, %v4184
        %v4215 = vadd.f32 %v4159, %v4184
        %v4216 = vadd.f32 %v4160, %v4184
        %v4217 = vadd.f32 %v4161, %v4188
        %v4218 = vadd.f32 %v4162, %v4188
        %v4219 = vadd.f32 %v4163, %v4188
        %v4220 = vadd.f32 %v4164, %v4188
        %v4221 = vadd.f32 %v4165, %v4188
        %v4222 = vadd.f32 %v4166, %v4188
        %v4223 = vadd.f32 %v4167, %v4188
        %v4224 = vadd.f32 %v4168, %v4188
        %v4225 = vsub.f32 0.0, %v4193
        %v4226 = vsub.f32 0.0, %v4194
        %v4227 = vsub.f32 0.0, %v4195
        %v4228 = vsub.f32 0.0, %v4196
        %v4229 = vsub.f32 0.0, %v4197
        %v4230 = vsub.f32 0.0, %v4198
        %v4231 = vsub.f32 0.0, %v4199
        %v4232 = vsub.f32 0.0, %v4200
        %v4233 = vsub.f32 0.0, %v4201
        %v4234 = vsub.f32 0.0, %v4202
        %v4235 = vsub.f32 0.0, %v4203
        %v4236 = vsub.f32 0.0, %v4204
        %v4237 = vsub.f32 0.0, %v4205
        %v4238 = vsub.f32 0.0, %v4206
        %v4239 = vsub.f32 0.0, %v4207
        %v4240 = vsub.f32 0.0, %v4208
        %v4241 = vsub.f32 0.0, %v4209
        %v4242 = vsub.f32 0.0, %v4210
        %v4243 = vsub.f32 0.0, %v4211
        %v4244 = vsub.f32 0.0, %v4212
        %v4245 = vsub.f32 0.0, %v4213
        %v4246 = vsub.f32 0.0, %v4214
        %v4247 = vsub.f32 0.0, %v4215
        %v4248 = vsub.f32 0.0, %v4216
        %v4249 = vsub.f32 0.0, %v4217
        %v4250 = vsub.f32 0.0, %v4218
        %v4251 = vsub.f32 0.0, %v4219
        %v4252 = vsub.f32 0.0, %v4220
        %v4253 = vsub.f32 0.0, %v4221
        %v4254 = vsub.f32 0.0, %v4222
        %v4255 = vsub.f32 0.0, %v4223
        %v4256 = vsub.f32 0.0, %v4224
        %v4257 = vmul.f32 %v4225, 1.442695
        %v4258 = vpow.pop %v4257
        %v4259 = vmul.f32 %v4226, 1.442695
        %v4260 = vpow.pop %v4259
        %v4261 = vmul.f32 %v4227, 1.442695
        %v4262 = vpow.pop %v4261
        %v4263 = vmul.f32 %v4228, 1.442695
        %v4264 = vpow.pop %v4263
        %v4265 = vmul.f32 %v4229, 1.442695
        %v4266 = vpow.pop %v4265
        %v4267 = vmul.f32 %v4230, 1.442695
        %v4268 = vpow.pop %v4267
        %v4269 = vmul.f32 %v4231, 1.442695
        %v4270 = vpow.pop %v4269
        %v4271 = vmul.f32 %v4232, 1.442695
        %v4272 = vpow.pop %v4271
        %v4273 = vmul.f32 %v4233, 1.442695
        %v4274 = vpow.pop %v4273
        %v4275 = vmul.f32 %v4234, 1.442695
        %v4276 = vpow.pop %v4275
        %v4277 = vmul.f32 %v4235, 1.442695
        %v4278 = vpow.pop %v4277
        %v4279 = vmul.f32 %v4236, 1.442695
        %v4280 = vpow.pop %v4279
        %v4281 = vmul.f32 %v4237, 1.442695
        %v4282 = vpow.pop %v4281
        %v4283 = vmul.f32 %v4238, 1.442695
        %v4284 = vpow.pop %v4283
        %v4285 = vmul.f32 %v4239, 1.442695
        %v4286 = vpow.pop %v4285
        %v4287 = vmul.f32 %v4240, 1.442695
        %v4288 = vpow.pop %v4287
        %v4289 = vmul.f32 %v4241, 1.442695
        %v4290 = vpow.pop %v4289
        %v4291 = vmul.f32 %v4242, 1.442695
        %v4292 = vpow.pop %v4291
        %v4293 = vmul.f32 %v4243, 1.442695
        %v4294 = vpow.pop %v4293
        %v4295 = vmul.f32 %v4244, 1.442695
        %v4296 = vpow.pop %v4295
        %v4297 = vmul.f32 %v4245, 1.442695
        %v4298 = vpow.pop %v4297
        %v4299 = vmul.f32 %v4246, 1.442695
        %v4300 = vpow.pop %v4299
        %v4301 = vmul.f32 %v4247, 1.442695
        %v4302 = vpow.pop %v4301
        %v4303 = vmul.f32 %v4248, 1.442695
        %v4304 = vpow.pop %v4303
        %v4305 = vmul.f32 %v4249, 1.442695
        %v4306 = vpow.pop %v4305
        %v4307 = vmul.f32 %v4250, 1.442695
        %v4308 = vpow.pop %v4307
        %v4309 = vmul.f32 %v4251, 1.442695
        %v4310 = vpow.pop %v4309
        %v4311 = vmul.f32 %v4252, 1.442695
        %v4312 = vpow.pop %v4311
        %v4313 = vmul.f32 %v4253, 1.442695
        %v4314 = vpow.pop %v4313
        %v4315 = vmul.f32 %v4254, 1.442695
        %v4316 = vpow.pop %v4315
        %v4317 = vmul.f32 %v4255, 1.442695
        %v4318 = vpow.pop %v4317
        %v4319 = vmul.f32 %v4256, 1.442695
        %v4320 = vpow.pop %v4319
        %v4321 = vadd.f32 %v4258, 1.0
        %v4322 = vadd.f32 %v4260, 1.0
        %v4323 = vadd.f32 %v4262, 1.0
        %v4324 = vadd.f32 %v4264, 1.0
        %v4325 = vadd.f32 %v4266, 1.0
        %v4326 = vadd.f32 %v4268, 1.0
        %v4327 = vadd.f32 %v4270, 1.0
        %v4328 = vadd.f32 %v4272, 1.0
        %v4329 = vadd.f32 %v4274, 1.0
        %v4330 = vadd.f32 %v4276, 1.0
        %v4331 = vadd.f32 %v4278, 1.0
        %v4332 = vadd.f32 %v4280, 1.0
        %v4333 = vadd.f32 %v4282, 1.0
        %v4334 = vadd.f32 %v4284, 1.0
        %v4335 = vadd.f32 %v4286, 1.0
        %v4336 = vadd.f32 %v4288, 1.0
        %v4337 = vadd.f32 %v4290, 1.0
        %v4338 = vadd.f32 %v4292, 1.0
        %v4339 = vadd.f32 %v4294, 1.0
        %v4340 = vadd.f32 %v4296, 1.0
        %v4341 = vadd.f32 %v4298, 1.0
        %v4342 = vadd.f32 %v4300, 1.0
        %v4343 = vadd.f32 %v4302, 1.0
        %v4344 = vadd.f32 %v4304, 1.0
        %v4345 = vadd.f32 %v4306, 1.0
        %v4346 = vadd.f32 %v4308, 1.0
        %v4347 = vadd.f32 %v4310, 1.0
        %v4348 = vadd.f32 %v4312, 1.0
        %v4349 = vadd.f32 %v4314, 1.0
        %v4350 = vadd.f32 %v4316, 1.0
        %v4351 = vadd.f32 %v4318, 1.0
        %v4352 = vadd.f32 %v4320, 1.0
        %v4353 = vrcp.pop %v4321
        %v4354 = vrcp.pop %v4322
        %v4355 = vrcp.pop %v4323
        %v4356 = vrcp.pop %v4324
        %v4357 = vrcp.pop %v4325
        %v4358 = vrcp.pop %v4326
        %v4359 = vrcp.pop %v4327
        %v4360 = vrcp.pop %v4328
        %v4361 = vrcp.pop %v4329
        %v4362 = vrcp.pop %v4330
        %v4363 = vrcp.pop %v4331
        %v4364 = vrcp.pop %v4332
        %v4365 = vrcp.pop %v4333
        %v4366 = vrcp.pop %v4334
        %v4367 = vrcp.pop %v4335
        %v4368 = vrcp.pop %v4336
        %v4369 = vrcp.pop %v4337
        %v4370 = vrcp.pop %v4338
        %v4371 = vrcp.pop %v4339
        %v4372 = vrcp.pop %v4340
        %v4373 = vrcp.pop %v4341
        %v4374 = vrcp.pop %v4342
        %v4375 = vrcp.pop %v4343
        %v4376 = vrcp.pop %v4344
        %v4377 = vrcp.pop %v4345
        %v4378 = vrcp.pop %v4346
        %v4379 = vrcp.pop %v4347
        %v4380 = vrcp.pop %v4348
        %v4381 = vrcp.pop %v4349
        %v4382 = vrcp.pop %v4350
        %v4383 = vrcp.pop %v4351
        %v4384 = vrcp.pop %v4352
        %v4385 = vmul.f32 %v4193, %v4353
        %v4386 = vmul.f32 %v4194, %v4354
        %v4387 = vmul.f32 %v4195, %v4355
        %v4388 = vmul.f32 %v4196, %v4356
        %v4389 = vmul.f32 %v4197, %v4357
        %v4390 = vmul.f32 %v4198, %v4358
        %v4391 = vmul.f32 %v4199, %v4359
        %v4392 = vmul.f32 %v4200, %v4360
        %v4393 = vmul.f32 %v4201, %v4361
        %v4394 = vmul.f32 %v4202, %v4362
        %v4395 = vmul.f32 %v4203, %v4363
        %v4396 = vmul.f32 %v4204, %v4364
        %v4397 = vmul.f32 %v4205, %v4365
        %v4398 = vmul.f32 %v4206, %v4366
        %v4399 = vmul.f32 %v4207, %v4367
        %v4400 = vmul.f32 %v4208, %v4368
        %v4401 = vmul.f32 %v4209, %v4369
        %v4402 = vmul.f32 %v4210, %v4370
        %v4403 = vmul.f32 %v4211, %v4371
        %v4404 = vmul.f32 %v4212, %v4372
        %v4405 = vmul.f32 %v4213, %v4373
        %v4406 = vmul.f32 %v4214, %v4374
        %v4407 = vmul.f32 %v4215, %v4375
        %v4408 = vmul.f32 %v4216, %v4376
        %v4409 = vmul.f32 %v4217, %v4377
        %v4410 = vmul.f32 %v4218, %v4378
        %v4411 = vmul.f32 %v4219, %v4379
        %v4412 = vmul.f32 %v4220, %v4380
        %v4413 = vmul.f32 %v4221, %v4381
        %v4414 = vmul.f32 %v4222, %v4382
        %v4415 = vmul.f32 %v4223, %v4383
        %v4416 = vmul.f32 %v4224, %v4384
        %v4417 = vrot.slane %v4385, 7
        %v4418 = vrot.slane %v4386, 7
        %v4419 = vrot.slane %v4387, 7
        %v4420 = vrot.slane %v4388, 7
        %v4421 = vrot.slane %v4389, 7
        %v4422 = vrot.slane %v4390, 7
        %v4423 = vrot.slane %v4391, 7
        %v4424 = vrot.slane %v4392, 7
        %v4425 = vrot.slane %v4393, 7
        %v4426 = vrot.slane %v4394, 7
        %v4427 = vrot.slane %v4395, 7
        %v4428 = vrot.slane %v4396, 7
        %v4429 = vrot.slane %v4397, 7
        %v4430 = vrot.slane %v4398, 7
        %v4431 = vrot.slane %v4399, 7
        %v4432 = vrot.slane %v4400, 7
        %v4433 = vrot.slane %v4401, 7
        %v4434 = vrot.slane %v4402, 7
        %v4435 = vrot.slane %v4403, 7
        %v4436 = vrot.slane %v4404, 7
        %v4437 = vrot.slane %v4405, 7
        %v4438 = vrot.slane %v4406, 7
        %v4439 = vrot.slane %v4407, 7
        %v4440 = vrot.slane %v4408, 7
        %v4441 = vrot.slane %v4409, 7
        %v4442 = vrot.slane %v4410, 7
        %v4443 = vrot.slane %v4411, 7
        %v4444 = vrot.slane %v4412, 7
        %v4445 = vrot.slane %v4413, 7
        %v4446 = vrot.slane %v4414, 7
        %v4447 = vrot.slane %v4415, 7
        %v4448 = vrot.slane %v4416, 7
        %v4449 = vsel %vm1170, %v4447, %v4448
        %v4450 = vsel %vm1170, %v4446, %v4447
        %v4451 = vsel %vm1170, %v4445, %v4446
        %v4452 = vsel %vm1170, %v4444, %v4445
        %v4453 = vsel %vm1170, %v4443, %v4444
        %v4454 = vsel %vm1170, %v4442, %v4443
        %v4455 = vsel %vm1170, %v4441, %v4442
        %v4456 = vsel %vm1170, %v4440, %v4441
        %v4457 = vsel %vm1170, %v4439, %v4440
        %v4458 = vsel %vm1170, %v4438, %v4439
        %v4459 = vsel %vm1170, %v4437, %v4438
        %v4460 = vsel %vm1170, %v4436, %v4437
        %v4461 = vsel %vm1170, %v4435, %v4436
        %v4462 = vsel %vm1170, %v4434, %v4435
        %v4463 = vsel %vm1170, %v4433, %v4434
        %v4464 = vsel %vm1170, %v4432, %v4433
        %v4465 = vsel %vm1170, %v4431, %v4432
        %v4466 = vsel %vm1170, %v4430, %v4431
        %v4467 = vsel %vm1170, %v4429, %v4430
        %v4468 = vsel %vm1170, %v4428, %v4429
        %v4469 = vsel %vm1170, %v4427, %v4428
        %v4470 = vsel %vm1170, %v4426, %v4427
        %v4471 = vsel %vm1170, %v4425, %v4426
        %v4472 = vsel %vm1170, %v4424, %v4425
        %v4473 = vsel %vm1170, %v4423, %v4424
        %v4474 = vsel %vm1170, %v4422, %v4423
        %v4475 = vsel %vm1170, %v4421, %v4422
        %v4476 = vsel %vm1170, %v4420, %v4421
        %v4477 = vsel %vm1170, %v4419, %v4420
        %v4478 = vsel %vm1170, %v4418, %v4419
        %v4479 = vsel %vm1170, %v4417, %v4418
        %v4480 = vsel %vm1170, %v4448, %v4417
        %v4481 = vmul.f32 %v4449, %v1238
        %v4482 = vmul.f32 %v4480, %v1243
        %v4483 = vmul.f32 %v4479, %v1248
        %v4484 = vmul.f32 %v4478, %v1253
        %v4485 = vmul.f32 %v4477, %v1258
        %v4486 = vmul.f32 %v4476, %v1263
        %v4487 = vmul.f32 %v4475, %v1268
        %v4488 = vmul.f32 %v4474, %v1273
        %v4489 = vmul.f32 %v4473, %v1278
        %v4490 = vmul.f32 %v4472, %v1283
        %v4491 = vmul.f32 %v4471, %v1288
        %v4492 = vmul.f32 %v4470, %v1293
        %v4493 = vmul.f32 %v4469, %v1298
        %v4494 = vmul.f32 %v4468, %v1303
        %v4495 = vmul.f32 %v4467, %v1308
        %v4496 = vmul.f32 %v4466, %v1313
        %v4497 = vmul.f32 %v4465, %v1318
        %v4498 = vmul.f32 %v4464, %v1323
        %v4499 = vmul.f32 %v4463, %v1328
        %v4500 = vmul.f32 %v4462, %v1333
        %v4501 = vmul.f32 %v4461, %v1338
        %v4502 = vmul.f32 %v4460, %v1343
        %v4503 = vmul.f32 %v4459, %v1348
        %v4504 = vmul.f32 %v4458, %v1353
        %v4505 = vmul.f32 %v4457, %v1358
        %v4506 = vmul.f32 %v4456, %v1363
        %v4507 = vmul.f32 %v4455, %v1368
        %v4508 = vmul.f32 %v4454, %v1373
        %v4509 = vmul.f32 %v4453, %v1378
        %v4510 = vmul.f32 %v4452, %v1383
        %v4511 = vmul.f32 %v4451, %v1388
        %v4512 = vmul.f32 %v4450, %v1393
        %v4513 = vpack.c.bf16 %v4482, %v4481
        %v4514 = vpack.c.bf16 %v4484, %v4483
        %v4515 = vpack.c.bf16 %v4486, %v4485
        %v4516 = vpack.c.bf16 %v4488, %v4487
        %v4517 = vpack.c.bf16 %v4490, %v4489
        %v4518 = vpack.c.bf16 %v4492, %v4491
        %v4519 = vpack.c.bf16 %v4494, %v4493
        %v4520 = vpack.c.bf16 %v4496, %v4495
        %v4521 = vpack.c.bf16 %v4498, %v4497
        %v4522 = vpack.c.bf16 %v4500, %v4499
        %v4523 = vpack.c.bf16 %v4502, %v4501
        %v4524 = vpack.c.bf16 %v4504, %v4503
        %v4525 = vpack.c.bf16 %v4506, %v4505
        %v4526 = vpack.c.bf16 %v4508, %v4507
        %v4527 = vpack.c.bf16 %v4510, %v4509
        %v4528 = vpack.c.bf16 %v4512, %v4511
        %v4529 = vmul.f32 %v4416, %v1445
        %v4530 = vmul.f32 %v4385, %v1449
        %v4531 = vmul.f32 %v4386, %v1453
        %v4532 = vmul.f32 %v4387, %v1457
        %v4533 = vmul.f32 %v4388, %v1461
        %v4534 = vmul.f32 %v4389, %v1465
        %v4535 = vmul.f32 %v4390, %v1469
        %v4536 = vmul.f32 %v4391, %v1473
        %v4537 = vmul.f32 %v4392, %v1477
        %v4538 = vmul.f32 %v4393, %v1481
        %v4539 = vmul.f32 %v4394, %v1485
        %v4540 = vmul.f32 %v4395, %v1489
        %v4541 = vmul.f32 %v4396, %v1493
        %v4542 = vmul.f32 %v4397, %v1497
        %v4543 = vmul.f32 %v4398, %v1501
        %v4544 = vmul.f32 %v4399, %v1505
        %v4545 = vmul.f32 %v4400, %v1509
        %v4546 = vmul.f32 %v4401, %v1513
        %v4547 = vmul.f32 %v4402, %v1517
        %v4548 = vmul.f32 %v4403, %v1521
        %v4549 = vmul.f32 %v4404, %v1525
        %v4550 = vmul.f32 %v4405, %v1529
        %v4551 = vmul.f32 %v4406, %v1533
        %v4552 = vmul.f32 %v4407, %v1537
        %v4553 = vmul.f32 %v4408, %v1541
        %v4554 = vmul.f32 %v4409, %v1545
        %v4555 = vmul.f32 %v4410, %v1549
        %v4556 = vmul.f32 %v4411, %v1553
        %v4557 = vmul.f32 %v4412, %v1557
        %v4558 = vmul.f32 %v4413, %v1561
        %v4559 = vmul.f32 %v4414, %v1565
        %v4560 = vmul.f32 %v4415, %v1569
        %v4561 = vpack.c.bf16 %v4530, %v4529
        %v4562 = vpack.c.bf16 %v4532, %v4531
        %v4563 = vpack.c.bf16 %v4534, %v4533
        %v4564 = vpack.c.bf16 %v4536, %v4535
        %v4565 = vpack.c.bf16 %v4538, %v4537
        %v4566 = vpack.c.bf16 %v4540, %v4539
        %v4567 = vpack.c.bf16 %v4542, %v4541
        %v4568 = vpack.c.bf16 %v4544, %v4543
        %v4569 = vpack.c.bf16 %v4546, %v4545
        %v4570 = vpack.c.bf16 %v4548, %v4547
        %v4571 = vpack.c.bf16 %v4550, %v4549
        %v4572 = vpack.c.bf16 %v4552, %v4551
        %v4573 = vpack.c.bf16 %v4554, %v4553
        %v4574 = vpack.c.bf16 %v4556, %v4555
        %v4575 = vpack.c.bf16 %v4558, %v4557
        %v4576 = vpack.c.bf16 %v4560, %v4559
        %v4577 = vrot.slane %v4385, 1
        %v4578 = vrot.slane %v4386, 1
        %v4579 = vrot.slane %v4387, 1
        %v4580 = vrot.slane %v4388, 1
        %v4581 = vrot.slane %v4389, 1
        %v4582 = vrot.slane %v4390, 1
        %v4583 = vrot.slane %v4391, 1
        %v4584 = vrot.slane %v4392, 1
        %v4585 = vrot.slane %v4393, 1
        %v4586 = vrot.slane %v4394, 1
        %v4587 = vrot.slane %v4395, 1
        %v4588 = vrot.slane %v4396, 1
        %v4589 = vrot.slane %v4397, 1
        %v4590 = vrot.slane %v4398, 1
        %v4591 = vrot.slane %v4399, 1
        %v4592 = vrot.slane %v4400, 1
        %v4593 = vrot.slane %v4401, 1
        %v4594 = vrot.slane %v4402, 1
        %v4595 = vrot.slane %v4403, 1
        %v4596 = vrot.slane %v4404, 1
        %v4597 = vrot.slane %v4405, 1
        %v4598 = vrot.slane %v4406, 1
        %v4599 = vrot.slane %v4407, 1
        %v4600 = vrot.slane %v4408, 1
        %v4601 = vrot.slane %v4409, 1
        %v4602 = vrot.slane %v4410, 1
        %v4603 = vrot.slane %v4411, 1
        %v4604 = vrot.slane %v4412, 1
        %v4605 = vrot.slane %v4413, 1
        %v4606 = vrot.slane %v4414, 1
        %v4607 = vrot.slane %v4415, 1
        %v4608 = vrot.slane %v4416, 1
        %v4609 = vsel %vm1651, %v4607, %v4608
        %v4610 = vsel %vm1651, %v4606, %v4607
        %v4611 = vsel %vm1651, %v4605, %v4606
        %v4612 = vsel %vm1651, %v4604, %v4605
        %v4613 = vsel %vm1651, %v4603, %v4604
        %v4614 = vsel %vm1651, %v4602, %v4603
        %v4615 = vsel %vm1651, %v4601, %v4602
        %v4616 = vsel %vm1651, %v4600, %v4601
        %v4617 = vsel %vm1651, %v4599, %v4600
        %v4618 = vsel %vm1651, %v4598, %v4599
        %v4619 = vsel %vm1651, %v4597, %v4598
        %v4620 = vsel %vm1651, %v4596, %v4597
        %v4621 = vsel %vm1651, %v4595, %v4596
        %v4622 = vsel %vm1651, %v4594, %v4595
        %v4623 = vsel %vm1651, %v4593, %v4594
        %v4624 = vsel %vm1651, %v4592, %v4593
        %v4625 = vsel %vm1651, %v4591, %v4592
        %v4626 = vsel %vm1651, %v4590, %v4591
        %v4627 = vsel %vm1651, %v4589, %v4590
        %v4628 = vsel %vm1651, %v4588, %v4589
        %v4629 = vsel %vm1651, %v4587, %v4588
        %v4630 = vsel %vm1651, %v4586, %v4587
        %v4631 = vsel %vm1651, %v4585, %v4586
        %v4632 = vsel %vm1651, %v4584, %v4585
        %v4633 = vsel %vm1651, %v4583, %v4584
        %v4634 = vsel %vm1651, %v4582, %v4583
        %v4635 = vsel %vm1651, %v4581, %v4582
        %v4636 = vsel %vm1651, %v4580, %v4581
        %v4637 = vsel %vm1651, %v4579, %v4580
        %v4638 = vsel %vm1651, %v4578, %v4579
        %v4639 = vsel %vm1651, %v4577, %v4578
        %v4640 = vsel %vm1651, %v4608, %v4577
        %v4641 = vmul.f32 %v4640, %v1686
        %v4642 = vmul.f32 %v4639, %v1690
        %v4643 = vmul.f32 %v4638, %v1694
        %v4644 = vmul.f32 %v4637, %v1698
        %v4645 = vmul.f32 %v4636, %v1702
        %v4646 = vmul.f32 %v4635, %v1706
        %v4647 = vmul.f32 %v4634, %v1710
        %v4648 = vmul.f32 %v4633, %v1714
        %v4649 = vmul.f32 %v4632, %v1718
        %v4650 = vmul.f32 %v4631, %v1722
        %v4651 = vmul.f32 %v4630, %v1726
        %v4652 = vmul.f32 %v4629, %v1730
        %v4653 = vmul.f32 %v4628, %v1734
        %v4654 = vmul.f32 %v4627, %v1738
        %v4655 = vmul.f32 %v4626, %v1742
        %v4656 = vmul.f32 %v4625, %v1746
        %v4657 = vmul.f32 %v4624, %v1750
        %v4658 = vmul.f32 %v4623, %v1754
        %v4659 = vmul.f32 %v4622, %v1758
        %v4660 = vmul.f32 %v4621, %v1762
        %v4661 = vmul.f32 %v4620, %v1766
        %v4662 = vmul.f32 %v4619, %v1770
        %v4663 = vmul.f32 %v4618, %v1774
        %v4664 = vmul.f32 %v4617, %v1778
        %v4665 = vmul.f32 %v4616, %v1782
        %v4666 = vmul.f32 %v4615, %v1786
        %v4667 = vmul.f32 %v4614, %v1790
        %v4668 = vmul.f32 %v4613, %v1794
        %v4669 = vmul.f32 %v4612, %v1798
        %v4670 = vmul.f32 %v4611, %v1802
        %v4671 = vmul.f32 %v4610, %v1806
        %v4672 = vmul.f32 %v4609, %v1810
        %v4673 = vpack.c.bf16 %v4642, %v4641
        %v4674 = vpack.c.bf16 %v4644, %v4643
        %v4675 = vpack.c.bf16 %v4646, %v4645
        %v4676 = vpack.c.bf16 %v4648, %v4647
        %v4677 = vpack.c.bf16 %v4650, %v4649
        %v4678 = vpack.c.bf16 %v4652, %v4651
        %v4679 = vpack.c.bf16 %v4654, %v4653
        %v4680 = vpack.c.bf16 %v4656, %v4655
        %v4681 = vpack.c.bf16 %v4658, %v4657
        %v4682 = vpack.c.bf16 %v4660, %v4659
        %v4683 = vpack.c.bf16 %v4662, %v4661
        %v4684 = vpack.c.bf16 %v4664, %v4663
        %v4685 = vpack.c.bf16 %v4666, %v4665
        %v4686 = vpack.c.bf16 %v4668, %v4667
        %v4687 = vpack.c.bf16 %v4670, %v4669
        %v4688 = vpack.c.bf16 %v4672, %v4671
        %v4689 = vmul.f32 %v4480, %v1862
        %v4690 = vmul.f32 %v4479, %v1866
        %v4691 = vmul.f32 %v4478, %v1870
        %v4692 = vmul.f32 %v4477, %v1874
        %v4693 = vmul.f32 %v4476, %v1878
        %v4694 = vmul.f32 %v4475, %v1882
        %v4695 = vmul.f32 %v4474, %v1886
        %v4696 = vmul.f32 %v4473, %v1890
        %v4697 = vmul.f32 %v4472, %v1894
        %v4698 = vmul.f32 %v4471, %v1898
        %v4699 = vmul.f32 %v4470, %v1902
        %v4700 = vmul.f32 %v4469, %v1906
        %v4701 = vmul.f32 %v4468, %v1910
        %v4702 = vmul.f32 %v4467, %v1914
        %v4703 = vmul.f32 %v4466, %v1918
        %v4704 = vmul.f32 %v4465, %v1922
        %v4705 = vmul.f32 %v4464, %v1926
        %v4706 = vmul.f32 %v4463, %v1930
        %v4707 = vmul.f32 %v4462, %v1934
        %v4708 = vmul.f32 %v4461, %v1938
        %v4709 = vmul.f32 %v4460, %v1942
        %v4710 = vmul.f32 %v4459, %v1946
        %v4711 = vmul.f32 %v4458, %v1950
        %v4712 = vmul.f32 %v4457, %v1954
        %v4713 = vmul.f32 %v4456, %v1958
        %v4714 = vmul.f32 %v4455, %v1962
        %v4715 = vmul.f32 %v4454, %v1966
        %v4716 = vmul.f32 %v4453, %v1970
        %v4717 = vmul.f32 %v4452, %v1974
        %v4718 = vmul.f32 %v4451, %v1978
        %v4719 = vmul.f32 %v4450, %v1982
        %v4720 = vmul.f32 %v4449, %v1986
        %v4721 = vpack.c.bf16 %v4690, %v4689
        %v4722 = vpack.c.bf16 %v4692, %v4691
        %v4723 = vpack.c.bf16 %v4694, %v4693
        %v4724 = vpack.c.bf16 %v4696, %v4695
        %v4725 = vpack.c.bf16 %v4698, %v4697
        %v4726 = vpack.c.bf16 %v4700, %v4699
        %v4727 = vpack.c.bf16 %v4702, %v4701
        %v4728 = vpack.c.bf16 %v4704, %v4703
        %v4729 = vpack.c.bf16 %v4706, %v4705
        %v4730 = vpack.c.bf16 %v4708, %v4707
        %v4731 = vpack.c.bf16 %v4710, %v4709
        %v4732 = vpack.c.bf16 %v4712, %v4711
        %v4733 = vpack.c.bf16 %v4714, %v4713
        %v4734 = vpack.c.bf16 %v4716, %v4715
        %v4735 = vpack.c.bf16 %v4718, %v4717
        %v4736 = vpack.c.bf16 %v4720, %v4719
        %v4737 = vpack.c.bf16 %v4386, %v4385
        %v4738 = vpack.c.bf16 %v4388, %v4387
        %v4739 = vpack.c.bf16 %v4390, %v4389
        %v4740 = vpack.c.bf16 %v4392, %v4391
        %v4741 = vpack.c.bf16 %v4394, %v4393
        %v4742 = vpack.c.bf16 %v4396, %v4395
        %v4743 = vpack.c.bf16 %v4398, %v4397
        %v4744 = vpack.c.bf16 %v4400, %v4399
        %v4745 = vpack.c.bf16 %v4402, %v4401
        %v4746 = vpack.c.bf16 %v4404, %v4403
        %v4747 = vpack.c.bf16 %v4406, %v4405
        %v4748 = vpack.c.bf16 %v4408, %v4407
        %v4749 = vpack.c.bf16 %v4410, %v4409
        %v4750 = vpack.c.bf16 %v4412, %v4411
        %v4751 = vpack.c.bf16 %v4414, %v4413
        %v4752 = vpack.c.bf16 %v4416, %v4415
        %v4753 = vmul.f32 %v4639, %v2054
        %v4754 = vmul.f32 %v4638, %v2058
        %v4755 = vmul.f32 %v4637, %v2062
        %v4756 = vmul.f32 %v4636, %v2066
        %v4757 = vmul.f32 %v4635, %v2070
        %v4758 = vmul.f32 %v4634, %v2074
        %v4759 = vmul.f32 %v4633, %v2078
        %v4760 = vmul.f32 %v4632, %v2082
        %v4761 = vmul.f32 %v4631, %v2086
        %v4762 = vmul.f32 %v4630, %v2090
        %v4763 = vmul.f32 %v4629, %v2094
        %v4764 = vmul.f32 %v4628, %v2098
        %v4765 = vmul.f32 %v4627, %v2102
        %v4766 = vmul.f32 %v4626, %v2106
        %v4767 = vmul.f32 %v4625, %v2110
        %v4768 = vmul.f32 %v4624, %v2114
        %v4769 = vmul.f32 %v4623, %v2118
        %v4770 = vmul.f32 %v4622, %v2122
        %v4771 = vmul.f32 %v4621, %v2126
        %v4772 = vmul.f32 %v4620, %v2130
        %v4773 = vmul.f32 %v4619, %v2134
        %v4774 = vmul.f32 %v4618, %v2138
        %v4775 = vmul.f32 %v4617, %v2142
        %v4776 = vmul.f32 %v4616, %v2146
        %v4777 = vmul.f32 %v4615, %v2150
        %v4778 = vmul.f32 %v4614, %v2154
        %v4779 = vmul.f32 %v4613, %v2158
        %v4780 = vmul.f32 %v4612, %v2162
        %v4781 = vmul.f32 %v4611, %v2166
        %v4782 = vmul.f32 %v4610, %v2170
        %v4783 = vmul.f32 %v4609, %v2174
        %v4784 = vmul.f32 %v4640, %v2178
        %v4785 = vpack.c.bf16 %v4754, %v4753
        %v4786 = vpack.c.bf16 %v4756, %v4755
        %v4787 = vpack.c.bf16 %v4758, %v4757
        %v4788 = vpack.c.bf16 %v4760, %v4759
        %v4789 = vpack.c.bf16 %v4762, %v4761
        %v4790 = vpack.c.bf16 %v4764, %v4763
        %v4791 = vpack.c.bf16 %v4766, %v4765
        %v4792 = vpack.c.bf16 %v4768, %v4767
        %v4793 = vpack.c.bf16 %v4770, %v4769
        %v4794 = vpack.c.bf16 %v4772, %v4771
        %v4795 = vpack.c.bf16 %v4774, %v4773
        %v4796 = vpack.c.bf16 %v4776, %v4775
        %v4797 = vpack.c.bf16 %v4778, %v4777
        %v4798 = vpack.c.bf16 %v4780, %v4779
        %v4799 = vpack.c.bf16 %v4782, %v4781
        %v4800 = vpack.c.bf16 %v4784, %v4783
        %v4801 = vmul.f32 %v4479, %v2230
        %v4802 = vmul.f32 %v4478, %v2234
        %v4803 = vmul.f32 %v4477, %v2238
        %v4804 = vmul.f32 %v4476, %v2242
        %v4805 = vmul.f32 %v4475, %v2246
        %v4806 = vmul.f32 %v4474, %v2250
        %v4807 = vmul.f32 %v4473, %v2254
        %v4808 = vmul.f32 %v4472, %v2258
        %v4809 = vmul.f32 %v4471, %v2262
        %v4810 = vmul.f32 %v4470, %v2266
        %v4811 = vmul.f32 %v4469, %v2270
        %v4812 = vmul.f32 %v4468, %v2274
        %v4813 = vmul.f32 %v4467, %v2278
        %v4814 = vmul.f32 %v4466, %v2282
        %v4815 = vmul.f32 %v4465, %v2286
        %v4816 = vmul.f32 %v4464, %v2290
        %v4817 = vmul.f32 %v4463, %v2294
        %v4818 = vmul.f32 %v4462, %v2298
        %v4819 = vmul.f32 %v4461, %v2302
        %v4820 = vmul.f32 %v4460, %v2306
        %v4821 = vmul.f32 %v4459, %v2310
        %v4822 = vmul.f32 %v4458, %v2314
        %v4823 = vmul.f32 %v4457, %v2318
        %v4824 = vmul.f32 %v4456, %v2322
        %v4825 = vmul.f32 %v4455, %v2326
        %v4826 = vmul.f32 %v4454, %v2330
        %v4827 = vmul.f32 %v4453, %v2334
        %v4828 = vmul.f32 %v4452, %v2338
        %v4829 = vmul.f32 %v4451, %v2342
        %v4830 = vmul.f32 %v4450, %v2346
        %v4831 = vmul.f32 %v4449, %v2350
        %v4832 = vmul.f32 %v4480, %v2354
        %v4833 = vpack.c.bf16 %v4802, %v4801
        %v4834 = vpack.c.bf16 %v4804, %v4803
        %v4835 = vpack.c.bf16 %v4806, %v4805
        %v4836 = vpack.c.bf16 %v4808, %v4807
        %v4837 = vpack.c.bf16 %v4810, %v4809
        %v4838 = vpack.c.bf16 %v4812, %v4811
        %v4839 = vpack.c.bf16 %v4814, %v4813
        %v4840 = vpack.c.bf16 %v4816, %v4815
        %v4841 = vpack.c.bf16 %v4818, %v4817
        %v4842 = vpack.c.bf16 %v4820, %v4819
        %v4843 = vpack.c.bf16 %v4822, %v4821
        %v4844 = vpack.c.bf16 %v4824, %v4823
        %v4845 = vpack.c.bf16 %v4826, %v4825
        %v4846 = vpack.c.bf16 %v4828, %v4827
        %v4847 = vpack.c.bf16 %v4830, %v4829
        %v4848 = vpack.c.bf16 %v4832, %v4831
        %v4849 = vmul.f32 %v4386, %v2406
        %v4850 = vmul.f32 %v4387, %v2410
        %v4851 = vmul.f32 %v4388, %v2414
        %v4852 = vmul.f32 %v4389, %v2418
        %v4853 = vmul.f32 %v4390, %v2422
        %v4854 = vmul.f32 %v4391, %v2426
        %v4855 = vmul.f32 %v4392, %v2430
        %v4856 = vmul.f32 %v4393, %v2434
        %v4857 = vmul.f32 %v4394, %v2438
        %v4858 = vmul.f32 %v4395, %v2442
        %v4859 = vmul.f32 %v4396, %v2446
        %v4860 = vmul.f32 %v4397, %v2450
        %v4861 = vmul.f32 %v4398, %v2454
        %v4862 = vmul.f32 %v4399, %v2458
        %v4863 = vmul.f32 %v4400, %v2462
        %v4864 = vmul.f32 %v4401, %v2466
        %v4865 = vmul.f32 %v4402, %v2470
        %v4866 = vmul.f32 %v4403, %v2474
        %v4867 = vmul.f32 %v4404, %v2478
        %v4868 = vmul.f32 %v4405, %v2482
        %v4869 = vmul.f32 %v4406, %v2486
        %v4870 = vmul.f32 %v4407, %v2490
        %v4871 = vmul.f32 %v4408, %v2494
        %v4872 = vmul.f32 %v4409, %v2498
        %v4873 = vmul.f32 %v4410, %v2502
        %v4874 = vmul.f32 %v4411, %v2506
        %v4875 = vmul.f32 %v4412, %v2510
        %v4876 = vmul.f32 %v4413, %v2514
        %v4877 = vmul.f32 %v4414, %v2518
        %v4878 = vmul.f32 %v4415, %v2522
        %v4879 = vmul.f32 %v4416, %v2526
        %v4880 = vmul.f32 %v4385, %v2530
        %v4881 = vpack.c.bf16 %v4850, %v4849
        %v4882 = vpack.c.bf16 %v4852, %v4851
        %v4883 = vpack.c.bf16 %v4854, %v4853
        %v4884 = vpack.c.bf16 %v4856, %v4855
        %v4885 = vpack.c.bf16 %v4858, %v4857
        %v4886 = vpack.c.bf16 %v4860, %v4859
        %v4887 = vpack.c.bf16 %v4862, %v4861
        %v4888 = vpack.c.bf16 %v4864, %v4863
        %v4889 = vpack.c.bf16 %v4866, %v4865
        %v4890 = vpack.c.bf16 %v4868, %v4867
        %v4891 = vpack.c.bf16 %v4870, %v4869
        %v4892 = vpack.c.bf16 %v4872, %v4871
        %v4893 = vpack.c.bf16 %v4874, %v4873
        %v4894 = vpack.c.bf16 %v4876, %v4875
        %v4895 = vpack.c.bf16 %v4878, %v4877
        %v4896 = vpack.c.bf16 %v4880, %v4879
        %v4897 = vmul.f32 %v4638, %v2582
        %v4898 = vmul.f32 %v4637, %v2586
        %v4899 = vmul.f32 %v4636, %v2590
        %v4900 = vmul.f32 %v4635, %v2594
        %v4901 = vmul.f32 %v4634, %v2598
        %v4902 = vmul.f32 %v4633, %v2602
        %v4903 = vmul.f32 %v4632, %v2606
        %v4904 = vmul.f32 %v4631, %v2610
        %v4905 = vmul.f32 %v4630, %v2614
        %v4906 = vmul.f32 %v4629, %v2618
        %v4907 = vmul.f32 %v4628, %v2622
        %v4908 = vmul.f32 %v4627, %v2626
        %v4909 = vmul.f32 %v4626, %v2630
        %v4910 = vmul.f32 %v4625, %v2634
        %v4911 = vmul.f32 %v4624, %v2638
        %v4912 = vmul.f32 %v4623, %v2642
        %v4913 = vmul.f32 %v4622, %v2646
        %v4914 = vmul.f32 %v4621, %v2650
        %v4915 = vmul.f32 %v4620, %v2654
        %v4916 = vmul.f32 %v4619, %v2658
        %v4917 = vmul.f32 %v4618, %v2662
        %v4918 = vmul.f32 %v4617, %v2666
        %v4919 = vmul.f32 %v4616, %v2670
        %v4920 = vmul.f32 %v4615, %v2674
        %v4921 = vmul.f32 %v4614, %v2678
        %v4922 = vmul.f32 %v4613, %v2682
        %v4923 = vmul.f32 %v4612, %v2686
        %v4924 = vmul.f32 %v4611, %v2690
        %v4925 = vmul.f32 %v4610, %v2694
        %v4926 = vmul.f32 %v4609, %v2698
        %v4927 = vmul.f32 %v4640, %v2702
        %v4928 = vmul.f32 %v4639, %v2706
        %v4929 = vpack.c.bf16 %v4898, %v4897
        %v4930 = vpack.c.bf16 %v4900, %v4899
        %v4931 = vpack.c.bf16 %v4902, %v4901
        %v4932 = vpack.c.bf16 %v4904, %v4903
        %v4933 = vpack.c.bf16 %v4906, %v4905
        %v4934 = vpack.c.bf16 %v4908, %v4907
        %v4935 = vpack.c.bf16 %v4910, %v4909
        %v4936 = vpack.c.bf16 %v4912, %v4911
        %v4937 = vpack.c.bf16 %v4914, %v4913
        %v4938 = vpack.c.bf16 %v4916, %v4915
        %v4939 = vpack.c.bf16 %v4918, %v4917
        %v4940 = vpack.c.bf16 %v4920, %v4919
        %v4941 = vpack.c.bf16 %v4922, %v4921
        %v4942 = vpack.c.bf16 %v4924, %v4923
        %v4943 = vpack.c.bf16 %v4926, %v4925
        %v4944 = vpack.c.bf16 %v4928, %v4927
        %4961 = vrot.lane.b32.xlu0 %v4561, 32
        %v4962 = vpop.permute.xlu0 %4961
        %4963 = vrot.lane.b32.xlu0 %v4562, 32
        %v4964 = vpop.permute.xlu0 %4963
        %4965 = vrot.lane.b32.xlu0 %v4563, 32
        %v4966 = vpop.permute.xlu0 %4965
        %4967 = vrot.lane.b32.xlu0 %v4564, 32
        %v4968 = vpop.permute.xlu0 %4967
        %4969 = vrot.lane.b32.xlu0 %v4565, 32
        %v4970 = vpop.permute.xlu0 %4969
        %4971 = vrot.lane.b32.xlu0 %v4566, 32
        %v4972 = vpop.permute.xlu0 %4971
        %4973 = vrot.lane.b32.xlu0 %v4567, 32
        %v4974 = vpop.permute.xlu0 %4973
        %4975 = vrot.lane.b32.xlu0 %v4568, 32
        %v4976 = vpop.permute.xlu0 %4975
        %4977 = vrot.lane.b32.xlu0 %v4569, 32
        %v4978 = vpop.permute.xlu0 %4977
        %4979 = vrot.lane.b32.xlu0 %v4570, 32
        %v4980 = vpop.permute.xlu0 %4979
        %4981 = vrot.lane.b32.xlu0 %v4571, 32
        %v4982 = vpop.permute.xlu0 %4981
        %4983 = vrot.lane.b32.xlu0 %v4572, 32
        %v4984 = vpop.permute.xlu0 %4983
        %4985 = vrot.lane.b32.xlu0 %v4573, 32
        %v4986 = vpop.permute.xlu0 %4985
        %4987 = vrot.lane.b32.xlu0 %v4574, 32
        %v4988 = vpop.permute.xlu0 %4987
        %4989 = vrot.lane.b32.xlu0 %v4575, 32
        %v4990 = vpop.permute.xlu0 %4989
        %4991 = vrot.lane.b32.xlu0 %v4576, 32
        %v4992 = vpop.permute.xlu0 %4991
        %5009 = vrot.lane.b32.xlu0 %v4673, 64
        %v5010 = vpop.permute.xlu0 %5009
        %5011 = vrot.lane.b32.xlu0 %v4674, 64
        %v5012 = vpop.permute.xlu0 %5011
        %5013 = vrot.lane.b32.xlu0 %v4675, 64
        %v5014 = vpop.permute.xlu0 %5013
        %5015 = vrot.lane.b32.xlu0 %v4676, 64
        %v5016 = vpop.permute.xlu0 %5015
        %5017 = vrot.lane.b32.xlu0 %v4677, 64
        %v5018 = vpop.permute.xlu0 %5017
        %5019 = vrot.lane.b32.xlu0 %v4678, 64
        %v5020 = vpop.permute.xlu0 %5019
        %5021 = vrot.lane.b32.xlu0 %v4679, 64
        %v5022 = vpop.permute.xlu0 %5021
        %5023 = vrot.lane.b32.xlu0 %v4680, 64
        %v5024 = vpop.permute.xlu0 %5023
        %5025 = vrot.lane.b32.xlu0 %v4681, 64
        %v5026 = vpop.permute.xlu0 %5025
        %5027 = vrot.lane.b32.xlu0 %v4682, 64
        %v5028 = vpop.permute.xlu0 %5027
        %5029 = vrot.lane.b32.xlu0 %v4683, 64
        %v5030 = vpop.permute.xlu0 %5029
        %5031 = vrot.lane.b32.xlu0 %v4684, 64
        %v5032 = vpop.permute.xlu0 %5031
        %5033 = vrot.lane.b32.xlu0 %v4685, 64
        %v5034 = vpop.permute.xlu0 %5033
        %5035 = vrot.lane.b32.xlu0 %v4686, 64
        %v5036 = vpop.permute.xlu0 %5035
        %5037 = vrot.lane.b32.xlu0 %v4687, 64
        %v5038 = vpop.permute.xlu0 %5037
        %5039 = vrot.lane.b32.xlu0 %v4688, 64
        %v5040 = vpop.permute.xlu0 %5039
        %5057 = vrot.lane.b32.xlu0 %v4721, 96
        %v5058 = vpop.permute.xlu0 %5057
        %5059 = vrot.lane.b32.xlu0 %v4722, 96
        %v5060 = vpop.permute.xlu0 %5059
        %5061 = vrot.lane.b32.xlu0 %v4723, 96
        %v5062 = vpop.permute.xlu0 %5061
        %5063 = vrot.lane.b32.xlu0 %v4724, 96
        %v5064 = vpop.permute.xlu0 %5063
        %5065 = vrot.lane.b32.xlu0 %v4725, 96
        %v5066 = vpop.permute.xlu0 %5065
        %5067 = vrot.lane.b32.xlu0 %v4726, 96
        %v5068 = vpop.permute.xlu0 %5067
        %5069 = vrot.lane.b32.xlu0 %v4727, 96
        %v5070 = vpop.permute.xlu0 %5069
        %5071 = vrot.lane.b32.xlu0 %v4728, 96
        %v5072 = vpop.permute.xlu0 %5071
        %5073 = vrot.lane.b32.xlu0 %v4729, 96
        %v5074 = vpop.permute.xlu0 %5073
        %5075 = vrot.lane.b32.xlu0 %v4730, 96
        %v5076 = vpop.permute.xlu0 %5075
        %5077 = vrot.lane.b32.xlu0 %v4731, 96
        %v5078 = vpop.permute.xlu0 %5077
        %5079 = vrot.lane.b32.xlu0 %v4732, 96
        %v5080 = vpop.permute.xlu0 %5079
        %5081 = vrot.lane.b32.xlu0 %v4733, 96
        %v5082 = vpop.permute.xlu0 %5081
        %5083 = vrot.lane.b32.xlu0 %v4734, 96
        %v5084 = vpop.permute.xlu0 %5083
        %5085 = vrot.lane.b32.xlu0 %v4735, 96
        %v5086 = vpop.permute.xlu0 %5085
        %5087 = vrot.lane.b32.xlu0 %v4736, 96
        %v5088 = vpop.permute.xlu0 %5087
        %5105 = vrot.lane.b32.xlu0 %v4785, 32
        %v5106 = vpop.permute.xlu0 %5105
        %5107 = vrot.lane.b32.xlu0 %v4786, 32
        %v5108 = vpop.permute.xlu0 %5107
        %5109 = vrot.lane.b32.xlu0 %v4787, 32
        %v5110 = vpop.permute.xlu0 %5109
        %5111 = vrot.lane.b32.xlu0 %v4788, 32
        %v5112 = vpop.permute.xlu0 %5111
        %5113 = vrot.lane.b32.xlu0 %v4789, 32
        %v5114 = vpop.permute.xlu0 %5113
        %5115 = vrot.lane.b32.xlu0 %v4790, 32
        %v5116 = vpop.permute.xlu0 %5115
        %5117 = vrot.lane.b32.xlu0 %v4791, 32
        %v5118 = vpop.permute.xlu0 %5117
        %5119 = vrot.lane.b32.xlu0 %v4792, 32
        %v5120 = vpop.permute.xlu0 %5119
        %5121 = vrot.lane.b32.xlu0 %v4793, 32
        %v5122 = vpop.permute.xlu0 %5121
        %5123 = vrot.lane.b32.xlu0 %v4794, 32
        %v5124 = vpop.permute.xlu0 %5123
        %5125 = vrot.lane.b32.xlu0 %v4795, 32
        %v5126 = vpop.permute.xlu0 %5125
        %5127 = vrot.lane.b32.xlu0 %v4796, 32
        %v5128 = vpop.permute.xlu0 %5127
        %5129 = vrot.lane.b32.xlu0 %v4797, 32
        %v5130 = vpop.permute.xlu0 %5129
        %5131 = vrot.lane.b32.xlu0 %v4798, 32
        %v5132 = vpop.permute.xlu0 %5131
        %5133 = vrot.lane.b32.xlu0 %v4799, 32
        %v5134 = vpop.permute.xlu0 %5133
        %5135 = vrot.lane.b32.xlu0 %v4800, 32
        %v5136 = vpop.permute.xlu0 %5135
        %5153 = vrot.lane.b32.xlu0 %v4833, 64
        %v5154 = vpop.permute.xlu0 %5153
        %5155 = vrot.lane.b32.xlu0 %v4834, 64
        %v5156 = vpop.permute.xlu0 %5155
        %5157 = vrot.lane.b32.xlu0 %v4835, 64
        %v5158 = vpop.permute.xlu0 %5157
        %5159 = vrot.lane.b32.xlu0 %v4836, 64
        %v5160 = vpop.permute.xlu0 %5159
        %5161 = vrot.lane.b32.xlu0 %v4837, 64
        %v5162 = vpop.permute.xlu0 %5161
        %5163 = vrot.lane.b32.xlu0 %v4838, 64
        %v5164 = vpop.permute.xlu0 %5163
        %5165 = vrot.lane.b32.xlu0 %v4839, 64
        %v5166 = vpop.permute.xlu0 %5165
        %5167 = vrot.lane.b32.xlu0 %v4840, 64
        %v5168 = vpop.permute.xlu0 %5167
        %5169 = vrot.lane.b32.xlu0 %v4841, 64
        %v5170 = vpop.permute.xlu0 %5169
        %5171 = vrot.lane.b32.xlu0 %v4842, 64
        %v5172 = vpop.permute.xlu0 %5171
        %5173 = vrot.lane.b32.xlu0 %v4843, 64
        %v5174 = vpop.permute.xlu0 %5173
        %5175 = vrot.lane.b32.xlu0 %v4844, 64
        %v5176 = vpop.permute.xlu0 %5175
        %5177 = vrot.lane.b32.xlu0 %v4845, 64
        %v5178 = vpop.permute.xlu0 %5177
        %5179 = vrot.lane.b32.xlu0 %v4846, 64
        %v5180 = vpop.permute.xlu0 %5179
        %5181 = vrot.lane.b32.xlu0 %v4847, 64
        %v5182 = vpop.permute.xlu0 %5181
        %5183 = vrot.lane.b32.xlu0 %v4848, 64
        %v5184 = vpop.permute.xlu0 %5183
        %5201 = vrot.lane.b32.xlu0 %v4881, 96
        %v5202 = vpop.permute.xlu0 %5201
        %5203 = vrot.lane.b32.xlu0 %v4882, 96
        %v5204 = vpop.permute.xlu0 %5203
        %5205 = vrot.lane.b32.xlu0 %v4883, 96
        %v5206 = vpop.permute.xlu0 %5205
        %5207 = vrot.lane.b32.xlu0 %v4884, 96
        %v5208 = vpop.permute.xlu0 %5207
        %5209 = vrot.lane.b32.xlu0 %v4885, 96
        %v5210 = vpop.permute.xlu0 %5209
        %5211 = vrot.lane.b32.xlu0 %v4886, 96
        %v5212 = vpop.permute.xlu0 %5211
        %5213 = vrot.lane.b32.xlu0 %v4887, 96
        %v5214 = vpop.permute.xlu0 %5213
        %5215 = vrot.lane.b32.xlu0 %v4888, 96
        %v5216 = vpop.permute.xlu0 %5215
        %5217 = vrot.lane.b32.xlu0 %v4889, 96
        %v5218 = vpop.permute.xlu0 %5217
        %5219 = vrot.lane.b32.xlu0 %v4890, 96
        %v5220 = vpop.permute.xlu0 %5219
        %5221 = vrot.lane.b32.xlu0 %v4891, 96
        %v5222 = vpop.permute.xlu0 %5221
        %5223 = vrot.lane.b32.xlu0 %v4892, 96
        %v5224 = vpop.permute.xlu0 %5223
        %5225 = vrot.lane.b32.xlu0 %v4893, 96
        %v5226 = vpop.permute.xlu0 %5225
        %5227 = vrot.lane.b32.xlu0 %v4894, 96
        %v5228 = vpop.permute.xlu0 %5227
        %5229 = vrot.lane.b32.xlu0 %v4895, 96
        %v5230 = vpop.permute.xlu0 %5229
        %5231 = vrot.lane.b32.xlu0 %v4896, 96
        %v5232 = vpop.permute.xlu0 %5231
        %v5235 = vsel %vm600, %v4513, %v4962
        %v5238 = vsel %vm600, %v4514, %v4964
        %v5241 = vsel %vm600, %v4515, %v4966
        %v5244 = vsel %vm600, %v4516, %v4968
        %v5247 = vsel %vm600, %v4517, %v4970
        %v5250 = vsel %vm600, %v4518, %v4972
        %v5253 = vsel %vm600, %v4519, %v4974
        %v5256 = vsel %vm600, %v4520, %v4976
        %v5259 = vsel %vm600, %v4521, %v4978
        %v5262 = vsel %vm600, %v4522, %v4980
        %v5265 = vsel %vm600, %v4523, %v4982
        %v5268 = vsel %vm600, %v4524, %v4984
        %v5271 = vsel %vm600, %v4525, %v4986
        %v5274 = vsel %vm600, %v4526, %v4988
        %v5277 = vsel %vm600, %v4527, %v4990
        %v5280 = vsel %vm600, %v4528, %v4992
        %v5282 = vsel %vm3092, %v5235, %v5010
        %v5284 = vsel %vm3092, %v5238, %v5012
        %v5286 = vsel %vm3092, %v5241, %v5014
        %v5288 = vsel %vm3092, %v5244, %v5016
        %v5290 = vsel %vm3092, %v5247, %v5018
        %v5292 = vsel %vm3092, %v5250, %v5020
        %v5294 = vsel %vm3092, %v5253, %v5022
        %v5296 = vsel %vm3092, %v5256, %v5024
        %v5298 = vsel %vm3092, %v5259, %v5026
        %v5300 = vsel %vm3092, %v5262, %v5028
        %v5302 = vsel %vm3092, %v5265, %v5030
        %v5304 = vsel %vm3092, %v5268, %v5032
        %v5306 = vsel %vm3092, %v5271, %v5034
        %v5308 = vsel %vm3092, %v5274, %v5036
        %v5310 = vsel %vm3092, %v5277, %v5038
        %v5312 = vsel %vm3092, %v5280, %v5040
        %v5314 = vsel %vm3125, %v5282, %v5058
        %v5317 = vsel %vm3125, %v5284, %v5060
        %v5320 = vsel %vm3125, %v5286, %v5062
        %v5323 = vsel %vm3125, %v5288, %v5064
        %v5326 = vsel %vm3125, %v5290, %v5066
        %v5329 = vsel %vm3125, %v5292, %v5068
        %v5332 = vsel %vm3125, %v5294, %v5070
        %v5335 = vsel %vm3125, %v5296, %v5072
        %v5338 = vsel %vm3125, %v5298, %v5074
        %v5341 = vsel %vm3125, %v5300, %v5076
        %v5344 = vsel %vm3125, %v5302, %v5078
        %v5347 = vsel %vm3125, %v5304, %v5080
        %v5350 = vsel %vm3125, %v5306, %v5082
        %v5353 = vsel %vm3125, %v5308, %v5084
        %v5356 = vsel %vm3125, %v5310, %v5086
        %v5359 = vsel %vm3125, %v5312, %v5088
        %v5363 = vsel %vm600, %v4737, %v5106
        %v5366 = vsel %vm600, %v4738, %v5108
        %v5369 = vsel %vm600, %v4739, %v5110
        %v5372 = vsel %vm600, %v4740, %v5112
        %v5375 = vsel %vm600, %v4741, %v5114
        %v5378 = vsel %vm600, %v4742, %v5116
        %v5381 = vsel %vm600, %v4743, %v5118
        %v5384 = vsel %vm600, %v4744, %v5120
        %v5387 = vsel %vm600, %v4745, %v5122
        %v5390 = vsel %vm600, %v4746, %v5124
        %v5393 = vsel %vm600, %v4747, %v5126
        %v5396 = vsel %vm600, %v4748, %v5128
        %v5399 = vsel %vm600, %v4749, %v5130
        %v5402 = vsel %vm600, %v4750, %v5132
        %v5405 = vsel %vm600, %v4751, %v5134
        %v5408 = vsel %vm600, %v4752, %v5136
        %v5410 = vsel %vm3092, %v5363, %v5154
        %v5412 = vsel %vm3092, %v5366, %v5156
        %v5414 = vsel %vm3092, %v5369, %v5158
        %v5416 = vsel %vm3092, %v5372, %v5160
        %v5418 = vsel %vm3092, %v5375, %v5162
        %v5420 = vsel %vm3092, %v5378, %v5164
        %v5422 = vsel %vm3092, %v5381, %v5166
        %v5424 = vsel %vm3092, %v5384, %v5168
        %v5426 = vsel %vm3092, %v5387, %v5170
        %v5428 = vsel %vm3092, %v5390, %v5172
        %v5430 = vsel %vm3092, %v5393, %v5174
        %v5432 = vsel %vm3092, %v5396, %v5176
        %v5434 = vsel %vm3092, %v5399, %v5178
        %v5436 = vsel %vm3092, %v5402, %v5180
        %v5438 = vsel %vm3092, %v5405, %v5182
        %v5440 = vsel %vm3092, %v5408, %v5184
        %v5442 = vsel %vm3125, %v5410, %v5202
        %v5445 = vsel %vm3125, %v5412, %v5204
        %v5448 = vsel %vm3125, %v5414, %v5206
        %v5451 = vsel %vm3125, %v5416, %v5208
        %v5454 = vsel %vm3125, %v5418, %v5210
        %v5457 = vsel %vm3125, %v5420, %v5212
        %v5460 = vsel %vm3125, %v5422, %v5214
        %v5463 = vsel %vm3125, %v5424, %v5216
        %v5466 = vsel %vm3125, %v5426, %v5218
        %v5469 = vsel %vm3125, %v5428, %v5220
        %v5472 = vsel %vm3125, %v5430, %v5222
        %v5475 = vsel %vm3125, %v5432, %v5224
        %v5478 = vsel %vm3125, %v5434, %v5226
        %v5481 = vsel %vm3125, %v5436, %v5228
        %v5484 = vsel %vm3125, %v5438, %v5230
        %v5487 = vsel %vm3125, %v5440, %v5232
        %v5489 = vld [vmem:[#allocation17] sm:$0xf]
        %v5490 = vld [vmem:[#allocation17 + $0x4] sm:$0xf]
        %v5491 = vld [vmem:[#allocation17 + $0x8] sm:$0xf]
        %v5492 = vld [vmem:[#allocation17 + $0xc] sm:$0xf]
        %v5493 = vld [vmem:[#allocation17 + $0x10] sm:$0xf]
        %v5494 = vld [vmem:[#allocation17 + $0x14] sm:$0xf]
        %v5495 = vld [vmem:[#allocation17 + $0x18] sm:$0xf]
        %v5496 = vld [vmem:[#allocation17 + $0x1c] sm:$0xf]
        %v5497 = vld [vmem:[#allocation17 + $0x20] sm:$0xf]
        %v5498 = vld [vmem:[#allocation17 + $0x24] sm:$0xf]
        %v5499 = vld [vmem:[#allocation17 + $0x28] sm:$0xf]
        %v5500 = vld [vmem:[#allocation17 + $0x2c] sm:$0xf]
        %v5501 = vld [vmem:[#allocation17 + $0x30] sm:$0xf]
        %v5502 = vld [vmem:[#allocation17 + $0x34] sm:$0xf]
        %v5503 = vld [vmem:[#allocation17 + $0x38] sm:$0xf]
        %v5504 = vld [vmem:[#allocation17 + $0x3c] sm:$0xf]
        %v5505 = vld [vmem:[#allocation17 + $0x40] sm:$0xf]
        %v5506 = vld [vmem:[#allocation17 + $0x44] sm:$0xf]
        %v5507 = vld [vmem:[#allocation17 + $0x48] sm:$0xf]
        %v5508 = vld [vmem:[#allocation17 + $0x4c] sm:$0xf]
        %v5509 = vld [vmem:[#allocation17 + $0x50] sm:$0xf]
        %v5510 = vld [vmem:[#allocation17 + $0x54] sm:$0xf]
        %v5511 = vld [vmem:[#allocation17 + $0x58] sm:$0xf]
        %v5512 = vld [vmem:[#allocation17 + $0x5c] sm:$0xf]
        %v5513 = vld [vmem:[#allocation17 + $0x60] sm:$0xf]
        %v5514 = vld [vmem:[#allocation17 + $0x64] sm:$0xf]
        %v5515 = vld [vmem:[#allocation17 + $0x68] sm:$0xf]
        %v5516 = vld [vmem:[#allocation17 + $0x6c] sm:$0xf]
        %v5517 = vld [vmem:[#allocation17 + $0x70] sm:$0xf]
        %v5518 = vld [vmem:[#allocation17 + $0x74] sm:$0xf]
        %v5519 = vld [vmem:[#allocation17 + $0x78] sm:$0xf]
        %v5520 = vld [vmem:[#allocation17 + $0x7c] sm:$0xf]
        %v5521 = vld [vmem:[#allocation17 + $0x80] sm:$0xf]
        %v5522 = vld [vmem:[#allocation17 + $0x84] sm:$0xf]
        %v5523 = vld [vmem:[#allocation17 + $0x88] sm:$0xf]
        %v5524 = vld [vmem:[#allocation17 + $0x8c] sm:$0xf]
        %v5525 = vld [vmem:[#allocation19] sm:$0x1]
        %v5527 = vlaneseq
        %v5528 = vshrl.u32 %v5527, 7
        %v5529 = vsub.s32 0, %v5528
        %v5530 = vrot.slane %v5525, %v5529
        %v5568 = vunpack.c.l.b16 %v5489
        %v5569 = vunpack.c.l.b16 %v5490
        %v5570 = vunpack.c.l.b16 %v5491
        %v5571 = vunpack.c.l.b16 %v5492
        %v5572 = vunpack.c.l.b16 %v5493
        %v5573 = vunpack.c.l.b16 %v5494
        %v5574 = vunpack.c.l.b16 %v5495
        %v5575 = vunpack.c.l.b16 %v5496
        %v5576 = vunpack.c.l.b16 %v5497
        %v5577 = vunpack.c.l.b16 %v5498
        %v5578 = vunpack.c.l.b16 %v5499
        %v5579 = vunpack.c.l.b16 %v5500
        %v5580 = vunpack.c.l.b16 %v5501
        %v5581 = vunpack.c.l.b16 %v5502
        %v5582 = vunpack.c.l.b16 %v5503
        %v5583 = vunpack.c.l.b16 %v5504
        %v5584 = vunpack.c.l.b16 %v5505
        %v5585 = vunpack.c.l.b16 %v5506
        %v5586 = vunpack.c.l.b16 %v5507
        %v5587 = vunpack.c.l.b16 %v5508
        %v5588 = vunpack.c.l.b16 %v5509
        %v5589 = vunpack.c.l.b16 %v5510
        %v5590 = vunpack.c.l.b16 %v5511
        %v5591 = vunpack.c.l.b16 %v5512
        %v5592 = vunpack.c.l.b16 %v5513
        %v5593 = vunpack.c.l.b16 %v5514
        %v5594 = vunpack.c.l.b16 %v5515
        %v5595 = vunpack.c.l.b16 %v5516
        %v5596 = vunpack.c.l.b16 %v5517
        %v5597 = vunpack.c.l.b16 %v5518
        %v5598 = vunpack.c.l.b16 %v5519
        %v5599 = vunpack.c.l.b16 %v5520
        %v5600 = vunpack.c.l.b16 %v5521
        %v5601 = vunpack.c.l.b16 %v5522
        %v5602 = vunpack.c.l.b16 %v5523
        %v5603 = vunpack.c.l.b16 %v5524
        %v5604 = vpack.c.b16 %v5569, %v5568
        %v5605 = vpack.c.b16 %v5571, %v5570
        %v5606 = vpack.c.b16 %v5573, %v5572
        %v5607 = vpack.c.b16 %v5575, %v5574
        %v5608 = vpack.c.b16 %v5577, %v5576
        %v5609 = vpack.c.b16 %v5579, %v5578
        %v5610 = vpack.c.b16 %v5581, %v5580
        %v5611 = vpack.c.b16 %v5583, %v5582
        %v5612 = vpack.c.b16 %v5585, %v5584
        %v5613 = vpack.c.b16 %v5587, %v5586
        %v5614 = vpack.c.b16 %v5589, %v5588
        %v5615 = vpack.c.b16 %v5591, %v5590
        %v5616 = vpack.c.b16 %v5593, %v5592
        %v5617 = vpack.c.b16 %v5595, %v5594
        %v5618 = vpack.c.b16 %v5597, %v5596
        %v5619 = vpack.c.b16 %v5599, %v5598
        %v5620 = vpack.c.b16 %v5601, %v5600
        %v5621 = vpack.c.b16 %v5603, %v5602
        %v5641 = vsel %vm600, %v4929, 0
        %v5644 = vsel %vm600, %v4930, 0
        %v5647 = vsel %vm600, %v4931, 0
        %v5650 = vsel %vm600, %v4932, 0
        %v5653 = vsel %vm600, %v4933, 0
        %v5656 = vsel %vm600, %v4934, 0
        %v5659 = vsel %vm600, %v4935, 0
        %v5662 = vsel %vm600, %v4936, 0
        %v5665 = vsel %vm600, %v4937, 0
        %v5668 = vsel %vm600, %v4938, 0
        %v5671 = vsel %vm600, %v4939, 0
        %v5674 = vsel %vm600, %v4940, 0
        %v5677 = vsel %vm600, %v4941, 0
        %v5680 = vsel %vm600, %v4942, 0
        %v5683 = vsel %vm600, %v4943, 0
        %v5686 = vsel %vm600, %v4944, 0
        %5688 = vmatprep.subr.bf16.mxu0 0
        %5689 = vmatpush1.bf16.msra.mxu0 %v5604
        %5690 = vmatprep.subr.bf16.mxu0 0
        %5691 = vmatpush1.bf16.msra.mxu0 %v5605
        %5692 = vmatprep.subr.bf16.mxu0 0
        %5693 = vmatpush1.bf16.msra.mxu0 %v5606
        %5694 = vmatprep.subr.bf16.mxu0 0
        %5695 = vmatpush1.bf16.msra.mxu0 %v5607
        %5696 = vmatprep.subr.bf16.mxu0 0
        %5697 = vmatpush1.bf16.msra.mxu0 %v5608
        %5698 = vmatprep.subr.bf16.mxu0 0
        %5699 = vmatpush1.bf16.msra.mxu0 %v5609
        %5700 = vmatprep.subr.bf16.mxu0 0
        %5701 = vmatpush1.bf16.msra.mxu0 %v5610
        %5702 = vmatprep.subr.bf16.mxu0 0
        %5703 = vmatpush1.bf16.msra.mxu0 %v5611
        %5704 = vmatprep.subr.bf16.mxu0 0
        %5705 = vmatpush1.bf16.msra.mxu0 %v5612
        %5706 = vmatprep.subr.bf16.mxu0 0
        %5707 = vmatpush1.bf16.msra.mxu0 %v5613
        %5708 = vmatprep.subr.bf16.mxu0 0
        %5709 = vmatpush1.bf16.msra.mxu0 %v5614
        %5710 = vmatprep.subr.bf16.mxu0 0
        %5711 = vmatpush1.bf16.msra.mxu0 %v5615
        %5712 = vmatprep.subr.bf16.mxu0 0
        %5713 = vmatpush1.bf16.msra.mxu0 %v5616
        %5714 = vmatprep.subr.bf16.mxu0 0
        %5715 = vmatpush1.bf16.msra.mxu0 %v5617
        %5716 = vmatprep.subr.bf16.mxu0 0
        %5717 = vmatpush1.bf16.msra.mxu0 %v5618
        %5718 = vmatprep.subr.bf16.mxu0 0
        %5719 = vmatpush1.bf16.msra.mxu0 %v5619
        %5720 = vmatprep.mubr.bf16.mxu0 %v5442
        %5721 = vmatmul.mubr.bf16.gmra.mrb[0].mxu0 %v5314
        %v5722 = vpop.f32.mrb[0].mxu0
        %v5723 = vadd.f32 %v5530, %v5722
        %v5724 = vpop.f32.mrb[0].mxu0
        %v5725 = vpop.f32.mrb[0].mxu0
        %v5726 = vadd.f32 %v5530, %v5725
        %v5727 = vpop.f32.mrb[0].mxu0
        %5728 = vmatprep.mubr.bf16.mxu0 %v5445
        %5729 = vmatmul.mubr.bf16.gmra.mrb[0].mxu0 %v5317
        %v5730 = vpop.f32.mrb[0].mxu0
        %v5731 = vadd.f32 %v5530, %v5730
        %v5732 = vpop.f32.mrb[0].mxu0
        %v5733 = vpop.f32.mrb[0].mxu0
        %v5734 = vadd.f32 %v5530, %v5733
        %v5735 = vpop.f32.mrb[0].mxu0
        %5736 = vmatprep.mubr.bf16.mxu0 %v5448
        %5737 = vmatmul.mubr.bf16.gmra.mrb[0].mxu0 %v5320
        %v5738 = vpop.f32.mrb[0].mxu0
        %v5739 = vadd.f32 %v5530, %v5738
        %v5740 = vpop.f32.mrb[0].mxu0
        %v5741 = vpop.f32.mrb[0].mxu0
        %v5742 = vadd.f32 %v5530, %v5741
        %v5743 = vpop.f32.mrb[0].mxu0
        %5744 = vmatprep.mubr.bf16.mxu0 %v5451
        %5745 = vmatmul.mubr.bf16.gmra.mrb[0].mxu0 %v5323
        %v5746 = vpop.f32.mrb[0].mxu0
        %v5747 = vadd.f32 %v5530, %v5746
        %v5748 = vpop.f32.mrb[0].mxu0
        %v5749 = vpop.f32.mrb[0].mxu0
        %v5750 = vadd.f32 %v5530, %v5749
        %v5751 = vpop.f32.mrb[0].mxu0
        %5752 = vmatprep.mubr.bf16.mxu0 %v5454
        %5753 = vmatmul.mubr.bf16.gmra.mrb[0].mxu0 %v5326
        %v5754 = vpop.f32.mrb[0].mxu0
        %v5755 = vadd.f32 %v5530, %v5754
        %v5756 = vpop.f32.mrb[0].mxu0
        %v5757 = vpop.f32.mrb[0].mxu0
        %v5758 = vadd.f32 %v5530, %v5757
        %v5759 = vpop.f32.mrb[0].mxu0
        %5760 = vmatprep.mubr.bf16.mxu0 %v5457
        %5761 = vmatmul.mubr.bf16.gmra.mrb[0].mxu0 %v5329
        %v5762 = vpop.f32.mrb[0].mxu0
        %v5763 = vadd.f32 %v5530, %v5762
        %v5764 = vpop.f32.mrb[0].mxu0
        %v5765 = vpop.f32.mrb[0].mxu0
        %v5766 = vadd.f32 %v5530, %v5765
        %v5767 = vpop.f32.mrb[0].mxu0
        %5768 = vmatprep.mubr.bf16.mxu0 %v5460
        %5769 = vmatmul.mubr.bf16.gmra.mrb[0].mxu0 %v5332
        %v5770 = vpop.f32.mrb[0].mxu0
        %v5771 = vadd.f32 %v5530, %v5770
        %v5772 = vpop.f32.mrb[0].mxu0
        %v5773 = vpop.f32.mrb[0].mxu0
        %v5774 = vadd.f32 %v5530, %v5773
        %v5775 = vpop.f32.mrb[0].mxu0
        %5776 = vmatprep.mubr.bf16.mxu0 %v5463
        %5777 = vmatmul.mubr.bf16.gmra.mrb[0].mxu0 %v5335
        %v5778 = vpop.f32.mrb[0].mxu0
        %v5779 = vadd.f32 %v5530, %v5778
        %v5780 = vpop.f32.mrb[0].mxu0
        %v5781 = vpop.f32.mrb[0].mxu0
        %v5782 = vadd.f32 %v5530, %v5781
        %v5783 = vpop.f32.mrb[0].mxu0
        %5784 = vmatprep.mubr.bf16.mxu0 %v5466
        %5785 = vmatmul.mubr.bf16.gmra.mrb[0].mxu0 %v5338
        %v5786 = vpop.f32.mrb[0].mxu0
        %v5787 = vadd.f32 %v5530, %v5786
        %v5788 = vpop.f32.mrb[0].mxu0
        %v5789 = vpop.f32.mrb[0].mxu0
        %v5790 = vadd.f32 %v5530, %v5789
        %v5791 = vpop.f32.mrb[0].mxu0
        %5792 = vmatprep.mubr.bf16.mxu0 %v5469
        %5793 = vmatmul.mubr.bf16.gmra.mrb[0].mxu0 %v5341
        %v5794 = vpop.f32.mrb[0].mxu0
        %v5795 = vadd.f32 %v5530, %v5794
        %v5796 = vpop.f32.mrb[0].mxu0
        %v5797 = vpop.f32.mrb[0].mxu0
        %v5798 = vadd.f32 %v5530, %v5797
        %v5799 = vpop.f32.mrb[0].mxu0
        %5800 = vmatprep.mubr.bf16.mxu0 %v5472
        %5801 = vmatmul.mubr.bf16.gmra.mrb[0].mxu0 %v5344
        %v5802 = vpop.f32.mrb[0].mxu0
        %v5803 = vadd.f32 %v5530, %v5802
        %v5804 = vpop.f32.mrb[0].mxu0
        %v5805 = vpop.f32.mrb[0].mxu0
        %v5806 = vadd.f32 %v5530, %v5805
        %v5807 = vpop.f32.mrb[0].mxu0
        %5808 = vmatprep.mubr.bf16.mxu0 %v5475
        %5809 = vmatmul.mubr.bf16.gmra.mrb[0].mxu0 %v5347
        %v5810 = vpop.f32.mrb[0].mxu0
        %v5811 = vadd.f32 %v5530, %v5810
        %v5812 = vpop.f32.mrb[0].mxu0
        %v5813 = vpop.f32.mrb[0].mxu0
        %v5814 = vadd.f32 %v5530, %v5813
        %v5815 = vpop.f32.mrb[0].mxu0
        %5816 = vmatprep.mubr.bf16.mxu0 %v5478
        %5817 = vmatmul.mubr.bf16.gmra.mrb[0].mxu0 %v5350
        %v5818 = vpop.f32.mrb[0].mxu0
        %v5819 = vadd.f32 %v5530, %v5818
        %v5820 = vpop.f32.mrb[0].mxu0
        %v5821 = vpop.f32.mrb[0].mxu0
        %v5822 = vadd.f32 %v5530, %v5821
        %v5823 = vpop.f32.mrb[0].mxu0
        %5824 = vmatprep.mubr.bf16.mxu0 %v5481
        %5825 = vmatmul.mubr.bf16.gmra.mrb[0].mxu0 %v5353
        %v5826 = vpop.f32.mrb[0].mxu0
        %v5827 = vadd.f32 %v5530, %v5826
        %v5828 = vpop.f32.mrb[0].mxu0
        %v5829 = vpop.f32.mrb[0].mxu0
        %v5830 = vadd.f32 %v5530, %v5829
        %v5831 = vpop.f32.mrb[0].mxu0
        %5832 = vmatprep.mubr.bf16.mxu0 %v5484
        %5833 = vmatmul.mubr.bf16.gmra.mrb[0].mxu0 %v5356
        %v5834 = vpop.f32.mrb[0].mxu0
        %v5835 = vadd.f32 %v5530, %v5834
        %v5836 = vpop.f32.mrb[0].mxu0
        %v5837 = vpop.f32.mrb[0].mxu0
        %v5838 = vadd.f32 %v5530, %v5837
        %v5839 = vpop.f32.mrb[0].mxu0
        %5840 = vmatprep.mubr.bf16.mxu0 %v5487
        %5841 = vmatmul.mubr.bf16.gmra.mrb[0].mxu0 %v5359
        %v5842 = vpop.f32.mrb[0].mxu0
        %v5843 = vadd.f32 %v5530, %v5842
        %v5844 = vpop.f32.mrb[0].mxu0
        %v5845 = vpop.f32.mrb[0].mxu0
        %v5846 = vadd.f32 %v5530, %v5845
        %v5847 = vpop.f32.mrb[0].mxu0
        %5848 = vdwg.mxu0
        %5849 = vmatprep.subr.bf16.mxu0 0
        %5850 = vmatpush1.bf16.msra.mxu0 %v5620
        %5851 = vmatprep.subr.bf16.mxu0 0
        %5852 = vmatpush1.bf16.msra.mxu0 %v5621
        %5853 = vmatprep.subr.bf16.mxu0 0
        %5854 = vmatpush1.bf16.msra.mxu0 0
        %5855 = vmatprep.subr.bf16.mxu0 0
        %5856 = vmatpush1.bf16.msra.mxu0 0
        %5857 = vmatprep.subr.bf16.mxu0 0
        %5858 = vmatpush1.bf16.msra.mxu0 0
        %5859 = vmatprep.subr.bf16.mxu0 0
        %5860 = vmatpush1.bf16.msra.mxu0 0
        %5861 = vmatprep.subr.bf16.mxu0 0
        %5862 = vmatpush1.bf16.msra.mxu0 0
        %5863 = vmatprep.subr.bf16.mxu0 0
        %5864 = vmatpush1.bf16.msra.mxu0 0
        %5865 = vmatprep.subr.bf16.mxu0 0
        %5866 = vmatpush1.bf16.msra.mxu0 0
        %5867 = vmatprep.subr.bf16.mxu0 0
        %5868 = vmatpush1.bf16.msra.mxu0 0
        %5869 = vmatprep.subr.bf16.mxu0 0
        %5870 = vmatpush1.bf16.msra.mxu0 0
        %5871 = vmatprep.subr.bf16.mxu0 0
        %5872 = vmatpush1.bf16.msra.mxu0 0
        %5873 = vmatprep.subr.bf16.mxu0 0
        %5874 = vmatpush1.bf16.msra.mxu0 0
        %5875 = vmatprep.subr.bf16.mxu0 0
        %5876 = vmatpush1.bf16.msra.mxu0 0
        %5877 = vmatprep.subr.bf16.mxu0 0
        %5878 = vmatpush1.bf16.msra.mxu0 0
        %5879 = vmatprep.subr.bf16.mxu0 0
        %5880 = vmatpush1.bf16.msra.mxu0 0
        %5881 = vmatprep.mubr.bf16.mxu0 0
        %5882 = vmatmul.mubr.bf16.gmra.mrb[0].mxu0 %v5641
        %v5883 = vpop.f32.mrb[0].mxu0
        %v5884 = vadd.f32 %v5723, %v5883
        %v5885 = vpop.f32.mrb[0].mxu0
        %v5886 = vpop.f32.mrb[0].mxu0
        %v5887 = vadd.f32 %v5726, %v5886
        %v5888 = vpop.f32.mrb[0].mxu0
        %5889 = vmatprep.mubr.bf16.mxu0 0
        %5890 = vmatmul.mubr.bf16.gmra.mrb[0].mxu0 %v5644
        %v5891 = vpop.f32.mrb[0].mxu0
        %v5892 = vadd.f32 %v5731, %v5891
        %v5893 = vpop.f32.mrb[0].mxu0
        %v5894 = vpop.f32.mrb[0].mxu0
        %v5895 = vadd.f32 %v5734, %v5894
        %v5896 = vpop.f32.mrb[0].mxu0
        %5897 = vmatprep.mubr.bf16.mxu0 0
        %5898 = vmatmul.mubr.bf16.gmra.mrb[0].mxu0 %v5647
        %v5899 = vpop.f32.mrb[0].mxu0
        %v5900 = vadd.f32 %v5739, %v5899
        %v5901 = vpop.f32.mrb[0].mxu0
        %v5902 = vpop.f32.mrb[0].mxu0
        %v5903 = vadd.f32 %v5742, %v5902
        %v5904 = vpop.f32.mrb[0].mxu0
        %5905 = vmatprep.mubr.bf16.mxu0 0
        %5906 = vmatmul.mubr.bf16.gmra.mrb[0].mxu0 %v5650
        %v5907 = vpop.f32.mrb[0].mxu0
        %v5908 = vadd.f32 %v5747, %v5907
        %v5909 = vpop.f32.mrb[0].mxu0
        %v5910 = vpop.f32.mrb[0].mxu0
        %v5911 = vadd.f32 %v5750, %v5910
        %v5912 = vpop.f32.mrb[0].mxu0
        %5913 = vmatprep.mubr.bf16.mxu0 0
        %5914 = vmatmul.mubr.bf16.gmra.mrb[0].mxu0 %v5653
        %v5915 = vpop.f32.mrb[0].mxu0
        %v5916 = vadd.f32 %v5755, %v5915
        %v5917 = vpop.f32.mrb[0].mxu0
        %v5918 = vpop.f32.mrb[0].mxu0
        %v5919 = vadd.f32 %v5758, %v5918
        %v5920 = vpop.f32.mrb[0].mxu0
        %5921 = vmatprep.mubr.bf16.mxu0 0
        %5922 = vmatmul.mubr.bf16.gmra.mrb[0].mxu0 %v5656
        %v5923 = vpop.f32.mrb[0].mxu0
        %v5924 = vadd.f32 %v5763, %v5923
        %v5925 = vpop.f32.mrb[0].mxu0
        %v5926 = vpop.f32.mrb[0].mxu0
        %v5927 = vadd.f32 %v5766, %v5926
        %v5928 = vpop.f32.mrb[0].mxu0
        %5929 = vmatprep.mubr.bf16.mxu0 0
        %5930 = vmatmul.mubr.bf16.gmra.mrb[0].mxu0 %v5659
        %v5931 = vpop.f32.mrb[0].mxu0
        %v5932 = vadd.f32 %v5771, %v5931
        %v5933 = vpop.f32.mrb[0].mxu0
        %v5934 = vpop.f32.mrb[0].mxu0
        %v5935 = vadd.f32 %v5774, %v5934
        %v5936 = vpop.f32.mrb[0].mxu0
        %5937 = vmatprep.mubr.bf16.mxu0 0
        %5938 = vmatmul.mubr.bf16.gmra.mrb[0].mxu0 %v5662
        %v5939 = vpop.f32.mrb[0].mxu0
        %v5940 = vadd.f32 %v5779, %v5939
        %v5941 = vpop.f32.mrb[0].mxu0
        %v5942 = vpop.f32.mrb[0].mxu0
        %v5943 = vadd.f32 %v5782, %v5942
        %v5944 = vpop.f32.mrb[0].mxu0
        %5945 = vmatprep.mubr.bf16.mxu0 0
        %5946 = vmatmul.mubr.bf16.gmra.mrb[0].mxu0 %v5665
        %v5947 = vpop.f32.mrb[0].mxu0
        %v5948 = vadd.f32 %v5787, %v5947
        %v5949 = vpop.f32.mrb[0].mxu0
        %v5950 = vpop.f32.mrb[0].mxu0
        %v5951 = vadd.f32 %v5790, %v5950
        %v5952 = vpop.f32.mrb[0].mxu0
        %5953 = vmatprep.mubr.bf16.mxu0 0
        %5954 = vmatmul.mubr.bf16.gmra.mrb[0].mxu0 %v5668
        %v5955 = vpop.f32.mrb[0].mxu0
        %v5956 = vadd.f32 %v5795, %v5955
        %v5957 = vpop.f32.mrb[0].mxu0
        %v5958 = vpop.f32.mrb[0].mxu0
        %v5959 = vadd.f32 %v5798, %v5958
        %v5960 = vpop.f32.mrb[0].mxu0
        %5961 = vmatprep.mubr.bf16.mxu0 0
        %5962 = vmatmul.mubr.bf16.gmra.mrb[0].mxu0 %v5671
        %v5963 = vpop.f32.mrb[0].mxu0
        %v5964 = vadd.f32 %v5803, %v5963
        %v5965 = vpop.f32.mrb[0].mxu0
        %v5966 = vpop.f32.mrb[0].mxu0
        %v5967 = vadd.f32 %v5806, %v5966
        %v5968 = vpop.f32.mrb[0].mxu0
        %5969 = vmatprep.mubr.bf16.mxu0 0
        %5970 = vmatmul.mubr.bf16.gmra.mrb[0].mxu0 %v5674
        %v5971 = vpop.f32.mrb[0].mxu0
        %v5972 = vadd.f32 %v5811, %v5971
        %v5973 = vpop.f32.mrb[0].mxu0
        %v5974 = vpop.f32.mrb[0].mxu0
        %v5975 = vadd.f32 %v5814, %v5974
        %v5976 = vpop.f32.mrb[0].mxu0
        %5977 = vmatprep.mubr.bf16.mxu0 0
        %5978 = vmatmul.mubr.bf16.gmra.mrb[0].mxu0 %v5677
        %v5979 = vpop.f32.mrb[0].mxu0
        %v5980 = vadd.f32 %v5819, %v5979
        %v5981 = vpop.f32.mrb[0].mxu0
        %v5982 = vpop.f32.mrb[0].mxu0
        %v5983 = vadd.f32 %v5822, %v5982
        %v5984 = vpop.f32.mrb[0].mxu0
        %5985 = vmatprep.mubr.bf16.mxu0 0
        %5986 = vmatmul.mubr.bf16.gmra.mrb[0].mxu0 %v5680
        %v5987 = vpop.f32.mrb[0].mxu0
        %v5988 = vadd.f32 %v5827, %v5987
        %v5989 = vpop.f32.mrb[0].mxu0
        %v5990 = vpop.f32.mrb[0].mxu0
        %v5991 = vadd.f32 %v5830, %v5990
        %v5992 = vpop.f32.mrb[0].mxu0
        %5993 = vmatprep.mubr.bf16.mxu0 0
        %5994 = vmatmul.mubr.bf16.gmra.mrb[0].mxu0 %v5683
        %v5995 = vpop.f32.mrb[0].mxu0
        %v5996 = vadd.f32 %v5835, %v5995
        %v5997 = vpop.f32.mrb[0].mxu0
        %v5998 = vpop.f32.mrb[0].mxu0
        %v5999 = vadd.f32 %v5838, %v5998
        %v6000 = vpop.f32.mrb[0].mxu0
        %6001 = vmatprep.mubr.bf16.mxu0 0
        %6002 = vmatmul.mubr.bf16.gmra.mrb[0].mxu0 %v5686
        %v6003 = vpop.f32.mrb[0].mxu0
        %v6004 = vadd.f32 %v5843, %v6003
        %v6005 = vpop.f32.mrb[0].mxu0
        %v6006 = vpop.f32.mrb[0].mxu0
        %v6007 = vadd.f32 %v5846, %v6006
        %v6008 = vpop.f32.mrb[0].mxu0
        %6009 = vdwg.mxu0
        %v6010 = vadd.f32 %v568, %v5884
        %v6011 = vadd.f32 %v569, %v5887
        %v6012 = vadd.f32 %v570, %v5892
        %v6013 = vadd.f32 %v571, %v5895
        %v6014 = vadd.f32 %v572, %v5900
        %v6015 = vadd.f32 %v573, %v5903
        %v6016 = vadd.f32 %v574, %v5908
        %v6017 = vadd.f32 %v575, %v5911
        %v6018 = vadd.f32 %v576, %v5916
        %v6019 = vadd.f32 %v577, %v5919
        %v6020 = vadd.f32 %v578, %v5924
        %v6021 = vadd.f32 %v579, %v5927
        %v6022 = vadd.f32 %v580, %v5932
        %v6023 = vadd.f32 %v581, %v5935
        %v6024 = vadd.f32 %v582, %v5940
        %v6025 = vadd.f32 %v583, %v5943
        %v6026 = vadd.f32 %v584, %v5948
        %v6027 = vadd.f32 %v585, %v5951
        %v6028 = vadd.f32 %v586, %v5956
        %v6029 = vadd.f32 %v587, %v5959
        %v6030 = vadd.f32 %v588, %v5964
        %v6031 = vadd.f32 %v589, %v5967
        %v6032 = vadd.f32 %v590, %v5972
        %v6033 = vadd.f32 %v591, %v5975
        %v6034 = vadd.f32 %v592, %v5980
        %v6035 = vadd.f32 %v593, %v5983
        %v6036 = vadd.f32 %v594, %v5988
        %v6037 = vadd.f32 %v595, %v5991
        %v6038 = vadd.f32 %v596, %v5996
        %v6039 = vadd.f32 %v597, %v5999
        %v6040 = vadd.f32 %v598, %v6004
        %v6041 = vadd.f32 %v599, %v6007
        %6042 = vst.msk [vmem:[%s563] sm:$0xff] %vm600, %v6010
        %6043 = vst.msk [vmem:[%s563 + $0x8] sm:$0xff] %vm600, %v6011
        %6044 = vst.msk [vmem:[%s563 + $0x10] sm:$0xff] %vm600, %v6012
        %6045 = vst.msk [vmem:[%s563 + $0x18] sm:$0xff] %vm600, %v6013
        %6046 = vst.msk [vmem:[%s563 + $0x20] sm:$0xff] %vm600, %v6014
        %6047 = vst.msk [vmem:[%s563 + $0x28] sm:$0xff] %vm600, %v6015
        %6048 = vst.msk [vmem:[%s563 + $0x30] sm:$0xff] %vm600, %v6016
        %6049 = vst.msk [vmem:[%s563 + $0x38] sm:$0xff] %vm600, %v6017
        %6050 = vst.msk [vmem:[%s563 + $0x40] sm:$0xff] %vm600, %v6018
        %6051 = vst.msk [vmem:[%s563 + $0x48] sm:$0xff] %vm600, %v6019
        %6052 = vst.msk [vmem:[%s563 + $0x50] sm:$0xff] %vm600, %v6020
        %6053 = vst.msk [vmem:[%s563 + $0x58] sm:$0xff] %vm600, %v6021
        %6054 = vst.msk [vmem:[%s563 + $0x60] sm:$0xff] %vm600, %v6022
        %6055 = vst.msk [vmem:[%s563 + $0x68] sm:$0xff] %vm600, %v6023
        %6056 = vst.msk [vmem:[%s563 + $0x70] sm:$0xff] %vm600, %v6024
        %6057 = vst.msk [vmem:[%s563 + $0x78] sm:$0xff] %vm600, %v6025
        %6058 = vst.msk [vmem:[%s563 + $0x80] sm:$0xff] %vm600, %v6026
        %6059 = vst.msk [vmem:[%s563 + $0x88] sm:$0xff] %vm600, %v6027
        %6060 = vst.msk [vmem:[%s563 + $0x90] sm:$0xff] %vm600, %v6028
        %6061 = vst.msk [vmem:[%s563 + $0x98] sm:$0xff] %vm600, %v6029
        %6062 = vst.msk [vmem:[%s563 + $0xa0] sm:$0xff] %vm600, %v6030
        %6063 = vst.msk [vmem:[%s563 + $0xa8] sm:$0xff] %vm600, %v6031
        %6064 = vst.msk [vmem:[%s563 + $0xb0] sm:$0xff] %vm600, %v6032
        %6065 = vst.msk [vmem:[%s563 + $0xb8] sm:$0xff] %vm600, %v6033
        %6066 = vst.msk [vmem:[%s563 + $0xc0] sm:$0xff] %vm600, %v6034
        %6067 = vst.msk [vmem:[%s563 + $0xc8] sm:$0xff] %vm600, %v6035
        %6068 = vst.msk [vmem:[%s563 + $0xd0] sm:$0xff] %vm600, %v6036
        %6069 = vst.msk [vmem:[%s563 + $0xd8] sm:$0xff] %vm600, %v6037
        %6070 = vst.msk [vmem:[%s563 + $0xe0] sm:$0xff] %vm600, %v6038
        %6071 = vst.msk [vmem:[%s563 + $0xe8] sm:$0xff] %vm600, %v6039
        %6072 = vst.msk [vmem:[%s563 + $0xf0] sm:$0xff] %vm600, %v6040
        %6073 = vst.msk [vmem:[%s563 + $0xf8] sm:$0xff] %vm600, %v6041
        %s6074 = sand.u32 %s284, 1
        %s6075 = scalar_lea.sflag [#allocation4], %s6074
        %s6076 = sand.u32 %s284, 1
        %s6077 = smul.addr %s6076, 256
        %s6078 = scalar_lea.vmem [#allocation20], %s6077
        // Predicated region
        $region109: #{tpu_custom_call.1} parent=63 // pred_check
          %p6079 = pneg %p294
        $region110: #{tpu_custom_call.1} parent=63 // pred_check_branch
          %6081 = sbr.rel (%p6079) target = $region112
        $region111: #{tpu_custom_call.1} parent=63 // pred_region
          %s6082 = smul.u32 4, %s35
          %s6084 = ssub.s32 4096, 4096
          %6085 = vsyncadd %s6075, %s6084
          %s6086 = smul.addr %s6082, 8
          %s6087 = smul.addr %s6086, 128
          %s6088 = scalar_lea.hbm %s11, %s6087
          %s6089 = sshll.u32 %s6078, 4
          %s6090 = int_to_ptr.vmem [resolvable:$true] %s6089
          %6095 = dma.vmem_to_hbm [thread:$0]  %s6090, 4096, %s6088, %s6075, 128, 128, 8
        $region112: #{tpu_custom_call.1} parent=63 // pred_fallthru
          _
      $region64: #{tpu_custom_call.1} parent=5 // pred_fallthru
        _
      %p6096 = scmp.le.s32.totalorder 2, %s30
      // Predicated region
      $region113: #{tpu_custom_call.1} parent=5 // pred_check
        %p6097 = pneg %p6096
      $region114: #{tpu_custom_call.1} parent=5 // pred_check_branch
        %6099 = sbr.rel (%p6097) target = $region116
      $region115: #{tpu_custom_call.1} parent=5 // pred_region
        %s6100 = ssub.s32 %s30, 2
        // Predicated region
        $region117: #{tpu_custom_call.1} parent=115 // pred_check
          %p6101 = pneg %p300
        $region118: #{tpu_custom_call.1} parent=115 // pred_check_branch
          %6103 = sbr.rel (%p6101) target = $region120
        $region119: #{tpu_custom_call.1} parent=115 // pred_region
          %s6104 = sand.u32 %s285, 1
          %s6105 = scalar_lea.sflag [#allocation4], %s6104
          %s6106 = sand.u32 %s285, 1
          %s6107 = smul.addr %s6106, 256
          %s6108 = scalar_lea.vmem [#allocation20], %s6107
          %6109 = dma.done %s6105, 4096
        $region120: #{tpu_custom_call.1} parent=115 // pred_fallthru
          _
      $region116: #{tpu_custom_call.1} parent=5 // pred_fallthru
        _
    $region6: #{tpu_custom_call.1} parent=1 // loop_footer
      %s34 = sadd.s32 1, %s30
    $region7: #{tpu_custom_call.1} parent=1 // loop_footer_branch
      %29 = sbr.rel target = $region3
    $region8: #{tpu_custom_call.1} parent=1 // loop_exit
      _
    %6110 = vsyncpa [#allocation3], 1
    %s6111 = scalar_lea.sflag [#allocation3], 1
    %6112 = vsyncpa %s6111, 1
    %6113 = vsyncpa [#allocation6], 1
    %s6114 = scalar_lea.sflag [#allocation6], 1
    %6115 = vsyncpa %s6114, 1
    %6116 = vsyncpa [#allocation9], 1
    %6117 = vsyncpa [#allocation12], 1
    %6118 = vsyncpa [#allocation15], 1
    %6119 = vsyncpa [#allocation18], 1
    %6120 = vsyncpa [#allocation4], 1
    %s6121 = scalar_lea.sflag [#allocation4], 1
    %6122 = vsyncpa %s6121, 1

</llo_original>
